<compile_context>
chip_gen: v7x
topology: tpu7x:2x2x1
jax: 0.10.0
libtpu: 0.0.40
codegen_flags: <defaults>
</compile_context>

<pallas_src>
import functools

import numpy as np

import jax
import jax.numpy as jnp
from jax import lax
from jax.experimental import pallas as pl
from jax.experimental.pallas import tpu as pltpu

LEAKY_SLOPE = 0.2


def _leaky(x):
    return jnp.where(x > 0, x, LEAKY_SLOPE * x)


@functools.lru_cache(maxsize=1)
def _vmem_limit_bytes():
    cap = 64 * 1024 * 1024              # conservative default = v7x physical VMEM
    try:
        info = pltpu.get_tpu_info()
        cap = int(getattr(info, "vmem_capacity_bytes", cap))
    except Exception:
        pass
    return int(cap * 3 // 4)            # leave headroom for Mosaic scratch


def _cparams(sem):
    return pltpu.CompilerParams(dimension_semantics=sem,
                                vmem_limit_bytes=_vmem_limit_bytes())


# --------------------------------------------------------------------------
# Tap bookkeeping for the parity-plane layout (all offsets are static Python
# ints; every tap is a contiguous lane window -- no strided gathers).
# --------------------------------------------------------------------------
def _taps_s2_input(wf):
    """Stride-2 conv taps reading the parity planes of the zero-padded input."""
    return [((kh % 2) * 2 + (kw % 2), (kh // 2) * wf + (kw // 2))
            for kh in range(3) for kw in range(3)]


def _taps_s1_plane(pr, pc, wf):
    """Stride-1 conv taps that produce output-parity plane (pr, pc)."""
    return [((((pr + kh) % 2) * 2 + ((pc + kw) % 2)),
             ((pr + kh) // 2) * wf + ((pc + kw) // 2))
            for kh in range(3) for kw in range(3)]


def _taps_s2_y(wf):
    """Stride-2 conv taps reading the (top/left zero-bordered) y parity planes."""
    taps = []
    for kh in range(3):
        prow = 0 if kh == 1 else 1
        rr = 0 if kh == 0 else 1
        for kw in range(3):
            pcol = 0 if kw == 1 else 1
            cc = 0 if kw == 0 else 1
            taps.append((prow * 2 + pcol, rr * wf + cc))
    return taps


def _build_cols(planes, taps, length, cache, extra_zero_rows=0):
    """Concatenate nine contiguous lane windows into one (9*C[+pad], length)
    bf16 operand for a single big-K matmul.  `cache` de-duplicates identical
    (plane, offset) windows so each of the 4 distinct lane offsets is
    realigned only once."""
    parts = []
    for key in taps:
        if key not in cache:
            pidx, start = key
            cache[key] = planes[pidx][:, start:start + length].astype(jnp.bfloat16)
        parts.append(cache[key])
    if extra_zero_rows:
        parts.append(jnp.zeros((extra_zero_rows, length), jnp.bfloat16))
    return jnp.concatenate(parts, axis=0)


# --------------------------------------------------------------------------
# Pallas kernels
# --------------------------------------------------------------------------
def _stem_kernel(x_ref, w_ref, b_ref, o_ref, *, cin, wf, l_out, k_pad):
    """Fused hf/seg stem: stride-2 conv (block-diagonal weight) + bias + LeakyReLU."""
    planes = [x_ref[0, k * cin:(k + 1) * cin, :] for k in range(4)]
    cols = _build_cols(planes, _taps_s2_input(wf), l_out, {},
                       extra_zero_rows=k_pad)
    t = jnp.dot(w_ref[...], cols, preferred_element_type=jnp.float32) + b_ref[...]
    o_ref[0] = _leaky(t).astype(o_ref.dtype)


def _fused_block_body(x_ref, w1_ref, w2_ref, mask_ref, *, cin, cmid, wf, l_sp):
    """SRTConvBlock body: stride-1 conv + ReLU + stride-2 conv, all in VMEM.
    Returns the (Cout, l_sp) f32 pre-ReLU stride-2 result."""
    in_planes = [x_ref[0, k * cin:(k + 1) * cin, :] for k in range(4)]
    mask = mask_ref[...]                       # (1, l_sp) zeroes garbage columns
    zero_pref = jnp.zeros((cmid, wf + 1), jnp.bfloat16)

    # ---- stride-1 conv + ReLU, one big-K matmul per output parity plane
    cache = {}
    y_planes = []
    for pr in range(2):
        for pc in range(2):
            cols = _build_cols(in_planes, _taps_s1_plane(pr, pc, wf), l_sp, cache)
            y = jnp.dot(w1_ref[...], cols, preferred_element_type=jnp.float32)
            # ReLU; the masked garbage columns double as the zero left-border
            # that the stride-2 taps read.
            y = jnp.maximum(y, 0.0) * mask
            y_planes.append(
                jnp.concatenate([zero_pref, y.astype(jnp.bfloat16)], axis=1))

    # ---- stride-2 conv on the in-VMEM y planes (single big-K matmul)
    cols2 = _build_cols(y_planes, _taps_s2_y(wf), l_sp, {})
    return jnp.dot(w2_ref[...], cols2, preferred_element_type=jnp.float32)


def _block_kernel(x_ref, w1_ref, w2_ref, mask_ref, o_ref, *, cin, cmid, wf, l_sp):
    z = _fused_block_body(x_ref, w1_ref, w2_ref, mask_ref,
                          cin=cin, cmid=cmid, wf=wf, l_sp=l_sp)
    o_ref[0] = jnp.maximum(z, 0.0).astype(o_ref.dtype)


def _head(pooled, w1t_ref, b1_ref, w2t_ref, b2_ref):
    """fc1 + LeakyReLU + fc2 + tanh in column form (all f32)."""
    h = jnp.dot(w1t_ref[...], pooled, preferred_element_type=jnp.float32) + b1_ref[...]
    h = _leaky(h)
    c = jnp.dot(w2t_ref[...], h, preferred_element_type=jnp.float32) + b2_ref[...]
    return jnp.tanh(c)


def _block_pool_head_kernel(x_ref, w1_ref, w2_ref, mask_ref,
                            w1t_ref, b1_ref, w2t_ref, b2_ref, o_ref,
                            *, cin, cmid, wf, l_sp, inv_hw):
    """Last SRTConvBlock fused with spatial mean + fc1/LeakyReLU + fc2/tanh."""
    z = _fused_block_body(x_ref, w1_ref, w2_ref, mask_ref,
                          cin=cin, cmid=cmid, wf=wf, l_sp=l_sp)
    z = jnp.maximum(z, 0.0) * mask_ref[...]                  # ReLU + drop garbage
    pooled = jnp.sum(z, axis=1, keepdims=True) * inv_hw      # one x-lane reduce
    o_ref[0] = _head(pooled, w1t_ref, b1_ref, w2t_ref, b2_ref).astype(o_ref.dtype)


def _pool_head_kernel(f_ref, mask_ref, w1t_ref, b1_ref, w2t_ref, b2_ref, o_ref,
                      *, inv_hw):
    """Spatial mean + fc head (only used when the encoder has no conv blocks)."""
    t = f_ref[0].astype(jnp.float32) * mask_ref[...]
    pooled = jnp.sum(t, axis=1, keepdims=True) * inv_hw
    o_ref[0] = _head(pooled, w1t_ref, b1_ref, w2t_ref, b2_ref).astype(o_ref.dtype)


# --------------------------------------------------------------------------
# XLA-side layout glue (one cheap pass per stage boundary)
# --------------------------------------------------------------------------
def _to_planes(x):
    """(B, C, H, W) -> parity planes of the zero-padded image, flattened with
    row stride Wf = W/2 + 1, as (B, 4*C, (H/2 + 2) * Wf) bf16."""
    B, C, H, W = x.shape
    if H % 2 or W % 2:
        # TODO(synk): odd spatial sizes need per-plane shape bookkeeping.
        raise ValueError("parity-plane layout needs even spatial dims")
    hh, wh = H // 2, W // 2
    wf = wh + 1
    xp = jnp.pad(x, ((0, 0), (0, 0), (1, 1), (1, 1)))
    p = jnp.stack([xp[:, :, r::2, c::2] for r in range(2) for c in range(2)],
                  axis=1)                                   # (B, 4, C, hh+1, wf)
    p = p.reshape(B, 4 * C, (hh + 1) * wf)
    p = jnp.pad(p, ((0, 0), (0, 0), (0, wf)))               # slack for (1,1) window
    return p.astype(jnp.bfloat16), hh, wh, wf


def _col_mask(hh, wh, wf):
    m = (np.arange(hh * wf) % wf < wh).astype(np.float32)
    return jnp.asarray(m.reshape(1, hh * wf))


def _flat_to_image(x_flat, hh, wh, wf):
    B, C, _ = x_flat.shape
    return x_flat.reshape(B, C, hh, wf)[:, :, :, :wh]


# --------------------------------------------------------------------------
# pallas_call wrappers
# --------------------------------------------------------------------------
def stem_conv(x, w_mat, b_col):
    """Fused hf/seg stride-2 stem conv + bias + LeakyReLU.
    x: (B, Cin_padded, H, W).  Returns flat (B, 16, hh*wf) bf16 and dims."""
    planes, hh, wh, wf = _to_planes(x)
    B, cin = x.shape[0], x.shape[1]
    lin = planes.shape[2]
    l_out = hh * wf
    cout = w_mat.shape[0]
    k_pad = w_mat.shape[1] - 9 * cin
    out = pl.pallas_call(
        functools.partial(_stem_kernel, cin=cin, wf=wf, l_out=l_out, k_pad=k_pad),
        out_shape=jax.ShapeDtypeStruct((B, cout, l_out), jnp.bfloat16),
        grid=(B,),
        in_specs=[pl.BlockSpec((1, 4 * cin, lin), lambda b: (b, 0, 0)),
                  pl.BlockSpec(w_mat.shape, lambda b: (0, 0)),
                  pl.BlockSpec(b_col.shape, lambda b: (0, 0))],
        out_specs=pl.BlockSpec((1, cout, l_out), lambda b: (b, 0, 0)),
        compiler_params=_cparams(("parallel",)),
    )(planes, w_mat, b_col)
    return out, (hh, wh, wf)


def srt_block(x_flat, dims, w1_mat, w2_mat):
    """One fused SRTConvBlock.  x_flat: (B, C, hh_prev*wf_prev) bf16 flat."""
    hh_p, wh_p, wf_p = dims
    x = _flat_to_image(x_flat, hh_p, wh_p, wf_p)
    B, C = x.shape[0], x.shape[1]
    planes, hh, wh, wf = _to_planes(x)
    lin = planes.shape[2]
    l_sp = hh * wf
    cmid, cout = w1_mat.shape[0], w2_mat.shape[0]
    mask = _col_mask(hh, wh, wf)
    # NOTE: for very large images, add a "parallel" spatial row-band grid axis
    # (with a 1-row halo in the planes) to bound VMEM on v7x and use both TCs.
    out = pl.pallas_call(
        functools.partial(_block_kernel, cin=C, cmid=cmid, wf=wf, l_sp=l_sp),
        out_shape=jax.ShapeDtypeStruct((B, cout, l_sp), jnp.bfloat16),
        grid=(B,),
        in_specs=[pl.BlockSpec((1, 4 * C, lin), lambda b: (b, 0, 0)),
                  pl.BlockSpec(w1_mat.shape, lambda b: (0, 0)),
                  pl.BlockSpec(w2_mat.shape, lambda b: (0, 0)),
                  pl.BlockSpec(mask.shape, lambda b: (0, 0))],
        out_specs=pl.BlockSpec((1, cout, l_sp), lambda b: (b, 0, 0)),
        compiler_params=_cparams(("parallel",)),
    )(planes, w1_mat, w2_mat, mask)
    return out, (hh, wh, wf)


def srt_block_pool_head(x_flat, dims, w1_mat, w2_mat, fc1_t, fc1_b, fc2_t, fc2_b):
    """Last SRTConvBlock fused with the spatial mean and the fc head."""
    hh_p, wh_p, wf_p = dims
    x = _flat_to_image(x_flat, hh_p, wh_p, wf_p)
    B, C = x.shape[0], x.shape[1]
    planes, hh, wh, wf = _to_planes(x)
    lin = planes.shape[2]
    l_sp = hh * wf
    cmid = w1_mat.shape[0]
    out_ch = fc2_t.shape[0]
    mask = _col_mask(hh, wh, wf)
    out = pl.pallas_call(
        functools.partial(_block_pool_head_kernel, cin=C, cmid=cmid, wf=wf,
                          l_sp=l_sp, inv_hw=1.0 / float(hh * wh)),
        out_shape=jax.ShapeDtypeStruct((B, out_ch, 1), jnp.float32),
        grid=(B,),
        in_specs=[pl.BlockSpec((1, 4 * C, lin), lambda b: (b, 0, 0)),
                  pl.BlockSpec(w1_mat.shape, lambda b: (0, 0)),
                  pl.BlockSpec(w2_mat.shape, lambda b: (0, 0)),
                  pl.BlockSpec(mask.shape, lambda b: (0, 0)),
                  pl.BlockSpec(fc1_t.shape, lambda b: (0, 0)),
                  pl.BlockSpec(fc1_b.shape, lambda b: (0, 0)),
                  pl.BlockSpec(fc2_t.shape, lambda b: (0, 0)),
                  pl.BlockSpec(fc2_b.shape, lambda b: (0, 0))],
        out_specs=pl.BlockSpec((1, out_ch, 1), lambda b: (b, 0, 0)),
        compiler_params=_cparams(("parallel",)),
    )(planes, w1_mat, w2_mat, mask, fc1_t, fc1_b, fc2_t, fc2_b)
    return out.reshape(B, out_ch)


def pool_head(x_flat, dims, fc1_t, fc1_b, fc2_t, fc2_b):
    """Spatial mean + fc head (only when the encoder has zero conv blocks)."""
    hh, wh, wf = dims
    B, C, l_sp = x_flat.shape
    out_ch = fc2_t.shape[0]
    mask = _col_mask(hh, wh, wf)
    out = pl.pallas_call(
        functools.partial(_pool_head_kernel, inv_hw=1.0 / float(hh * wh)),
        out_shape=jax.ShapeDtypeStruct((B, out_ch, 1), jnp.float32),
        grid=(B,),
        in_specs=[pl.BlockSpec((1, C, l_sp), lambda b: (b, 0, 0)),
                  pl.BlockSpec(mask.shape, lambda b: (0, 0)),
                  pl.BlockSpec(fc1_t.shape, lambda b: (0, 0)),
                  pl.BlockSpec(fc1_b.shape, lambda b: (0, 0)),
                  pl.BlockSpec(fc2_t.shape, lambda b: (0, 0)),
                  pl.BlockSpec(fc2_b.shape, lambda b: (0, 0))],
        out_specs=pl.BlockSpec((1, out_ch, 1), lambda b: (b, 0, 0)),
        compiler_params=_cparams(("parallel",)),
    )(x_flat, mask, fc1_t, fc1_b, fc2_t, fc2_b)
    return out.reshape(B, out_ch)


# --------------------------------------------------------------------------
# One-time parameter preparation (weight layout transforms hoisted out of jit)
# --------------------------------------------------------------------------
def _hwio_to_mat(w, k_pad_to=None):
    kh, kw, ci, co = w.shape
    m = jnp.transpose(w, (3, 0, 1, 2)).reshape(co, kh * kw * ci)
    if k_pad_to is not None and k_pad_to > m.shape[1]:
        m = jnp.pad(m, ((0, 0), (0, k_pad_to - m.shape[1])))
    return m.astype(jnp.bfloat16)


def prepare_params(params):
    n_classes = params["seg_w"].shape[2]
    cin = 1 + n_classes
    cin_p = -(-cin // 8) * 8                   # channel pad for aligned plane slices
    # Fused stem: block-diagonal weight so one kernel emits the [hf | seg] concat.
    w_stem = jnp.zeros((3, 3, cin_p, 16), jnp.float32)
    w_stem = w_stem.at[:, :, 0:1, 0:8].set(params["hf_w"])
    w_stem = w_stem.at[:, :, 1:cin, 8:16].set(params["seg_w"])
    k_stem_p = -(-(9 * cin_p) // 16) * 16      # bf16 pack: K multiple of 16
    return {
        "stem_w": _hwio_to_mat(w_stem, k_pad_to=k_stem_p),
        "stem_b": jnp.concatenate([params["hf_b"], params["seg_b"]])
                     .astype(jnp.float32).reshape(16, 1),
        "blocks": [(_hwio_to_mat(w1), _hwio_to_mat(w2))
                   for (w1, w2) in params["blocks"]],
        "fc1_t": params["fc1_w"].T.astype(jnp.float32),
        "fc1_b": params["fc1_b"].astype(jnp.float32).reshape(-1, 1),
        "fc2_t": params["fc2_w"].T.astype(jnp.float32),
        "fc2_b": params["fc2_b"].astype(jnp.float32).reshape(-1, 1),
    }


# --------------------------------------------------------------------------
# GlobalEncoder forward
# --------------------------------------------------------------------------
def global_encoder_forward(prep, proj_hf, proj_seg):
    x = jnp.concatenate([proj_hf, proj_seg], axis=1)
    cin = x.shape[1]
    cin_p = -(-cin // 8) * 8
    if cin_p > cin:
        x = jnp.pad(x, ((0, 0), (0, cin_p - cin), (0, 0), (0, 0)))

    out, dims = stem_conv(x, prep["stem_w"], prep["stem_b"])

    blocks = prep["blocks"]
    if not blocks:
        return pool_head(out, dims, prep["fc1_t"], prep["fc1_b"],
                         prep["fc2_t"], prep["fc2_b"])

    # SRTConvBlock: conv(s1)+ReLU, conv(s2)+ReLU; the module's outer LeakyReLU
    # after a ReLU is the identity on non-negative values, so ReLU is exact.
    for (w1_mat, w2_mat) in blocks[:-1]:
        out, dims = srt_block(out, dims, w1_mat, w2_mat)
    w1_mat, w2_mat = blocks[-1]
    return srt_block_pool_head(out, dims, w1_mat, w2_mat,
                               prep["fc1_t"], prep["fc1_b"],
                               prep["fc2_t"], prep["fc2_b"])


# --------------------------------------------------------------------------
# Deterministic parameter init (shapes match the PyTorch module, HWIO weights)
# --------------------------------------------------------------------------
def init_params(key, n_classes, n_blocks, out_channels):
    n_block_layers = max(n_blocks - 1, 0)
    keys = jax.random.split(key, 8 + 2 * n_block_layers)

    def w_init(k, shape, fan_in):
        return jax.random.normal(k, shape, jnp.float32) / jnp.sqrt(float(fan_in))

    params = {
        "hf_w": w_init(keys[0], (3, 3, 1, 8), 9 * 1),
        "hf_b": 0.1 * jax.random.normal(keys[1], (8,), jnp.float32),
        "seg_w": w_init(keys[2], (3, 3, n_classes, 8), 9 * n_classes),
        "seg_b": 0.1 * jax.random.normal(keys[3], (8,), jnp.float32),
    }
    blocks = []
    cur = 16
    ki = 8
    for _ in range(n_block_layers):
        w1 = w_init(keys[ki], (3, 3, cur, cur), 9 * cur)
        w2 = w_init(keys[ki + 1], (3, 3, cur, 2 * cur), 9 * cur)
        blocks.append((w1, w2))
        cur *= 2
        ki += 2
    params["blocks"] = blocks
    params["fc1_w"] = w_init(keys[4], (cur, 16), cur)
    params["fc1_b"] = 0.1 * jax.random.normal(keys[5], (16,), jnp.float32)
    params["fc2_w"] = w_init(keys[6], (16, out_channels), 16)
    params["fc2_b"] = 0.1 * jax.random.normal(keys[7], (out_channels,), jnp.float32)
    return params


# --------------------------------------------------------------------------
# Pure-JAX f32 reference for a correctness check
# --------------------------------------------------------------------------
def reference_forward(params, proj_hf, proj_seg):
    def conv(x, w, b, stride, act):
        y = lax.conv_general_dilated(
            x, w, (stride, stride), ((1, 1), (1, 1)),
            dimension_numbers=("NCHW", "HWIO", "NCHW"))
        if b is not None:
            y = y + b.reshape(1, -1, 1, 1)
        if act == "leaky":
            return jnp.where(y > 0, y, LEAKY_SLOPE * y)
        return jnp.maximum(y, 0.0)

    hf = conv(proj_hf, params["hf_w"], params["hf_b"], 2, "leaky")
    seg = conv(proj_seg, params["seg_w"], params["seg_b"], 2, "leaky")
    out = jnp.concatenate([hf, seg], axis=1)
    for (w1, w2) in params["blocks"]:
        out = conv(out, w1, None, 1, "relu")
        out = conv(out, w2, None, 2, "relu")
    B, C = out.shape[0], out.shape[1]
    pooled = out.reshape(B, C, -1).mean(axis=2)
    h = pooled @ params["fc1_w"] + params["fc1_b"]
    h = jnp.where(h > 0, h, LEAKY_SLOPE * h)
    return jnp.tanh(h @ params["fc2_w"] + params["fc2_b"])


# --------------------------------------------------------------------------
if __name__ == "__main__":
    n_classes, n_blocks, out_channels = 4, 3, 32
    B, H, W = 2, 16, 16

    key = jax.random.PRNGKey(0)
    k_params, k_hf, k_seg = jax.random.split(key, 3)
    params = init_params(k_params, n_classes, n_blocks, out_channels)
    prep = prepare_params(params)          # one-time weight layout transforms
    proj_hf = jax.random.normal(k_hf, (B, 1, H, W), jnp.float32)
    proj_seg = jax.random.normal(k_seg, (B, n_classes, H, W), jnp.float32)

    fwd = jax.jit(global_encoder_forward)
    cond = jax.block_until_ready(fwd(prep, proj_hf, proj_seg))
    assert cond.shape == (B, out_channels), cond.shape

    ref = reference_forward(params, proj_hf, proj_seg)
    max_err = float(jnp.max(jnp.abs(cond - ref)))
    # bf16 MXU operands (f32 accumulation, f32 head) bound the error.
    assert max_err < 3e-2, f"mismatch vs reference: {max_err}"

    print("KERNEL_OK")
</pallas_src>

<mosaic_0001>
module attributes {stable_mosaic.version = 11 : i64} {
  func.func @_stem_kernel(%arg0: i32, %arg1: memref<1x32x90xbf16, #tpu.memory_space<vmem>>, %arg2: memref<16x80xbf16, #tpu.memory_space<vmem>>, %arg3: memref<16x1xf32, #tpu.memory_space<vmem>>, %arg4: memref<1x16x72xbf16, #tpu.memory_space<vmem>>) attributes {dimension_semantics = [#tpu.dimension_semantics<parallel>], iteration_bounds = array<i64: 2>, scalar_prefetch = 0 : i64, scratch_operands = 0 : i64, tpu.core_type = #tpu.core_type<tc>, window_params = [{transform_indices = @transform_0, window_bounds = array<i64: 1, 32, 90>}, {pipeline_mode = #tpu.pipeline_mode<synchronous>, transform_indices = @transform_1, window_bounds = array<i64: 16, 80>}, {pipeline_mode = #tpu.pipeline_mode<synchronous>, transform_indices = @transform_2, window_bounds = array<i64: 16, 1>}, {transform_indices = @transform_3, window_bounds = array<i64: 1, 16, 72>}]} {
    %c0 = arith.constant 0 : index
    %c0_0 = arith.constant 0 : index
    %c0_1 = arith.constant 0 : index
    %0 = vector.load %arg1[%c0, %c0_0, %c0_1] : memref<1x32x90xbf16, #tpu.memory_space<vmem>>, vector<1x8x90xbf16>
    %1 = vector.shape_cast %0 : vector<1x8x90xbf16> to vector<8x90xbf16>
    %c0_2 = arith.constant 0 : index
    %c8 = arith.constant 8 : index
    %c0_3 = arith.constant 0 : index
    %2 = vector.load %arg1[%c0_2, %c8, %c0_3] : memref<1x32x90xbf16, #tpu.memory_space<vmem>>, vector<1x8x90xbf16>
    %3 = vector.shape_cast %2 : vector<1x8x90xbf16> to vector<8x90xbf16>
    %c0_4 = arith.constant 0 : index
    %c16 = arith.constant 16 : index
    %c0_5 = arith.constant 0 : index
    %4 = vector.load %arg1[%c0_4, %c16, %c0_5] : memref<1x32x90xbf16, #tpu.memory_space<vmem>>, vector<1x8x90xbf16>
    %5 = vector.shape_cast %4 : vector<1x8x90xbf16> to vector<8x90xbf16>
    %c0_6 = arith.constant 0 : index
    %c24 = arith.constant 24 : index
    %c0_7 = arith.constant 0 : index
    %6 = vector.load %arg1[%c0_6, %c24, %c0_7] : memref<1x32x90xbf16, #tpu.memory_space<vmem>>, vector<1x8x90xbf16>
    %7 = vector.shape_cast %6 : vector<1x8x90xbf16> to vector<8x90xbf16>
    %8 = vector.extract_strided_slice %1 {offsets = [0, 0], sizes = [8, 72], strides = [1, 1]} : vector<8x90xbf16> to vector<8x72xbf16>
    %9 = vector.extract_strided_slice %3 {offsets = [0, 0], sizes = [8, 72], strides = [1, 1]} : vector<8x90xbf16> to vector<8x72xbf16>
    %10 = vector.extract_strided_slice %1 {offsets = [0, 1], sizes = [8, 72], strides = [1, 1]} : vector<8x90xbf16> to vector<8x72xbf16>
    %11 = vector.extract_strided_slice %5 {offsets = [0, 0], sizes = [8, 72], strides = [1, 1]} : vector<8x90xbf16> to vector<8x72xbf16>
    %12 = vector.extract_strided_slice %7 {offsets = [0, 0], sizes = [8, 72], strides = [1, 1]} : vector<8x90xbf16> to vector<8x72xbf16>
    %13 = vector.extract_strided_slice %5 {offsets = [0, 1], sizes = [8, 72], strides = [1, 1]} : vector<8x90xbf16> to vector<8x72xbf16>
    %14 = vector.extract_strided_slice %1 {offsets = [0, 9], sizes = [8, 72], strides = [1, 1]} : vector<8x90xbf16> to vector<8x72xbf16>
    %15 = vector.extract_strided_slice %3 {offsets = [0, 9], sizes = [8, 72], strides = [1, 1]} : vector<8x90xbf16> to vector<8x72xbf16>
    %16 = vector.extract_strided_slice %1 {offsets = [0, 10], sizes = [8, 72], strides = [1, 1]} : vector<8x90xbf16> to vector<8x72xbf16>
    %cst = arith.constant 0.000000e+00 : bf16
    %17 = vector.broadcast %cst : bf16 to vector<8x72xbf16>
    %18 = tpu.concatenate %8, %9, %10, %11, %12, %13, %14, %15, %16, %17 in 0 : vector<8x72xbf16>, vector<8x72xbf16>, vector<8x72xbf16>, vector<8x72xbf16>, vector<8x72xbf16>, vector<8x72xbf16>, vector<8x72xbf16>, vector<8x72xbf16>, vector<8x72xbf16>, vector<8x72xbf16> -> vector<80x72xbf16>
    %c0_8 = arith.constant 0 : index
    %c0_9 = arith.constant 0 : index
    %19 = vector.load %arg2[%c0_8, %c0_9] : memref<16x80xbf16, #tpu.memory_space<vmem>>, vector<16x80xbf16>
    %cst_10 = arith.constant dense<0.000000e+00> : vector<16x72xf32>
    %20 = tpu.matmul %19, %18, %cst_10 {dimension_numbers = #tpu.dot_dimension_numbers<[1], [0], [0], [1], [0, 0, 1, 1], [], []>} : vector<16x80xbf16>, vector<80x72xbf16>, vector<16x72xf32> -> vector<16x72xf32>
    %c0_11 = arith.constant 0 : index
    %c0_12 = arith.constant 0 : index
    %21 = vector.load %arg3[%c0_11, %c0_12] : memref<16x1xf32, #tpu.memory_space<vmem>>, vector<16x1xf32>
    %22 = vector.broadcast %21 : vector<16x1xf32> to vector<16x72xf32>
    %23 = arith.addf %20, %22 : vector<16x72xf32>
    %cst_13 = arith.constant 0.000000e+00 : f32
    %24 = vector.broadcast %cst_13 : f32 to vector<16x72xf32>
    %25 = arith.cmpf ogt, %23, %24 : vector<16x72xf32>
    %cst_14 = arith.constant 2.000000e-01 : f32
    %26 = vector.broadcast %cst_14 : f32 to vector<16x72xf32>
    %27 = arith.mulf %26, %23 : vector<16x72xf32>
    %28 = arith.select %25, %23, %27 : vector<16x72xi1>, vector<16x72xf32>
    %29 = arith.truncf %28 : vector<16x72xf32> to vector<16x72xbf16>
    %c0_15 = arith.constant 0 : index
    %c0_16 = arith.constant 0 : index
    %c0_17 = arith.constant 0 : index
    %30 = vector.load %arg4[%c0_15, %c0_16, %c0_17] : memref<1x16x72xbf16, #tpu.memory_space<vmem>>, vector<1x16x72xbf16>
    %31 = vector.shape_cast %30 : vector<1x16x72xbf16> to vector<16x72xbf16>
    %32 = vector.shape_cast %29 : vector<16x72xbf16> to vector<1x16x72xbf16>
    tpu.vector_store %arg4[%c0_15, %c0_16, %c0_17], %32 {strides = array<i32>} : memref<1x16x72xbf16, #tpu.memory_space<vmem>>, vector<1x16x72xbf16>,
    return
  }
  func.func @transform_0(%arg0: i32) -> (i32, i32, i32) {
    %c0_i32 = arith.constant 0 : i32
    %c0_i32_0 = arith.constant 0 : i32
    %c0_i32_1 = arith.constant 0 : i32
    return %arg0, %c0_i32, %c0_i32_0 : i32, i32, i32
  }
  func.func @transform_1(%arg0: i32) -> (i32, i32) {
    %c0_i32 = arith.constant 0 : i32
    %c0_i32_0 = arith.constant 0 : i32
    %c0_i32_1 = arith.constant 0 : i32
    return %c0_i32, %c0_i32_0 : i32, i32
  }
  func.func @transform_2(%arg0: i32) -> (i32, i32) {
    %c0_i32 = arith.constant 0 : i32
    %c0_i32_0 = arith.constant 0 : i32
    %c0_i32_1 = arith.constant 0 : i32
    return %c0_i32, %c0_i32_0 : i32, i32
  }
  func.func @transform_3(%arg0: i32) -> (i32, i32, i32) {
    %c0_i32 = arith.constant 0 : i32
    %c0_i32_0 = arith.constant 0 : i32
    %c0_i32_1 = arith.constant 0 : i32
    return %arg0, %c0_i32, %c0_i32_0 : i32, i32, i32
  }
}

module attributes {stable_mosaic.version = 11 : i64} {
  func.func @_block_kernel(%arg0: i32, %arg1: memref<1x64x30xbf16, #tpu.memory_space<vmem>>, %arg2: memref<16x144xbf16, #tpu.memory_space<vmem>>, %arg3: memref<32x144xbf16, #tpu.memory_space<vmem>>, %arg4: memref<1x20xf32, #tpu.memory_space<vmem>>, %arg5: memref<1x32x20xbf16, #tpu.memory_space<vmem>>) attributes {dimension_semantics = [#tpu.dimension_semantics<parallel>], iteration_bounds = array<i64: 2>, scalar_prefetch = 0 : i64, scratch_operands = 0 : i64, tpu.core_type = #tpu.core_type<tc>, window_params = [{transform_indices = @transform_0, window_bounds = array<i64: 1, 64, 30>}, {pipeline_mode = #tpu.pipeline_mode<synchronous>, transform_indices = @transform_1, window_bounds = array<i64: 16, 144>}, {pipeline_mode = #tpu.pipeline_mode<synchronous>, transform_indices = @transform_2, window_bounds = array<i64: 32, 144>}, {pipeline_mode = #tpu.pipeline_mode<synchronous>, transform_indices = @transform_3, window_bounds = array<i64: 1, 20>}, {transform_indices = @transform_4, window_bounds = array<i64: 1, 32, 20>}]} {
    %c0 = arith.constant 0 : index
    %c0_0 = arith.constant 0 : index
    %c0_1 = arith.constant 0 : index
    %0 = vector.load %arg1[%c0, %c0_0, %c0_1] : memref<1x64x30xbf16, #tpu.memory_space<vmem>>, vector<1x16x30xbf16>
    %1 = vector.shape_cast %0 : vector<1x16x30xbf16> to vector<16x30xbf16>
    %c0_2 = arith.constant 0 : index
    %c16 = arith.constant 16 : index
    %c0_3 = arith.constant 0 : index
    %2 = vector.load %arg1[%c0_2, %c16, %c0_3] : memref<1x64x30xbf16, #tpu.memory_space<vmem>>, vector<1x16x30xbf16>
    %3 = vector.shape_cast %2 : vector<1x16x30xbf16> to vector<16x30xbf16>
    %c0_4 = arith.constant 0 : index
    %c32 = arith.constant 32 : index
    %c0_5 = arith.constant 0 : index
    %4 = vector.load %arg1[%c0_4, %c32, %c0_5] : memref<1x64x30xbf16, #tpu.memory_space<vmem>>, vector<1x16x30xbf16>
    %5 = vector.shape_cast %4 : vector<1x16x30xbf16> to vector<16x30xbf16>
    %c0_6 = arith.constant 0 : index
    %c48 = arith.constant 48 : index
    %c0_7 = arith.constant 0 : index
    %6 = vector.load %arg1[%c0_6, %c48, %c0_7] : memref<1x64x30xbf16, #tpu.memory_space<vmem>>, vector<1x16x30xbf16>
    %7 = vector.shape_cast %6 : vector<1x16x30xbf16> to vector<16x30xbf16>
    %c0_8 = arith.constant 0 : index
    %c0_9 = arith.constant 0 : index
    %8 = vector.load %arg4[%c0_8, %c0_9] : memref<1x20xf32, #tpu.memory_space<vmem>>, vector<1x20xf32>
    %cst = arith.constant 0.000000e+00 : bf16
    %9 = vector.broadcast %cst : bf16 to vector<16x6xbf16>
    %10 = vector.extract_strided_slice %1 {offsets = [0, 0], sizes = [16, 20], strides = [1, 1]} : vector<16x30xbf16> to vector<16x20xbf16>
    %11 = vector.extract_strided_slice %3 {offsets = [0, 0], sizes = [16, 20], strides = [1, 1]} : vector<16x30xbf16> to vector<16x20xbf16>
    %12 = vector.extract_strided_slice %1 {offsets = [0, 1], sizes = [16, 20], strides = [1, 1]} : vector<16x30xbf16> to vector<16x20xbf16>
    %13 = vector.extract_strided_slice %5 {offsets = [0, 0], sizes = [16, 20], strides = [1, 1]} : vector<16x30xbf16> to vector<16x20xbf16>
    %14 = vector.extract_strided_slice %7 {offsets = [0, 0], sizes = [16, 20], strides = [1, 1]} : vector<16x30xbf16> to vector<16x20xbf16>
    %15 = vector.extract_strided_slice %5 {offsets = [0, 1], sizes = [16, 20], strides = [1, 1]} : vector<16x30xbf16> to vector<16x20xbf16>
    %16 = vector.extract_strided_slice %1 {offsets = [0, 5], sizes = [16, 20], strides = [1, 1]} : vector<16x30xbf16> to vector<16x20xbf16>
    %17 = vector.extract_strided_slice %3 {offsets = [0, 5], sizes = [16, 20], strides = [1, 1]} : vector<16x30xbf16> to vector<16x20xbf16>
    %18 = vector.extract_strided_slice %1 {offsets = [0, 6], sizes = [16, 20], strides = [1, 1]} : vector<16x30xbf16> to vector<16x20xbf16>
    %19 = tpu.concatenate %10, %11, %12, %13, %14, %15, %16, %17, %18 in 0 : vector<16x20xbf16>, vector<16x20xbf16>, vector<16x20xbf16>, vector<16x20xbf16>, vector<16x20xbf16>, vector<16x20xbf16>, vector<16x20xbf16>, vector<16x20xbf16>, vector<16x20xbf16> -> vector<144x20xbf16>
    %c0_10 = arith.constant 0 : index
    %c0_11 = arith.constant 0 : index
    %20 = vector.load %arg2[%c0_10, %c0_11] : memref<16x144xbf16, #tpu.memory_space<vmem>>, vector<16x144xbf16>
    %cst_12 = arith.constant dense<0.000000e+00> : vector<16x20xf32>
    %21 = tpu.matmul %20, %19, %cst_12 {dimension_numbers = #tpu.dot_dimension_numbers<[1], [0], [0], [1], [0, 0, 1, 1], [], []>} : vector<16x144xbf16>, vector<144x20xbf16>, vector<16x20xf32> -> vector<16x20xf32>
    %cst_13 = arith.constant 0.000000e+00 : f32
    %22 = vector.broadcast %cst_13 : f32 to vector<16x20xf32>
    %23 = arith.maximumf %21, %22 : vector<16x20xf32>
    %24 = vector.broadcast %8 : vector<1x20xf32> to vector<16x20xf32>
    %25 = arith.mulf %23, %24 : vector<16x20xf32>
    %26 = arith.truncf %25 : vector<16x20xf32> to vector<16x20xbf16>
    %27 = tpu.concatenate %9, %26 in 1 : vector<16x6xbf16>, vector<16x20xbf16> -> vector<16x26xbf16>
    %28 = vector.extract_strided_slice %3 {offsets = [0, 1], sizes = [16, 20], strides = [1, 1]} : vector<16x30xbf16> to vector<16x20xbf16>
    %29 = vector.extract_strided_slice %7 {offsets = [0, 1], sizes = [16, 20], strides = [1, 1]} : vector<16x30xbf16> to vector<16x20xbf16>
    %30 = vector.extract_strided_slice %3 {offsets = [0, 6], sizes = [16, 20], strides = [1, 1]} : vector<16x30xbf16> to vector<16x20xbf16>
    %31 = tpu.concatenate %11, %12, %28, %14, %15, %29, %17, %18, %30 in 0 : vector<16x20xbf16>, vector<16x20xbf16>, vector<16x20xbf16>, vector<16x20xbf16>, vector<16x20xbf16>, vector<16x20xbf16>, vector<16x20xbf16>, vector<16x20xbf16>, vector<16x20xbf16> -> vector<144x20xbf16>
    %c0_14 = arith.constant 0 : index
    %c0_15 = arith.constant 0 : index
    %32 = vector.load %arg2[%c0_14, %c0_15] : memref<16x144xbf16, #tpu.memory_space<vmem>>, vector<16x144xbf16>
    %cst_16 = arith.constant dense<0.000000e+00> : vector<16x20xf32>
    %33 = tpu.matmul %32, %31, %cst_16 {dimension_numbers = #tpu.dot_dimension_numbers<[1], [0], [0], [1], [0, 0, 1, 1], [], []>} : vector<16x144xbf16>, vector<144x20xbf16>, vector<16x20xf32> -> vector<16x20xf32>
    %cst_17 = arith.constant 0.000000e+00 : f32
    %34 = vector.broadcast %cst_17 : f32 to vector<16x20xf32>
    %35 = arith.maximumf %33, %34 : vector<16x20xf32>
    %36 = vector.broadcast %8 : vector<1x20xf32> to vector<16x20xf32>
    %37 = arith.mulf %35, %36 : vector<16x20xf32>
    %38 = arith.truncf %37 : vector<16x20xf32> to vector<16x20xbf16>
    %39 = tpu.concatenate %9, %38 in 1 : vector<16x6xbf16>, vector<16x20xbf16> -> vector<16x26xbf16>
    %40 = vector.extract_strided_slice %5 {offsets = [0, 5], sizes = [16, 20], strides = [1, 1]} : vector<16x30xbf16> to vector<16x20xbf16>
    %41 = vector.extract_strided_slice %7 {offsets = [0, 5], sizes = [16, 20], strides = [1, 1]} : vector<16x30xbf16> to vector<16x20xbf16>
    %42 = vector.extract_strided_slice %5 {offsets = [0, 6], sizes = [16, 20], strides = [1, 1]} : vector<16x30xbf16> to vector<16x20xbf16>
    %43 = tpu.concatenate %13, %14, %15, %16, %17, %18, %40, %41, %42 in 0 : vector<16x20xbf16>, vector<16x20xbf16>, vector<16x20xbf16>, vector<16x20xbf16>, vector<16x20xbf16>, vector<16x20xbf16>, vector<16x20xbf16>, vector<16x20xbf16>, vector<16x20xbf16> -> vector<144x20xbf16>
    %c0_18 = arith.constant 0 : index
    %c0_19 = arith.constant 0 : index
    %44 = vector.load %arg2[%c0_18, %c0_19] : memref<16x144xbf16, #tpu.memory_space<vmem>>, vector<16x144xbf16>
    %cst_20 = arith.constant dense<0.000000e+00> : vector<16x20xf32>
    %45 = tpu.matmul %44, %43, %cst_20 {dimension_numbers = #tpu.dot_dimension_numbers<[1], [0], [0], [1], [0, 0, 1, 1], [], []>} : vector<16x144xbf16>, vector<144x20xbf16>, vector<16x20xf32> -> vector<16x20xf32>
    %cst_21 = arith.constant 0.000000e+00 : f32
    %46 = vector.broadcast %cst_21 : f32 to vector<16x20xf32>
    %47 = arith.maximumf %45, %46 : vector<16x20xf32>
    %48 = vector.broadcast %8 : vector<1x20xf32> to vector<16x20xf32>
    %49 = arith.mulf %47, %48 : vector<16x20xf32>
    %50 = arith.truncf %49 : vector<16x20xf32> to vector<16x20xbf16>
    %51 = tpu.concatenate %9, %50 in 1 : vector<16x6xbf16>, vector<16x20xbf16> -> vector<16x26xbf16>
    %52 = vector.extract_strided_slice %7 {offsets = [0, 6], sizes = [16, 20], strides = [1, 1]} : vector<16x30xbf16> to vector<16x20xbf16>
    %53 = tpu.concatenate %14, %15, %29, %17, %18, %30, %41, %42, %52 in 0 : vector<16x20xbf16>, vector<16x20xbf16>, vector<16x20xbf16>, vector<16x20xbf16>, vector<16x20xbf16>, vector<16x20xbf16>, vector<16x20xbf16>, vector<16x20xbf16>, vector<16x20xbf16> -> vector<144x20xbf16>
    %c0_22 = arith.constant 0 : index
    %c0_23 = arith.constant 0 : index
    %54 = vector.load %arg2[%c0_22, %c0_23] : memref<16x144xbf16, #tpu.memory_space<vmem>>, vector<16x144xbf16>
    %cst_24 = arith.constant dense<0.000000e+00> : vector<16x20xf32>
    %55 = tpu.matmul %54, %53, %cst_24 {dimension_numbers = #tpu.dot_dimension_numbers<[1], [0], [0], [1], [0, 0, 1, 1], [], []>} : vector<16x144xbf16>, vector<144x20xbf16>, vector<16x20xf32> -> vector<16x20xf32>
    %cst_25 = arith.constant 0.000000e+00 : f32
    %56 = vector.broadcast %cst_25 : f32 to vector<16x20xf32>
    %57 = arith.maximumf %55, %56 : vector<16x20xf32>
    %58 = vector.broadcast %8 : vector<1x20xf32> to vector<16x20xf32>
    %59 = arith.mulf %57, %58 : vector<16x20xf32>
    %60 = arith.truncf %59 : vector<16x20xf32> to vector<16x20xbf16>
    %61 = tpu.concatenate %9, %60 in 1 : vector<16x6xbf16>, vector<16x20xbf16> -> vector<16x26xbf16>
    %62 = vector.extract_strided_slice %61 {offsets = [0, 0], sizes = [16, 20], strides = [1, 1]} : vector<16x26xbf16> to vector<16x20xbf16>
    %63 = vector.extract_strided_slice %51 {offsets = [0, 1], sizes = [16, 20], strides = [1, 1]} : vector<16x26xbf16> to vector<16x20xbf16>
    %64 = vector.extract_strided_slice %61 {offsets = [0, 1], sizes = [16, 20], strides = [1, 1]} : vector<16x26xbf16> to vector<16x20xbf16>
    %65 = vector.extract_strided_slice %39 {offsets = [0, 5], sizes = [16, 20], strides = [1, 1]} : vector<16x26xbf16> to vector<16x20xbf16>
    %66 = vector.extract_strided_slice %27 {offsets = [0, 6], sizes = [16, 20], strides = [1, 1]} : vector<16x26xbf16> to vector<16x20xbf16>
    %67 = vector.extract_strided_slice %39 {offsets = [0, 6], sizes = [16, 20], strides = [1, 1]} : vector<16x26xbf16> to vector<16x20xbf16>
    %68 = vector.extract_strided_slice %61 {offsets = [0, 5], sizes = [16, 20], strides = [1, 1]} : vector<16x26xbf16> to vector<16x20xbf16>
    %69 = vector.extract_strided_slice %51 {offsets = [0, 6], sizes = [16, 20], strides = [1, 1]} : vector<16x26xbf16> to vector<16x20xbf16>
    %70 = vector.extract_strided_slice %61 {offsets = [0, 6], sizes = [16, 20], strides = [1, 1]} : vector<16x26xbf16> to vector<16x20xbf16>
    %71 = tpu.concatenate %62, %63, %64, %65, %66, %67, %68, %69, %70 in 0 : vector<16x20xbf16>, vector<16x20xbf16>, vector<16x20xbf16>, vector<16x20xbf16>, vector<16x20xbf16>, vector<16x20xbf16>, vector<16x20xbf16>, vector<16x20xbf16>, vector<16x20xbf16> -> vector<144x20xbf16>
    %c0_26 = arith.constant 0 : index
    %c0_27 = arith.constant 0 : index
    %72 = vector.load %arg3[%c0_26, %c0_27] : memref<32x144xbf16, #tpu.memory_space<vmem>>, vector<32x144xbf16>
    %cst_28 = arith.constant dense<0.000000e+00> : vector<32x20xf32>
    %73 = tpu.matmul %72, %71, %cst_28 {dimension_numbers = #tpu.dot_dimension_numbers<[1], [0], [0], [1], [0, 0, 1, 1], [], []>} : vector<32x144xbf16>, vector<144x20xbf16>, vector<32x20xf32> -> vector<32x20xf32>
    %cst_29 = arith.constant 0.000000e+00 : f32
    %74 = vector.broadcast %cst_29 : f32 to vector<32x20xf32>
    %75 = arith.maximumf %73, %74 : vector<32x20xf32>
    %76 = arith.truncf %75 : vector<32x20xf32> to vector<32x20xbf16>
    %c0_30 = arith.constant 0 : index
    %c0_31 = arith.constant 0 : index
    %c0_32 = arith.constant 0 : index
    %77 = vector.load %arg5[%c0_30, %c0_31, %c0_32] : memref<1x32x20xbf16, #tpu.memory_space<vmem>>, vector<1x32x20xbf16>
    %78 = vector.shape_cast %77 : vector<1x32x20xbf16> to vector<32x20xbf16>
    %79 = vector.shape_cast %76 : vector<32x20xbf16> to vector<1x32x20xbf16>
    tpu.vector_store %arg5[%c0_30, %c0_31, %c0_32], %79 {strides = array<i32>} : memref<1x32x20xbf16, #tpu.memory_space<vmem>>, vector<1x32x20xbf16>,
    return
  }
  func.func @transform_0(%arg0: i32) -> (i32, i32, i32) {
    %c0_i32 = arith.constant 0 : i32
    %c0_i32_0 = arith.constant 0 : i32
    %c0_i32_1 = arith.constant 0 : i32
    return %arg0, %c0_i32, %c0_i32_0 : i32, i32, i32
  }
  func.func @transform_1(%arg0: i32) -> (i32, i32) {
    %c0_i32 = arith.constant 0 : i32
    %c0_i32_0 = arith.constant 0 : i32
    %c0_i32_1 = arith.constant 0 : i32
    return %c0_i32, %c0_i32_0 : i32, i32
  }
  func.func @transform_2(%arg0: i32) -> (i32, i32) {
    %c0_i32 = arith.constant 0 : i32
    %c0_i32_0 = arith.constant 0 : i32
    %c0_i32_1 = arith.constant 0 : i32
    return %c0_i32, %c0_i32_0 : i32, i32
  }
  func.func @transform_3(%arg0: i32) -> (i32, i32) {
    %c0_i32 = arith.constant 0 : i32
    %c0_i32_0 = arith.constant 0 : i32
    %c0_i32_1 = arith.constant 0 : i32
    return %c0_i32, %c0_i32_0 : i32, i32
  }
  func.func @transform_4(%arg0: i32) -> (i32, i32, i32) {
    %c0_i32 = arith.constant 0 : i32
    %c0_i32_0 = arith.constant 0 : i32
    %c0_i32_1 = arith.constant 0 : i32
    return %arg0, %c0_i32, %c0_i32_0 : i32, i32, i32
  }
}

module attributes {stable_mosaic.version = 11 : i64} {
  func.func @_block_pool_head_kernel(%arg0: i32, %arg1: memref<1x128x12xbf16, #tpu.memory_space<vmem>>, %arg2: memref<32x288xbf16, #tpu.memory_space<vmem>>, %arg3: memref<64x288xbf16, #tpu.memory_space<vmem>>, %arg4: memref<1x6xf32, #tpu.memory_space<vmem>>, %arg5: memref<16x64xf32, #tpu.memory_space<vmem>>, %arg6: memref<16x1xf32, #tpu.memory_space<vmem>>, %arg7: memref<32x16xf32, #tpu.memory_space<vmem>>, %arg8: memref<32x1xf32, #tpu.memory_space<vmem>>, %arg9: memref<1x32x1xf32, #tpu.memory_space<vmem>>) attributes {dimension_semantics = [#tpu.dimension_semantics<parallel>], iteration_bounds = array<i64: 2>, scalar_prefetch = 0 : i64, scratch_operands = 0 : i64, tpu.core_type = #tpu.core_type<tc>, window_params = [{transform_indices = @transform_0, window_bounds = array<i64: 1, 128, 12>}, {pipeline_mode = #tpu.pipeline_mode<synchronous>, transform_indices = @transform_1, window_bounds = array<i64: 32, 288>}, {pipeline_mode = #tpu.pipeline_mode<synchronous>, transform_indices = @transform_2, window_bounds = array<i64: 64, 288>}, {pipeline_mode = #tpu.pipeline_mode<synchronous>, transform_indices = @transform_3, window_bounds = array<i64: 1, 6>}, {pipeline_mode = #tpu.pipeline_mode<synchronous>, transform_indices = @transform_4, window_bounds = array<i64: 16, 64>}, {pipeline_mode = #tpu.pipeline_mode<synchronous>, transform_indices = @transform_5, window_bounds = array<i64: 16, 1>}, {pipeline_mode = #tpu.pipeline_mode<synchronous>, transform_indices = @transform_6, window_bounds = array<i64: 32, 16>}, {pipeline_mode = #tpu.pipeline_mode<synchronous>, transform_indices = @transform_7, window_bounds = array<i64: 32, 1>}, {transform_indices = @transform_8, window_bounds = array<i64: 1, 32, 1>}]} {
    %c0 = arith.constant 0 : index
    %c0_0 = arith.constant 0 : index
    %c0_1 = arith.constant 0 : index
    %0 = vector.load %arg1[%c0, %c0_0, %c0_1] : memref<1x128x12xbf16, #tpu.memory_space<vmem>>, vector<1x32x12xbf16>
    %1 = vector.shape_cast %0 : vector<1x32x12xbf16> to vector<32x12xbf16>
    %c0_2 = arith.constant 0 : index
    %c32 = arith.constant 32 : index
    %c0_3 = arith.constant 0 : index
    %2 = vector.load %arg1[%c0_2, %c32, %c0_3] : memref<1x128x12xbf16, #tpu.memory_space<vmem>>, vector<1x32x12xbf16>
    %3 = vector.shape_cast %2 : vector<1x32x12xbf16> to vector<32x12xbf16>
    %c0_4 = arith.constant 0 : index
    %c64 = arith.constant 64 : index
    %c0_5 = arith.constant 0 : index
    %4 = vector.load %arg1[%c0_4, %c64, %c0_5] : memref<1x128x12xbf16, #tpu.memory_space<vmem>>, vector<1x32x12xbf16>
    %5 = vector.shape_cast %4 : vector<1x32x12xbf16> to vector<32x12xbf16>
    %c0_6 = arith.constant 0 : index
    %c96 = arith.constant 96 : index
    %c0_7 = arith.constant 0 : index
    %6 = vector.load %arg1[%c0_6, %c96, %c0_7] : memref<1x128x12xbf16, #tpu.memory_space<vmem>>, vector<1x32x12xbf16>
    %7 = vector.shape_cast %6 : vector<1x32x12xbf16> to vector<32x12xbf16>
    %c0_8 = arith.constant 0 : index
    %c0_9 = arith.constant 0 : index
    %8 = vector.load %arg4[%c0_8, %c0_9] : memref<1x6xf32, #tpu.memory_space<vmem>>, vector<1x6xf32>
    %cst = arith.constant 0.000000e+00 : bf16
    %9 = vector.broadcast %cst : bf16 to vector<32x4xbf16>
    %10 = vector.extract_strided_slice %1 {offsets = [0, 0], sizes = [32, 6], strides = [1, 1]} : vector<32x12xbf16> to vector<32x6xbf16>
    %11 = vector.extract_strided_slice %3 {offsets = [0, 0], sizes = [32, 6], strides = [1, 1]} : vector<32x12xbf16> to vector<32x6xbf16>
    %12 = vector.extract_strided_slice %1 {offsets = [0, 1], sizes = [32, 6], strides = [1, 1]} : vector<32x12xbf16> to vector<32x6xbf16>
    %13 = vector.extract_strided_slice %5 {offsets = [0, 0], sizes = [32, 6], strides = [1, 1]} : vector<32x12xbf16> to vector<32x6xbf16>
    %14 = vector.extract_strided_slice %7 {offsets = [0, 0], sizes = [32, 6], strides = [1, 1]} : vector<32x12xbf16> to vector<32x6xbf16>
    %15 = vector.extract_strided_slice %5 {offsets = [0, 1], sizes = [32, 6], strides = [1, 1]} : vector<32x12xbf16> to vector<32x6xbf16>
    %16 = vector.extract_strided_slice %1 {offsets = [0, 3], sizes = [32, 6], strides = [1, 1]} : vector<32x12xbf16> to vector<32x6xbf16>
    %17 = vector.extract_strided_slice %3 {offsets = [0, 3], sizes = [32, 6], strides = [1, 1]} : vector<32x12xbf16> to vector<32x6xbf16>
    %18 = vector.extract_strided_slice %1 {offsets = [0, 4], sizes = [32, 6], strides = [1, 1]} : vector<32x12xbf16> to vector<32x6xbf16>
    %19 = tpu.concatenate %10, %11, %12, %13, %14, %15, %16, %17, %18 in 0 : vector<32x6xbf16>, vector<32x6xbf16>, vector<32x6xbf16>, vector<32x6xbf16>, vector<32x6xbf16>, vector<32x6xbf16>, vector<32x6xbf16>, vector<32x6xbf16>, vector<32x6xbf16> -> vector<288x6xbf16>
    %c0_10 = arith.constant 0 : index
    %c0_11 = arith.constant 0 : index
    %20 = vector.load %arg2[%c0_10, %c0_11] : memref<32x288xbf16, #tpu.memory_space<vmem>>, vector<32x288xbf16>
    %cst_12 = arith.constant dense<0.000000e+00> : vector<32x6xf32>
    %21 = tpu.matmul %20, %19, %cst_12 {dimension_numbers = #tpu.dot_dimension_numbers<[1], [0], [0], [1], [0, 0, 1, 1], [], []>} : vector<32x288xbf16>, vector<288x6xbf16>, vector<32x6xf32> -> vector<32x6xf32>
    %cst_13 = arith.constant 0.000000e+00 : f32
    %22 = vector.broadcast %cst_13 : f32 to vector<32x6xf32>
    %23 = arith.maximumf %21, %22 : vector<32x6xf32>
    %24 = vector.broadcast %8 : vector<1x6xf32> to vector<32x6xf32>
    %25 = arith.mulf %23, %24 : vector<32x6xf32>
    %26 = arith.truncf %25 : vector<32x6xf32> to vector<32x6xbf16>
    %27 = tpu.concatenate %9, %26 in 1 : vector<32x4xbf16>, vector<32x6xbf16> -> vector<32x10xbf16>
    %28 = vector.extract_strided_slice %3 {offsets = [0, 1], sizes = [32, 6], strides = [1, 1]} : vector<32x12xbf16> to vector<32x6xbf16>
    %29 = vector.extract_strided_slice %7 {offsets = [0, 1], sizes = [32, 6], strides = [1, 1]} : vector<32x12xbf16> to vector<32x6xbf16>
    %30 = vector.extract_strided_slice %3 {offsets = [0, 4], sizes = [32, 6], strides = [1, 1]} : vector<32x12xbf16> to vector<32x6xbf16>
    %31 = tpu.concatenate %11, %12, %28, %14, %15, %29, %17, %18, %30 in 0 : vector<32x6xbf16>, vector<32x6xbf16>, vector<32x6xbf16>, vector<32x6xbf16>, vector<32x6xbf16>, vector<32x6xbf16>, vector<32x6xbf16>, vector<32x6xbf16>, vector<32x6xbf16> -> vector<288x6xbf16>
    %c0_14 = arith.constant 0 : index
    %c0_15 = arith.constant 0 : index
    %32 = vector.load %arg2[%c0_14, %c0_15] : memref<32x288xbf16, #tpu.memory_space<vmem>>, vector<32x288xbf16>
    %cst_16 = arith.constant dense<0.000000e+00> : vector<32x6xf32>
    %33 = tpu.matmul %32, %31, %cst_16 {dimension_numbers = #tpu.dot_dimension_numbers<[1], [0], [0], [1], [0, 0, 1, 1], [], []>} : vector<32x288xbf16>, vector<288x6xbf16>, vector<32x6xf32> -> vector<32x6xf32>
    %cst_17 = arith.constant 0.000000e+00 : f32
    %34 = vector.broadcast %cst_17 : f32 to vector<32x6xf32>
    %35 = arith.maximumf %33, %34 : vector<32x6xf32>
    %36 = vector.broadcast %8 : vector<1x6xf32> to vector<32x6xf32>
    %37 = arith.mulf %35, %36 : vector<32x6xf32>
    %38 = arith.truncf %37 : vector<32x6xf32> to vector<32x6xbf16>
    %39 = tpu.concatenate %9, %38 in 1 : vector<32x4xbf16>, vector<32x6xbf16> -> vector<32x10xbf16>
    %40 = vector.extract_strided_slice %5 {offsets = [0, 3], sizes = [32, 6], strides = [1, 1]} : vector<32x12xbf16> to vector<32x6xbf16>
    %41 = vector.extract_strided_slice %7 {offsets = [0, 3], sizes = [32, 6], strides = [1, 1]} : vector<32x12xbf16> to vector<32x6xbf16>
    %42 = vector.extract_strided_slice %5 {offsets = [0, 4], sizes = [32, 6], strides = [1, 1]} : vector<32x12xbf16> to vector<32x6xbf16>
    %43 = tpu.concatenate %13, %14, %15, %16, %17, %18, %40, %41, %42 in 0 : vector<32x6xbf16>, vector<32x6xbf16>, vector<32x6xbf16>, vector<32x6xbf16>, vector<32x6xbf16>, vector<32x6xbf16>, vector<32x6xbf16>, vector<32x6xbf16>, vector<32x6xbf16> -> vector<288x6xbf16>
    %c0_18 = arith.constant 0 : index
    %c0_19 = arith.constant 0 : index
    %44 = vector.load %arg2[%c0_18, %c0_19] : memref<32x288xbf16, #tpu.memory_space<vmem>>, vector<32x288xbf16>
    %cst_20 = arith.constant dense<0.000000e+00> : vector<32x6xf32>
    %45 = tpu.matmul %44, %43, %cst_20 {dimension_numbers = #tpu.dot_dimension_numbers<[1], [0], [0], [1], [0, 0, 1, 1], [], []>} : vector<32x288xbf16>, vector<288x6xbf16>, vector<32x6xf32> -> vector<32x6xf32>
    %cst_21 = arith.constant 0.000000e+00 : f32
    %46 = vector.broadcast %cst_21 : f32 to vector<32x6xf32>
    %47 = arith.maximumf %45, %46 : vector<32x6xf32>
    %48 = vector.broadcast %8 : vector<1x6xf32> to vector<32x6xf32>
    %49 = arith.mulf %47, %48 : vector<32x6xf32>
    %50 = arith.truncf %49 : vector<32x6xf32> to vector<32x6xbf16>
    %51 = tpu.concatenate %9, %50 in 1 : vector<32x4xbf16>, vector<32x6xbf16> -> vector<32x10xbf16>
    %52 = vector.extract_strided_slice %7 {offsets = [0, 4], sizes = [32, 6], strides = [1, 1]} : vector<32x12xbf16> to vector<32x6xbf16>
    %53 = tpu.concatenate %14, %15, %29, %17, %18, %30, %41, %42, %52 in 0 : vector<32x6xbf16>, vector<32x6xbf16>, vector<32x6xbf16>, vector<32x6xbf16>, vector<32x6xbf16>, vector<32x6xbf16>, vector<32x6xbf16>, vector<32x6xbf16>, vector<32x6xbf16> -> vector<288x6xbf16>
    %c0_22 = arith.constant 0 : index
    %c0_23 = arith.constant 0 : index
    %54 = vector.load %arg2[%c0_22, %c0_23] : memref<32x288xbf16, #tpu.memory_space<vmem>>, vector<32x288xbf16>
    %cst_24 = arith.constant dense<0.000000e+00> : vector<32x6xf32>
    %55 = tpu.matmul %54, %53, %cst_24 {dimension_numbers = #tpu.dot_dimension_numbers<[1], [0], [0], [1], [0, 0, 1, 1], [], []>} : vector<32x288xbf16>, vector<288x6xbf16>, vector<32x6xf32> -> vector<32x6xf32>
    %cst_25 = arith.constant 0.000000e+00 : f32
    %56 = vector.broadcast %cst_25 : f32 to vector<32x6xf32>
    %57 = arith.maximumf %55, %56 : vector<32x6xf32>
    %58 = vector.broadcast %8 : vector<1x6xf32> to vector<32x6xf32>
    %59 = arith.mulf %57, %58 : vector<32x6xf32>
    %60 = arith.truncf %59 : vector<32x6xf32> to vector<32x6xbf16>
    %61 = tpu.concatenate %9, %60 in 1 : vector<32x4xbf16>, vector<32x6xbf16> -> vector<32x10xbf16>
    %62 = vector.extract_strided_slice %61 {offsets = [0, 0], sizes = [32, 6], strides = [1, 1]} : vector<32x10xbf16> to vector<32x6xbf16>
    %63 = vector.extract_strided_slice %51 {offsets = [0, 1], sizes = [32, 6], strides = [1, 1]} : vector<32x10xbf16> to vector<32x6xbf16>
    %64 = vector.extract_strided_slice %61 {offsets = [0, 1], sizes = [32, 6], strides = [1, 1]} : vector<32x10xbf16> to vector<32x6xbf16>
    %65 = vector.extract_strided_slice %39 {offsets = [0, 3], sizes = [32, 6], strides = [1, 1]} : vector<32x10xbf16> to vector<32x6xbf16>
    %66 = vector.extract_strided_slice %27 {offsets = [0, 4], sizes = [32, 6], strides = [1, 1]} : vector<32x10xbf16> to vector<32x6xbf16>
    %67 = vector.extract_strided_slice %39 {offsets = [0, 4], sizes = [32, 6], strides = [1, 1]} : vector<32x10xbf16> to vector<32x6xbf16>
    %68 = vector.extract_strided_slice %61 {offsets = [0, 3], sizes = [32, 6], strides = [1, 1]} : vector<32x10xbf16> to vector<32x6xbf16>
    %69 = vector.extract_strided_slice %51 {offsets = [0, 4], sizes = [32, 6], strides = [1, 1]} : vector<32x10xbf16> to vector<32x6xbf16>
    %70 = vector.extract_strided_slice %61 {offsets = [0, 4], sizes = [32, 6], strides = [1, 1]} : vector<32x10xbf16> to vector<32x6xbf16>
    %71 = tpu.concatenate %62, %63, %64, %65, %66, %67, %68, %69, %70 in 0 : vector<32x6xbf16>, vector<32x6xbf16>, vector<32x6xbf16>, vector<32x6xbf16>, vector<32x6xbf16>, vector<32x6xbf16>, vector<32x6xbf16>, vector<32x6xbf16>, vector<32x6xbf16> -> vector<288x6xbf16>
    %c0_26 = arith.constant 0 : index
    %c0_27 = arith.constant 0 : index
    %72 = vector.load %arg3[%c0_26, %c0_27] : memref<64x288xbf16, #tpu.memory_space<vmem>>, vector<64x288xbf16>
    %cst_28 = arith.constant dense<0.000000e+00> : vector<64x6xf32>
    %73 = tpu.matmul %72, %71, %cst_28 {dimension_numbers = #tpu.dot_dimension_numbers<[1], [0], [0], [1], [0, 0, 1, 1], [], []>} : vector<64x288xbf16>, vector<288x6xbf16>, vector<64x6xf32> -> vector<64x6xf32>
    %cst_29 = arith.constant 0.000000e+00 : f32
    %74 = vector.broadcast %cst_29 : f32 to vector<64x6xf32>
    %75 = arith.maximumf %73, %74 : vector<64x6xf32>
    %c0_30 = arith.constant 0 : index
    %c0_31 = arith.constant 0 : index
    %76 = vector.load %arg4[%c0_30, %c0_31] : memref<1x6xf32, #tpu.memory_space<vmem>>, vector<1x6xf32>
    %77 = vector.broadcast %76 : vector<1x6xf32> to vector<64x6xf32>
    %78 = arith.mulf %75, %77 : vector<64x6xf32>
    %cst_32 = arith.constant dense<0.000000e+00> : vector<64xf32>
    %79 = vector.multi_reduction <add>, %78, %cst_32 [1] : vector<64x6xf32> to vector<64xf32>
    %80 = vector.shape_cast %79 : vector<64xf32> to vector<64x1xf32>
    %cst_33 = arith.constant 2.500000e-01 : f32
    %81 = vector.broadcast %cst_33 : f32 to vector<64x1xf32>
    %82 = arith.mulf %80, %81 : vector<64x1xf32>
    %c0_34 = arith.constant 0 : index
    %c0_35 = arith.constant 0 : index
    %83 = vector.load %arg5[%c0_34, %c0_35] : memref<16x64xf32, #tpu.memory_space<vmem>>, vector<16x64xf32>
    %cst_36 = arith.constant dense<0.000000e+00> : vector<16x1xf32>
    %84 = tpu.matmul %83, %82, %cst_36 {dimension_numbers = #tpu.dot_dimension_numbers<[1], [0], [0], [1], [0, 0, 1, 1], [], []>} : vector<16x64xf32>, vector<64x1xf32>, vector<16x1xf32> -> vector<16x1xf32>
    %c0_37 = arith.constant 0 : index
    %c0_38 = arith.constant 0 : index
    %85 = vector.load %arg6[%c0_37, %c0_38] : memref<16x1xf32, #tpu.memory_space<vmem>>, vector<16x1xf32>
    %86 = arith.addf %84, %85 : vector<16x1xf32>
    %cst_39 = arith.constant 0.000000e+00 : f32
    %87 = vector.broadcast %cst_39 : f32 to vector<16x1xf32>
    %88 = arith.cmpf ogt, %86, %87 : vector<16x1xf32>
    %cst_40 = arith.constant 2.000000e-01 : f32
    %89 = vector.broadcast %cst_40 : f32 to vector<16x1xf32>
    %90 = arith.mulf %89, %86 : vector<16x1xf32>
    %91 = arith.select %88, %86, %90 : vector<16x1xi1>, vector<16x1xf32>
    %c0_41 = arith.constant 0 : index
    %c0_42 = arith.constant 0 : index
    %92 = vector.load %arg7[%c0_41, %c0_42] : memref<32x16xf32, #tpu.memory_space<vmem>>, vector<32x16xf32>
    %cst_43 = arith.constant dense<0.000000e+00> : vector<32x1xf32>
    %93 = tpu.matmul %92, %91, %cst_43 {dimension_numbers = #tpu.dot_dimension_numbers<[1], [0], [0], [1], [0, 0, 1, 1], [], []>} : vector<32x16xf32>, vector<16x1xf32>, vector<32x1xf32> -> vector<32x1xf32>
    %c0_44 = arith.constant 0 : index
    %c0_45 = arith.constant 0 : index
    %94 = vector.load %arg8[%c0_44, %c0_45] : memref<32x1xf32, #tpu.memory_space<vmem>>, vector<32x1xf32>
    %95 = arith.addf %93, %94 : vector<32x1xf32>
    %96 = math.tanh %95 : vector<32x1xf32>
    %c0_46 = arith.constant 0 : index
    %c0_47 = arith.constant 0 : index
    %c0_48 = arith.constant 0 : index
    %97 = vector.load %arg9[%c0_46, %c0_47, %c0_48] : memref<1x32x1xf32, #tpu.memory_space<vmem>>, vector<1x32x1xf32>
    %98 = vector.shape_cast %97 : vector<1x32x1xf32> to vector<32x1xf32>
    %99 = vector.shape_cast %96 : vector<32x1xf32> to vector<1x32x1xf32>
    tpu.vector_store %arg9[%c0_46, %c0_47, %c0_48], %99 {strides = array<i32>} : memref<1x32x1xf32, #tpu.memory_space<vmem>>, vector<1x32x1xf32>,
    return
  }
  func.func @transform_0(%arg0: i32) -> (i32, i32, i32) {
    %c0_i32 = arith.constant 0 : i32
    %c0_i32_0 = arith.constant 0 : i32
    %c0_i32_1 = arith.constant 0 : i32
    return %arg0, %c0_i32, %c0_i32_0 : i32, i32, i32
  }
  func.func @transform_1(%arg0: i32) -> (i32, i32) {
    %c0_i32 = arith.constant 0 : i32
    %c0_i32_0 = arith.constant 0 : i32
    %c0_i32_1 = arith.constant 0 : i32
    return %c0_i32, %c0_i32_0 : i32, i32
  }
  func.func @transform_2(%arg0: i32) -> (i32, i32) {
    %c0_i32 = arith.constant 0 : i32
    %c0_i32_0 = arith.constant 0 : i32
    %c0_i32_1 = arith.constant 0 : i32
    return %c0_i32, %c0_i32_0 : i32, i32
  }
  func.func @transform_3(%arg0: i32) -> (i32, i32) {
    %c0_i32 = arith.constant 0 : i32
    %c0_i32_0 = arith.constant 0 : i32
    %c0_i32_1 = arith.constant 0 : i32
    return %c0_i32, %c0_i32_0 : i32, i32
  }
  func.func @transform_4(%arg0: i32) -> (i32, i32) {
    %c0_i32 = arith.constant 0 : i32
    %c0_i32_0 = arith.constant 0 : i32
    %c0_i32_1 = arith.constant 0 : i32
    return %c0_i32, %c0_i32_0 : i32, i32
  }
  func.func @transform_5(%arg0: i32) -> (i32, i32) {
    %c0_i32 = arith.constant 0 : i32
    %c0_i32_0 = arith.constant 0 : i32
    %c0_i32_1 = arith.constant 0 : i32
    return %c0_i32, %c0_i32_0 : i32, i32
  }
  func.func @transform_6(%arg0: i32) -> (i32, i32) {
    %c0_i32 = arith.constant 0 : i32
    %c0_i32_0 = arith.constant 0 : i32
    %c0_i32_1 = arith.constant 0 : i32
    return %c0_i32, %c0_i32_0 : i32, i32
  }
  func.func @transform_7(%arg0: i32) -> (i32, i32) {
    %c0_i32 = arith.constant 0 : i32
    %c0_i32_0 = arith.constant 0 : i32
    %c0_i32_1 = arith.constant 0 : i32
    return %c0_i32, %c0_i32_0 : i32, i32
  }
  func.func @transform_8(%arg0: i32) -> (i32, i32, i32) {
    %c0_i32 = arith.constant 0 : i32
    %c0_i32_0 = arith.constant 0 : i32
    %c0_i32_1 = arith.constant 0 : i32
    return %arg0, %c0_i32, %c0_i32_0 : i32, i32, i32
  }
}

</mosaic_0001>

<llo_original>
// kernel: global_encoder_forward.3
$region0: #{global_encoder_forward.3}
  #allocation0 [shape = 'u32[]', space=smem, size = 0x4, offset = 0x4, fixed_abs, tag = 'smem constant byte address 0x4 - core index']
  #allocation1 [shape = 'u32[144,128]{1,0:T(1,128)}', space=vmem, size = 0x12000, scoped, tag = 'internal scratch']
  %s0 = inlined_call_operand.vmem [shape: bf16[2,32,90], index: 0, kind: input, shape index: {}]
  %s1 = inlined_call_operand.vmem [shape: bf16[16,80], index: 1, kind: input, shape index: {}]
  %s2 = inlined_call_operand.vmem [shape: f32[16,1], index: 2, kind: input, shape index: {}]
  %s3 = inlined_call_operand.vmem [shape: bf16[2,16,72], index: 3, kind: output, shape index: {}]
  %s4 = sld [smem:[#allocation0]]
  $region45: #{global_encoder_forward.3} parent=0
    _
  %s6 = ssub.s32 1, %s4
  %s7 = scalar_select 0, %s6, %s4
  loop: start=0, step=1, limit=4
  $region2: #{global_encoder_forward.3} parent=0 // loop_pre_header
    _
  $region3: #{global_encoder_forward.3} parent=0 // loop_header
    %s9 = sphi 0, %s13
    %p10 = scmp.ge.s32.totalorder %s9, 4
    %s19 = sphi 0, %s21
    %s22 = sphi 0, %s19
    %s23 = sphi 0, %s22
    %s39 = sphi 0, %s23
    %s43 = sphi 0, %s43
    %s45 = sphi 0, %s43
    %s46 = sphi 0, %s45
    %s60 = sphi 0, %s46
    %s64 = sphi 0, %s64
    %s66 = sphi 0, %s64
    %s67 = sphi 0, %s66
    %s81 = sphi 0, %s67
    %s87 = sphi 0, %s89
    %s90 = sphi 0, %s87
    %s91 = sphi 0, %s90
    %s107 = sphi 0, %s91
  $region4: #{global_encoder_forward.3} parent=0 // loop_header_branch
    %12 = sbr.rel (%p10) target = $region8
  $region5: #{global_encoder_forward.3} parent=0 // loop_body
    %s14 = ssub.s32 %s9, 1
    %s15 = ssub.s32 %s9, 2
    %s16 = sadd.s32 %s9, 1
    %s17 = ssub.s32 %s9, %s16
    %p18 = scmp.eq.s32.totalorder %s17, 0
    %s20 = sadd.s32 %s19, 1
    %s21 = scalar_select %p18, %s19, %s20
    %p24 = pneg %p18
    %p25 = scmp.eq.s32.totalorder %s9, 1
    %p26 = por %p24, %p25
    %p27 = scmp.ne.s32.totalorder %s19, %s22
    %p28 = scmp.eq.s32.totalorder %s9, 0
    %p29 = por %p27, %p28
    %p30 = scmp.ne.s32.totalorder %s19, %s22
    %p31 = scmp.eq.s32.totalorder %s14, 1
    %p32 = por %p30, %p31
    %p33 = scmp.ne.s32.totalorder %s22, %s23
    %p34 = scmp.eq.s32.totalorder %s14, 0
    %p35 = por %p33, %p34
    %p36 = scmp.ne.s32.totalorder %s22, %s23
    %p37 = scmp.eq.s32.totalorder %s15, 1
    %p38 = por %p36, %p37
    %p40 = scmp.ne.s32.totalorder %s23, %s39
    %p41 = scmp.eq.s32.totalorder %s15, 0
    %p42 = por %p40, %p41
    %s44 = sadd.s32 %s43, 1
    %p47 = scmp.eq.s32.totalorder %s9, 1
    %p48 = scmp.ne.s32.totalorder %s43, %s45
    %p49 = scmp.eq.s32.totalorder %s9, 0
    %p50 = por %p48, %p49
    %p51 = scmp.ne.s32.totalorder %s43, %s45
    %p52 = scmp.eq.s32.totalorder %s14, 1
    %p53 = por %p51, %p52
    %p54 = scmp.ne.s32.totalorder %s45, %s46
    %p55 = scmp.eq.s32.totalorder %s14, 0
    %p56 = por %p54, %p55
    %p57 = scmp.ne.s32.totalorder %s45, %s46
    %p58 = scmp.eq.s32.totalorder %s15, 1
    %p59 = por %p57, %p58
    %p61 = scmp.ne.s32.totalorder %s46, %s60
    %p62 = scmp.eq.s32.totalorder %s15, 0
    %p63 = por %p61, %p62
    %s65 = sadd.s32 %s64, 1
    %p68 = scmp.eq.s32.totalorder %s9, 1
    %p69 = scmp.ne.s32.totalorder %s64, %s66
    %p70 = scmp.eq.s32.totalorder %s9, 0
    %p71 = por %p69, %p70
    %p72 = scmp.ne.s32.totalorder %s64, %s66
    %p73 = scmp.eq.s32.totalorder %s14, 1
    %p74 = por %p72, %p73
    %p75 = scmp.ne.s32.totalorder %s66, %s67
    %p76 = scmp.eq.s32.totalorder %s14, 0
    %p77 = por %p75, %p76
    %p78 = scmp.ne.s32.totalorder %s66, %s67
    %p79 = scmp.eq.s32.totalorder %s15, 1
    %p80 = por %p78, %p79
    %p82 = scmp.ne.s32.totalorder %s67, %s81
    %p83 = scmp.eq.s32.totalorder %s15, 0
    %p84 = por %p82, %p83
    %s85 = ssub.s32 %s9, %s16
    %p86 = scmp.eq.s32.totalorder %s85, 0
    %s88 = sadd.s32 %s87, 1
    %s89 = scalar_select %p86, %s87, %s88
    %p92 = pneg %p86
    %p93 = scmp.eq.s32.totalorder %s9, 1
    %p94 = por %p92, %p93
    %p95 = scmp.ne.s32.totalorder %s87, %s90
    %p96 = scmp.eq.s32.totalorder %s9, 0
    %p97 = por %p95, %p96
    %p98 = scmp.ne.s32.totalorder %s87, %s90
    %p99 = scmp.eq.s32.totalorder %s14, 1
    %p100 = por %p98, %p99
    %p101 = scmp.ne.s32.totalorder %s90, %s91
    %p102 = scmp.eq.s32.totalorder %s14, 0
    %p103 = por %p101, %p102
    %p104 = scmp.ne.s32.totalorder %s90, %s91
    %p105 = scmp.eq.s32.totalorder %s15, 1
    %p106 = por %p104, %p105
    %p108 = scmp.ne.s32.totalorder %s91, %s107
    %p109 = scmp.eq.s32.totalorder %s15, 0
    %p110 = por %p108, %p109
    %p111 = scmp.le.s32.totalorder 1, %s9
    %p112 = scmp.lt.s32.totalorder %s9, 3
    %p113 = pnand %p111, %p112
    %p114 = pneg %p113
    // Predicated region
    $region9: #{global_encoder_forward.3} parent=5 // pred_check
      _
    $region10: #{global_encoder_forward.3} parent=5 // pred_check_branch
      %116 = sbr.rel (%p113) target = $region12
    $region11: #{global_encoder_forward.3} parent=5 // pred_region
      %s117 = ssub.s32 %s9, 1
      // Predicated region
      $region13: #{global_encoder_forward.3} parent=11 // pred_check
        %p118 = pneg %p56
      $region14: #{global_encoder_forward.3} parent=11 // pred_check_branch
        %120 = sbr.rel (%p118) target = $region16
      $region15: #{global_encoder_forward.3} parent=11 // pred_region
        _
      $region16: #{global_encoder_forward.3} parent=11 // pred_fallthru
        _
      // Predicated region
      $region17: #{global_encoder_forward.3} parent=11 // pred_check
        %p121 = pneg %p77
      $region18: #{global_encoder_forward.3} parent=11 // pred_check_branch
        %123 = sbr.rel (%p121) target = $region20
      $region19: #{global_encoder_forward.3} parent=11 // pred_region
        _
      $region20: #{global_encoder_forward.3} parent=11 // pred_fallthru
        _
    $region12: #{global_encoder_forward.3} parent=5 // pred_fallthru
      _
    %p124 = scmp.lt.s32.totalorder %s9, 2
    // Predicated region
    $region21: #{global_encoder_forward.3} parent=5 // pred_check
      %p125 = pneg %p124
    $region22: #{global_encoder_forward.3} parent=5 // pred_check_branch
      %127 = sbr.rel (%p125) target = $region24
    $region23: #{global_encoder_forward.3} parent=5 // pred_region
      // Predicated region
      $region25: #{global_encoder_forward.3} parent=23 // pred_check
        %p128 = pneg %p29
      $region26: #{global_encoder_forward.3} parent=23 // pred_check_branch
        %130 = sbr.rel (%p128) target = $region28
      $region27: #{global_encoder_forward.3} parent=23 // pred_region
        %p131 = scmp.lt.s32.totalorder %s9, 1
        %s132 = scalar_select %p131, %s9, 1
        %s133 = smul.addr %s132, 4
        %s134 = smul.addr %s133, 4
        %s135 = scalar_lea.vmem %s0, %s134
      $region28: #{global_encoder_forward.3} parent=23 // pred_fallthru
        _
    $region24: #{global_encoder_forward.3} parent=5 // pred_fallthru
      _
    %p136 = scmp.le.s32.totalorder 1, %s9
    %p137 = scmp.lt.s32.totalorder %s9, 3
    %p138 = pnand %p136, %p137
    %p139 = pneg %p138
    // Predicated region
    $region29: #{global_encoder_forward.3} parent=5 // pred_check
      _
    $region30: #{global_encoder_forward.3} parent=5 // pred_check_branch
      %141 = sbr.rel (%p138) target = $region32
    $region31: #{global_encoder_forward.3} parent=5 // pred_region
      %s142 = ssub.s32 %s9, 1
      %p143 = scmp.lt.s32.totalorder %s14, 1
      %s144 = scalar_select %p143, %s14, 1
      %s145 = smul.addr %s144, 4
      %s146 = smul.addr %s145, 4
      %s147 = scalar_lea.vmem %s0, %s146
      %p148 = pneg %p35
      %p149 = pneg %p32
      %p150 = pneg %p56
      %p151 = pneg %p53
      %p152 = pneg %p77
      %p153 = pneg %p74
      %p154 = pneg %p103
      %p155 = pneg %p100
      %p156 = scmp.lt.s32.totalorder %s14, 1
      %s157 = scalar_select %p156, %s14, 1
      %s158 = smul.addr %s157, 2
      %s159 = smul.addr %s158, 4
      %s160 = scalar_lea.vmem %s3, %s159
      %p161 = scmp.lt.s32.totalorder %s14, 1
      %s162 = scalar_select %p161, %s14, 1
      %s163 = smul.addr %s162, 4
      %s164 = smul.addr %s163, 4
      %s165 = scalar_lea.vmem %s0, %s164
      %p166 = scmp.lt.s32.totalorder %s14, 1
      %s167 = scalar_select %p166, %s14, 1
      %s168 = smul.addr %s167, 2
      %s169 = smul.addr %s168, 4
      %s170 = scalar_lea.vmem %s3, %s169
      %v172 = vld [vmem:[%s165] sm:$0xf]
      %v173 = vld [vmem:[%s165 + $0x4] sm:$0xf]
      %v174 = vld [vmem:[%s165 + $0x8] sm:$0xf]
      %v175 = vld [vmem:[%s165 + $0xc] sm:$0xf]
      %v177 = vunpack.c.l.b16 %v173
      %v178 = vpack.c.b16 %v177, %v177
      %v180 = vunpack.c.l.b16 %v172
      %v181 = vpack.c.b16 %v180, %v180
      %182 = vrot.lane.b32.xlu0 %v181, 127
      %v183 = vpop.permute.xlu0 %182
      %v185 = vunpack.c.l.b16 %v174
      %v186 = vpack.c.b16 %v185, %v185
      %187 = vrot.lane.b32.xlu0 %v186, 127
      %v188 = vpop.permute.xlu0 %187
      %189 = vrot.lane.b32.xlu0 %v181, 119
      %v190 = vpop.permute.xlu0 %189
      %191 = vrot.lane.b32.xlu0 %v178, 119
      %v192 = vpop.permute.xlu0 %191
      %193 = vrot.lane.b32.xlu0 %v181, 118
      %v194 = vpop.permute.xlu0 %193
      %vm195 = vcmask 1043456
      %v198 = vsel %vm195, %v172, %v178
      %v202 = vsel %vm195, %v183, %v186
      %v206 = vsel %vm195, %v175, %v188
      %v210 = vsel %vm195, %v190, %v192
      %v214 = vsel %vm195, %v194, 0
      %v216 = vld [vmem:[%s1] sm:$0xf]
      %v217 = vld [vmem:[%s1 + $0x4] sm:$0xf]
      %v218 = vld [vmem:[%s2] sm:$0xff]
      %v219 = vld [vmem:[%s2 + $0x8] sm:$0xff]
      %221 = vset.pattern.permute.xlu0 0
      %222 = vperm.xlu0 %221, %v218
      %v223 = vpop.permute.xlu0 %222
      %226 = vset.pattern.permute.xlu0 0
      %227 = vperm.xlu0 %226, %v219
      %v228 = vpop.permute.xlu0 %227
      %v232 = vunpack.c.l.b16 %v216
      %v233 = vunpack.c.l.b16 %v217
      %v234 = vpack.c.b16 %v233, %v232
      %vm235 = vcmask 654336
      %v237 = vsel %vm235, %v234, 0
      %239 = vmatprep.subr.bf16.mxu0 0
      %240 = vmatpush1.bf16.msra.mxu0 %v198
      %241 = vmatprep.subr.bf16.mxu0 0
      %242 = vmatpush1.bf16.msra.mxu0 %v202
      %243 = vmatprep.subr.bf16.mxu0 0
      %244 = vmatpush1.bf16.msra.mxu0 %v206
      %245 = vmatprep.subr.bf16.mxu0 0
      %246 = vmatpush1.bf16.msra.mxu0 %v210
      %247 = vmatprep.subr.bf16.mxu0 0
      %248 = vmatpush1.bf16.msra.mxu0 %v214
      %249 = vmatprep.subr.bf16.mxu0 0
      %250 = vmatpush1.bf16.msra.mxu0 0
      %251 = vmatprep.subr.bf16.mxu0 0
      %252 = vmatpush1.bf16.msra.mxu0 0
      %253 = vmatprep.subr.bf16.mxu0 0
      %254 = vmatpush1.bf16.msra.mxu0 0
      %255 = vmatprep.subr.bf16.mxu0 0
      %256 = vmatpush1.bf16.msra.mxu0 0
      %257 = vmatprep.subr.bf16.mxu0 0
      %258 = vmatpush1.bf16.msra.mxu0 0
      %259 = vmatprep.subr.bf16.mxu0 0
      %260 = vmatpush1.bf16.msra.mxu0 0
      %261 = vmatprep.subr.bf16.mxu0 0
      %262 = vmatpush1.bf16.msra.mxu0 0
      %263 = vmatprep.subr.bf16.mxu0 0
      %264 = vmatpush1.bf16.msra.mxu0 0
      %265 = vmatprep.subr.bf16.mxu0 0
      %266 = vmatpush1.bf16.msra.mxu0 0
      %267 = vmatprep.subr.bf16.mxu0 0
      %268 = vmatpush1.bf16.msra.mxu0 0
      %269 = vmatprep.subr.bf16.mxu0 0
      %270 = vmatpush1.bf16.msra.mxu0 0
      %271 = vmatprep.mubr.bf16.mxu0 0
      %272 = vmatmul.mubr.bf16.gmra.mrb[0].mxu0 %v237
      %v273 = vpop.f32.mrb[0].mxu0
      %v274 = vadd.f32 %v223, %v273
      %v275 = vpop.f32.mrb[0].mxu0
      %v276 = vpop.f32.mrb[0].mxu0
      %v277 = vadd.f32 %v228, %v276
      %v278 = vpop.f32.mrb[0].mxu0
      %279 = vdwg.mxu0
      %vm280 = vcmp.gt.f32.partialorder %v274, 0.0
      %vm281 = vcmp.gt.f32.partialorder %v277, 0.0
      %v282 = vmul.f32 %v274, 0.2
      %v283 = vmul.f32 %v277, 0.2
      %v284 = vsel %vm280, %v274, %v282
      %v285 = vsel %vm281, %v277, %v283
      %v286 = vpack.c.bf16 %v285, %v284
      %v288 = vunpack.c.l.b16 %v286
      %v289 = vunpack.c.h.b16 %v286
      %v290 = vpack.c.b16 %v288, %v288
      %v291 = vpack.c.b16 %v289, %v289
      %vm294 = vcmask 584704
      %295 = vst.msk [vmem:[%s170] sm:$0xf] %vm294, %v290
      %296 = vst.msk [vmem:[%s170 + $0x4] sm:$0xf] %vm294, %v291
      %p297 = scmp.lt.s32.totalorder %s14, 1
      %s298 = scalar_select %p297, %s14, 1
      %s299 = smul.addr %s298, 2
      %s300 = smul.addr %s299, 4
      %s301 = scalar_lea.vmem %s3, %s300
      // Predicated region
      $region33: #{global_encoder_forward.3} parent=31 // pred_check
        %p302 = pneg %p100
      $region34: #{global_encoder_forward.3} parent=31 // pred_check_branch
        %304 = sbr.rel (%p302) target = $region36
      $region35: #{global_encoder_forward.3} parent=31 // pred_region
        _
      $region36: #{global_encoder_forward.3} parent=31 // pred_fallthru
        _
    $region32: #{global_encoder_forward.3} parent=5 // pred_fallthru
      _
    %p305 = scmp.le.s32.totalorder 2, %s9
    // Predicated region
    $region37: #{global_encoder_forward.3} parent=5 // pred_check
      %p306 = pneg %p305
    $region38: #{global_encoder_forward.3} parent=5 // pred_check_branch
      %308 = sbr.rel (%p306) target = $region40
    $region39: #{global_encoder_forward.3} parent=5 // pred_region
      %s309 = ssub.s32 %s9, 2
      // Predicated region
      $region41: #{global_encoder_forward.3} parent=39 // pred_check
        %p310 = pneg %p106
      $region42: #{global_encoder_forward.3} parent=39 // pred_check_branch
        %312 = sbr.rel (%p310) target = $region44
      $region43: #{global_encoder_forward.3} parent=39 // pred_region
        %p313 = scmp.lt.s32.totalorder %s15, 1
        %s314 = scalar_select %p313, %s15, 1
        %s315 = smul.addr %s314, 2
        %s316 = smul.addr %s315, 4
        %s317 = scalar_lea.vmem %s3, %s316
      $region44: #{global_encoder_forward.3} parent=39 // pred_fallthru
        _
    $region40: #{global_encoder_forward.3} parent=5 // pred_fallthru
      _
  $region6: #{global_encoder_forward.3} parent=0 // loop_footer
    %s13 = sadd.s32 1, %s9
  $region7: #{global_encoder_forward.3} parent=0 // loop_footer_branch
    %8 = sbr.rel target = $region3
  $region8: #{global_encoder_forward.3} parent=0 // loop_exit
    _

// kernel: global_encoder_forward.4
$region0: #{global_encoder_forward.4}
  #allocation0 [shape = 'u32[]', space=smem, size = 0x4, offset = 0x4, fixed_abs, tag = 'smem constant byte address 0x4 - core index']
  #allocation1 [shape = 'u32[144,128]{1,0:T(1,128)}', space=vmem, size = 0x12000, scoped, tag = 'internal scratch']
  %s0 = inlined_call_operand.vmem [shape: bf16[2,64,30], index: 0, kind: input, shape index: {}]
  %s1 = inlined_call_operand.vmem [shape: bf16[16,144], index: 1, kind: input, shape index: {}]
  %s2 = inlined_call_operand.vmem [shape: bf16[32,144], index: 2, kind: input, shape index: {}]
  %s3 = inlined_call_operand.vmem [shape: f32[1,20], index: 3, kind: input, shape index: {}]
  %s4 = inlined_call_operand.vmem [shape: bf16[2,32,20], index: 4, kind: output, shape index: {}]
  %s5 = sld [smem:[#allocation0]]
  $region49: #{global_encoder_forward.4} parent=0
    _
  %s7 = ssub.s32 1, %s5
  %s8 = scalar_select 0, %s7, %s5
  loop: start=0, step=1, limit=4
  $region2: #{global_encoder_forward.4} parent=0 // loop_pre_header
    _
  $region3: #{global_encoder_forward.4} parent=0 // loop_header
    %s10 = sphi 0, %s14
    %p11 = scmp.ge.s32.totalorder %s10, 4
    %s20 = sphi 0, %s22
    %s23 = sphi 0, %s20
    %s24 = sphi 0, %s23
    %s40 = sphi 0, %s24
    %s44 = sphi 0, %s44
    %s46 = sphi 0, %s44
    %s47 = sphi 0, %s46
    %s61 = sphi 0, %s47
    %s65 = sphi 0, %s65
    %s67 = sphi 0, %s65
    %s68 = sphi 0, %s67
    %s82 = sphi 0, %s68
    %s86 = sphi 0, %s86
    %s88 = sphi 0, %s86
    %s89 = sphi 0, %s88
    %s103 = sphi 0, %s89
    %s109 = sphi 0, %s111
    %s112 = sphi 0, %s109
    %s113 = sphi 0, %s112
    %s129 = sphi 0, %s113
  $region4: #{global_encoder_forward.4} parent=0 // loop_header_branch
    %13 = sbr.rel (%p11) target = $region8
  $region5: #{global_encoder_forward.4} parent=0 // loop_body
    %s15 = ssub.s32 %s10, 1
    %s16 = ssub.s32 %s10, 2
    %s17 = sadd.s32 %s10, 1
    %s18 = ssub.s32 %s10, %s17
    %p19 = scmp.eq.s32.totalorder %s18, 0
    %s21 = sadd.s32 %s20, 1
    %s22 = scalar_select %p19, %s20, %s21
    %p25 = pneg %p19
    %p26 = scmp.eq.s32.totalorder %s10, 1
    %p27 = por %p25, %p26
    %p28 = scmp.ne.s32.totalorder %s20, %s23
    %p29 = scmp.eq.s32.totalorder %s10, 0
    %p30 = por %p28, %p29
    %p31 = scmp.ne.s32.totalorder %s20, %s23
    %p32 = scmp.eq.s32.totalorder %s15, 1
    %p33 = por %p31, %p32
    %p34 = scmp.ne.s32.totalorder %s23, %s24
    %p35 = scmp.eq.s32.totalorder %s15, 0
    %p36 = por %p34, %p35
    %p37 = scmp.ne.s32.totalorder %s23, %s24
    %p38 = scmp.eq.s32.totalorder %s16, 1
    %p39 = por %p37, %p38
    %p41 = scmp.ne.s32.totalorder %s24, %s40
    %p42 = scmp.eq.s32.totalorder %s16, 0
    %p43 = por %p41, %p42
    %s45 = sadd.s32 %s44, 1
    %p48 = scmp.eq.s32.totalorder %s10, 1
    %p49 = scmp.ne.s32.totalorder %s44, %s46
    %p50 = scmp.eq.s32.totalorder %s10, 0
    %p51 = por %p49, %p50
    %p52 = scmp.ne.s32.totalorder %s44, %s46
    %p53 = scmp.eq.s32.totalorder %s15, 1
    %p54 = por %p52, %p53
    %p55 = scmp.ne.s32.totalorder %s46, %s47
    %p56 = scmp.eq.s32.totalorder %s15, 0
    %p57 = por %p55, %p56
    %p58 = scmp.ne.s32.totalorder %s46, %s47
    %p59 = scmp.eq.s32.totalorder %s16, 1
    %p60 = por %p58, %p59
    %p62 = scmp.ne.s32.totalorder %s47, %s61
    %p63 = scmp.eq.s32.totalorder %s16, 0
    %p64 = por %p62, %p63
    %s66 = sadd.s32 %s65, 1
    %p69 = scmp.eq.s32.totalorder %s10, 1
    %p70 = scmp.ne.s32.totalorder %s65, %s67
    %p71 = scmp.eq.s32.totalorder %s10, 0
    %p72 = por %p70, %p71
    %p73 = scmp.ne.s32.totalorder %s65, %s67
    %p74 = scmp.eq.s32.totalorder %s15, 1
    %p75 = por %p73, %p74
    %p76 = scmp.ne.s32.totalorder %s67, %s68
    %p77 = scmp.eq.s32.totalorder %s15, 0
    %p78 = por %p76, %p77
    %p79 = scmp.ne.s32.totalorder %s67, %s68
    %p80 = scmp.eq.s32.totalorder %s16, 1
    %p81 = por %p79, %p80
    %p83 = scmp.ne.s32.totalorder %s68, %s82
    %p84 = scmp.eq.s32.totalorder %s16, 0
    %p85 = por %p83, %p84
    %s87 = sadd.s32 %s86, 1
    %p90 = scmp.eq.s32.totalorder %s10, 1
    %p91 = scmp.ne.s32.totalorder %s86, %s88
    %p92 = scmp.eq.s32.totalorder %s10, 0
    %p93 = por %p91, %p92
    %p94 = scmp.ne.s32.totalorder %s86, %s88
    %p95 = scmp.eq.s32.totalorder %s15, 1
    %p96 = por %p94, %p95
    %p97 = scmp.ne.s32.totalorder %s88, %s89
    %p98 = scmp.eq.s32.totalorder %s15, 0
    %p99 = por %p97, %p98
    %p100 = scmp.ne.s32.totalorder %s88, %s89
    %p101 = scmp.eq.s32.totalorder %s16, 1
    %p102 = por %p100, %p101
    %p104 = scmp.ne.s32.totalorder %s89, %s103
    %p105 = scmp.eq.s32.totalorder %s16, 0
    %p106 = por %p104, %p105
    %s107 = ssub.s32 %s10, %s17
    %p108 = scmp.eq.s32.totalorder %s107, 0
    %s110 = sadd.s32 %s109, 1
    %s111 = scalar_select %p108, %s109, %s110
    %p114 = pneg %p108
    %p115 = scmp.eq.s32.totalorder %s10, 1
    %p116 = por %p114, %p115
    %p117 = scmp.ne.s32.totalorder %s109, %s112
    %p118 = scmp.eq.s32.totalorder %s10, 0
    %p119 = por %p117, %p118
    %p120 = scmp.ne.s32.totalorder %s109, %s112
    %p121 = scmp.eq.s32.totalorder %s15, 1
    %p122 = por %p120, %p121
    %p123 = scmp.ne.s32.totalorder %s112, %s113
    %p124 = scmp.eq.s32.totalorder %s15, 0
    %p125 = por %p123, %p124
    %p126 = scmp.ne.s32.totalorder %s112, %s113
    %p127 = scmp.eq.s32.totalorder %s16, 1
    %p128 = por %p126, %p127
    %p130 = scmp.ne.s32.totalorder %s113, %s129
    %p131 = scmp.eq.s32.totalorder %s16, 0
    %p132 = por %p130, %p131
    %p133 = scmp.le.s32.totalorder 1, %s10
    %p134 = scmp.lt.s32.totalorder %s10, 3
    %p135 = pnand %p133, %p134
    %p136 = pneg %p135
    // Predicated region
    $region9: #{global_encoder_forward.4} parent=5 // pred_check
      _
    $region10: #{global_encoder_forward.4} parent=5 // pred_check_branch
      %138 = sbr.rel (%p135) target = $region12
    $region11: #{global_encoder_forward.4} parent=5 // pred_region
      %s139 = ssub.s32 %s10, 1
      // Predicated region
      $region13: #{global_encoder_forward.4} parent=11 // pred_check
        %p140 = pneg %p57
      $region14: #{global_encoder_forward.4} parent=11 // pred_check_branch
        %142 = sbr.rel (%p140) target = $region16
      $region15: #{global_encoder_forward.4} parent=11 // pred_region
        _
      $region16: #{global_encoder_forward.4} parent=11 // pred_fallthru
        _
      // Predicated region
      $region17: #{global_encoder_forward.4} parent=11 // pred_check
        %p143 = pneg %p78
      $region18: #{global_encoder_forward.4} parent=11 // pred_check_branch
        %145 = sbr.rel (%p143) target = $region20
      $region19: #{global_encoder_forward.4} parent=11 // pred_region
        _
      $region20: #{global_encoder_forward.4} parent=11 // pred_fallthru
        _
      // Predicated region
      $region21: #{global_encoder_forward.4} parent=11 // pred_check
        %p146 = pneg %p99
      $region22: #{global_encoder_forward.4} parent=11 // pred_check_branch
        %148 = sbr.rel (%p146) target = $region24
      $region23: #{global_encoder_forward.4} parent=11 // pred_region
        _
      $region24: #{global_encoder_forward.4} parent=11 // pred_fallthru
        _
    $region12: #{global_encoder_forward.4} parent=5 // pred_fallthru
      _
    %p149 = scmp.lt.s32.totalorder %s10, 2
    // Predicated region
    $region25: #{global_encoder_forward.4} parent=5 // pred_check
      %p150 = pneg %p149
    $region26: #{global_encoder_forward.4} parent=5 // pred_check_branch
      %152 = sbr.rel (%p150) target = $region28
    $region27: #{global_encoder_forward.4} parent=5 // pred_region
      // Predicated region
      $region29: #{global_encoder_forward.4} parent=27 // pred_check
        %p153 = pneg %p30
      $region30: #{global_encoder_forward.4} parent=27 // pred_check_branch
        %155 = sbr.rel (%p153) target = $region32
      $region31: #{global_encoder_forward.4} parent=27 // pred_region
        %p156 = scmp.lt.s32.totalorder %s10, 1
        %s157 = scalar_select %p156, %s10, 1
        %s158 = smul.addr %s157, 8
        %s159 = smul.addr %s158, 4
        %s160 = scalar_lea.vmem %s0, %s159
      $region32: #{global_encoder_forward.4} parent=27 // pred_fallthru
        _
    $region28: #{global_encoder_forward.4} parent=5 // pred_fallthru
      _
    %p161 = scmp.le.s32.totalorder 1, %s10
    %p162 = scmp.lt.s32.totalorder %s10, 3
    %p163 = pnand %p161, %p162
    %p164 = pneg %p163
    // Predicated region
    $region33: #{global_encoder_forward.4} parent=5 // pred_check
      _
    $region34: #{global_encoder_forward.4} parent=5 // pred_check_branch
      %166 = sbr.rel (%p163) target = $region36
    $region35: #{global_encoder_forward.4} parent=5 // pred_region
      %s167 = ssub.s32 %s10, 1
      %p168 = scmp.lt.s32.totalorder %s15, 1
      %s169 = scalar_select %p168, %s15, 1
      %s170 = smul.addr %s169, 8
      %s171 = smul.addr %s170, 4
      %s172 = scalar_lea.vmem %s0, %s171
      %p173 = pneg %p36
      %p174 = pneg %p33
      %p175 = pneg %p57
      %p176 = pneg %p54
      %p177 = pneg %p78
      %p178 = pneg %p75
      %p179 = pneg %p99
      %p180 = pneg %p96
      %p181 = pneg %p125
      %p182 = pneg %p122
      %p183 = scmp.lt.s32.totalorder %s15, 1
      %s184 = scalar_select %p183, %s15, 1
      %s185 = smul.addr %s184, 4
      %s186 = smul.addr %s185, 4
      %s187 = scalar_lea.vmem %s4, %s186
      %p188 = scmp.lt.s32.totalorder %s15, 1
      %s189 = scalar_select %p188, %s15, 1
      %s190 = smul.addr %s189, 8
      %s191 = smul.addr %s190, 4
      %s192 = scalar_lea.vmem %s0, %s191
      %p193 = scmp.lt.s32.totalorder %s15, 1
      %s194 = scalar_select %p193, %s15, 1
      %s195 = smul.addr %s194, 4
      %s196 = smul.addr %s195, 4
      %s197 = scalar_lea.vmem %s4, %s196
      %v199 = vld [vmem:[%s192] sm:$0xf]
      %v200 = vld [vmem:[%s192 + $0x4] sm:$0xf]
      %v201 = vld [vmem:[%s192 + $0x8] sm:$0xf]
      %v202 = vld [vmem:[%s192 + $0xc] sm:$0xf]
      %v203 = vld [vmem:[%s192 + $0x10] sm:$0xf]
      %v204 = vld [vmem:[%s192 + $0x14] sm:$0xf]
      %v205 = vld [vmem:[%s192 + $0x18] sm:$0xf]
      %v206 = vld [vmem:[%s192 + $0x1c] sm:$0xf]
      %v207 = vld [vmem:[%s3] sm:$0x1]
      %v210 = vunpack.c.l.b16 %v199
      %v211 = vunpack.c.l.b16 %v200
      %v212 = vpack.c.b16 %v211, %v210
      %v216 = vunpack.c.l.b16 %v201
      %v217 = vunpack.c.l.b16 %v202
      %v218 = vpack.c.b16 %v217, %v216
      %220 = vrot.lane.b32.xlu0 %v212, 127
      %v221 = vpop.permute.xlu0 %220
      %v225 = vunpack.c.l.b16 %v203
      %v226 = vunpack.c.l.b16 %v204
      %v227 = vpack.c.b16 %v226, %v225
      %v231 = vunpack.c.l.b16 %v205
      %v232 = vunpack.c.l.b16 %v206
      %v233 = vpack.c.b16 %v232, %v231
      %235 = vrot.lane.b32.xlu0 %v227, 127
      %v236 = vpop.permute.xlu0 %235
      %238 = vrot.lane.b32.xlu0 %v212, 123
      %v239 = vpop.permute.xlu0 %238
      %241 = vrot.lane.b32.xlu0 %v218, 123
      %v242 = vpop.permute.xlu0 %241
      %244 = vrot.lane.b32.xlu0 %v212, 122
      %v245 = vpop.permute.xlu0 %244
      %v247 = vld [vmem:[%s1] sm:$0xff]
      %v248 = vld [vmem:[%s1 + $0x8] sm:$0xff]
      %v251 = vunpack.c.l.b16 %v247
      %v252 = vunpack.c.h.b16 %v247
      %v253 = vunpack.c.l.b16 %v248
      %v254 = vunpack.c.h.b16 %v248
      %v255 = vpack.c.b16 %v253, %v251
      %v256 = vpack.c.b16 %v254, %v252
      %vm258 = vcmask 130048
      %v260 = vsel %vm258, %v256, 0
      %262 = vmatprep.subr.bf16.mxu0 0
      %263 = vmatpush1.bf16.msra.mxu0 %v212
      %264 = vmatprep.subr.bf16.mxu0 0
      %265 = vmatpush1.bf16.msra.mxu0 %v218
      %266 = vmatprep.subr.bf16.mxu0 0
      %267 = vmatpush1.bf16.msra.mxu0 %v221
      %268 = vmatprep.subr.bf16.mxu0 0
      %269 = vmatpush1.bf16.msra.mxu0 %v227
      %270 = vmatprep.subr.bf16.mxu0 0
      %271 = vmatpush1.bf16.msra.mxu0 %v233
      %272 = vmatprep.subr.bf16.mxu0 0
      %273 = vmatpush1.bf16.msra.mxu0 %v236
      %274 = vmatprep.subr.bf16.mxu0 0
      %275 = vmatpush1.bf16.msra.mxu0 %v239
      %276 = vmatprep.subr.bf16.mxu0 0
      %277 = vmatpush1.bf16.msra.mxu0 %v242
      %278 = vmatprep.subr.bf16.mxu0 0
      %279 = vmatpush1.bf16.msra.mxu0 %v245
      %280 = vmatprep.subr.bf16.mxu0 0
      %281 = vmatpush1.bf16.msra.mxu0 0
      %282 = vmatprep.subr.bf16.mxu0 0
      %283 = vmatpush1.bf16.msra.mxu0 0
      %284 = vmatprep.subr.bf16.mxu0 0
      %285 = vmatpush1.bf16.msra.mxu0 0
      %286 = vmatprep.subr.bf16.mxu0 0
      %287 = vmatpush1.bf16.msra.mxu0 0
      %288 = vmatprep.subr.bf16.mxu0 0
      %289 = vmatpush1.bf16.msra.mxu0 0
      %290 = vmatprep.subr.bf16.mxu0 0
      %291 = vmatpush1.bf16.msra.mxu0 0
      %292 = vmatprep.subr.bf16.mxu0 0
      %293 = vmatpush1.bf16.msra.mxu0 0
      %294 = vmatprep.mubr.bf16.mxu0 %v260
      %295 = vmatmul.mubr.bf16.gmra.mrb[0].mxu0 %v255
      %v296 = vpop.f32.mrb[0].mxu0
      %v297 = vadd.f32 0.0, %v296
      %v298 = vpop.f32.mrb[0].mxu0
      %v299 = vpop.f32.mrb[0].mxu0
      %v300 = vadd.f32 0.0, %v299
      %v301 = vpop.f32.mrb[0].mxu0
      %302 = vdwg.mxu0
      %v303 = vmax.f32 %v297, 0.0
      %v304 = vmax.f32 %v300, 0.0
      %v306 = vlaneseq
      %v307 = vshrl.u32 %v306, 7
      %v308 = vsub.s32 0, %v307
      %v309 = vrot.slane %v207, %v308
      %v311 = vmul.f32 %v303, %v309
      %v312 = vmul.f32 %v304, %v309
      %v313 = vpack.c.bf16 %v312, %v311
      %315 = vrot.lane.b32.xlu0 %v313, 6
      %v316 = vpop.permute.xlu0 %315
      %vm317 = vcmask 48128
      %v320 = vsel %vm317, 0, %v316
      %321 = vrot.lane.b32.xlu0 %v218, 127
      %v322 = vpop.permute.xlu0 %321
      %324 = vrot.lane.b32.xlu0 %v233, 127
      %v325 = vpop.permute.xlu0 %324
      %327 = vrot.lane.b32.xlu0 %v218, 122
      %v328 = vpop.permute.xlu0 %327
      %330 = vmatprep.subr.bf16.mxu0 0
      %331 = vmatpush1.bf16.msra.mxu0 %v218
      %332 = vmatprep.subr.bf16.mxu0 0
      %333 = vmatpush1.bf16.msra.mxu0 %v221
      %334 = vmatprep.subr.bf16.mxu0 0
      %335 = vmatpush1.bf16.msra.mxu0 %v322
      %336 = vmatprep.subr.bf16.mxu0 0
      %337 = vmatpush1.bf16.msra.mxu0 %v233
      %338 = vmatprep.subr.bf16.mxu0 0
      %339 = vmatpush1.bf16.msra.mxu0 %v236
      %340 = vmatprep.subr.bf16.mxu0 0
      %341 = vmatpush1.bf16.msra.mxu0 %v325
      %342 = vmatprep.subr.bf16.mxu0 0
      %343 = vmatpush1.bf16.msra.mxu0 %v242
      %344 = vmatprep.subr.bf16.mxu0 0
      %345 = vmatpush1.bf16.msra.mxu0 %v245
      %346 = vmatprep.subr.bf16.mxu0 0
      %347 = vmatpush1.bf16.msra.mxu0 %v328
      %348 = vmatprep.subr.bf16.mxu0 0
      %349 = vmatpush1.bf16.msra.mxu0 0
      %350 = vmatprep.subr.bf16.mxu0 0
      %351 = vmatpush1.bf16.msra.mxu0 0
      %352 = vmatprep.subr.bf16.mxu0 0
      %353 = vmatpush1.bf16.msra.mxu0 0
      %354 = vmatprep.subr.bf16.mxu0 0
      %355 = vmatpush1.bf16.msra.mxu0 0
      %356 = vmatprep.subr.bf16.mxu0 0
      %357 = vmatpush1.bf16.msra.mxu0 0
      %358 = vmatprep.subr.bf16.mxu0 0
      %359 = vmatpush1.bf16.msra.mxu0 0
      %360 = vmatprep.subr.bf16.mxu0 0
      %361 = vmatpush1.bf16.msra.mxu0 0
      %362 = vmatprep.mubr.bf16.mxu0 %v260
      %363 = vmatmul.mubr.bf16.gmra.mrb[0].mxu0 %v255
      %v364 = vpop.f32.mrb[0].mxu0
      %v365 = vadd.f32 0.0, %v364
      %v366 = vpop.f32.mrb[0].mxu0
      %v367 = vpop.f32.mrb[0].mxu0
      %v368 = vadd.f32 0.0, %v367
      %v369 = vpop.f32.mrb[0].mxu0
      %370 = vdwg.mxu0
      %v371 = vmax.f32 %v365, 0.0
      %v372 = vmax.f32 %v368, 0.0
      %v373 = vmul.f32 %v371, %v309
      %v374 = vmul.f32 %v372, %v309
      %v375 = vpack.c.bf16 %v374, %v373
      %377 = vrot.lane.b32.xlu0 %v375, 6
      %v378 = vpop.permute.xlu0 %377
      %v380 = vsel %vm317, 0, %v378
      %381 = vrot.lane.b32.xlu0 %v227, 123
      %v382 = vpop.permute.xlu0 %381
      %384 = vrot.lane.b32.xlu0 %v233, 123
      %v385 = vpop.permute.xlu0 %384
      %387 = vrot.lane.b32.xlu0 %v227, 122
      %v388 = vpop.permute.xlu0 %387
      %390 = vmatprep.subr.bf16.mxu0 0
      %391 = vmatpush1.bf16.msra.mxu0 %v227
      %392 = vmatprep.subr.bf16.mxu0 0
      %393 = vmatpush1.bf16.msra.mxu0 %v233
      %394 = vmatprep.subr.bf16.mxu0 0
      %395 = vmatpush1.bf16.msra.mxu0 %v236
      %396 = vmatprep.subr.bf16.mxu0 0
      %397 = vmatpush1.bf16.msra.mxu0 %v239
      %398 = vmatprep.subr.bf16.mxu0 0
      %399 = vmatpush1.bf16.msra.mxu0 %v242
      %400 = vmatprep.subr.bf16.mxu0 0
      %401 = vmatpush1.bf16.msra.mxu0 %v245
      %402 = vmatprep.subr.bf16.mxu0 0
      %403 = vmatpush1.bf16.msra.mxu0 %v382
      %404 = vmatprep.subr.bf16.mxu0 0
      %405 = vmatpush1.bf16.msra.mxu0 %v385
      %406 = vmatprep.subr.bf16.mxu0 0
      %407 = vmatpush1.bf16.msra.mxu0 %v388
      %408 = vmatprep.subr.bf16.mxu0 0
      %409 = vmatpush1.bf16.msra.mxu0 0
      %410 = vmatprep.subr.bf16.mxu0 0
      %411 = vmatpush1.bf16.msra.mxu0 0
      %412 = vmatprep.subr.bf16.mxu0 0
      %413 = vmatpush1.bf16.msra.mxu0 0
      %414 = vmatprep.subr.bf16.mxu0 0
      %415 = vmatpush1.bf16.msra.mxu0 0
      %416 = vmatprep.subr.bf16.mxu0 0
      %417 = vmatpush1.bf16.msra.mxu0 0
      %418 = vmatprep.subr.bf16.mxu0 0
      %419 = vmatpush1.bf16.msra.mxu0 0
      %420 = vmatprep.subr.bf16.mxu0 0
      %421 = vmatpush1.bf16.msra.mxu0 0
      %422 = vmatprep.mubr.bf16.mxu0 %v260
      %423 = vmatmul.mubr.bf16.gmra.mrb[0].mxu0 %v255
      %v424 = vpop.f32.mrb[0].mxu0
      %v425 = vadd.f32 0.0, %v424
      %v426 = vpop.f32.mrb[0].mxu0
      %v427 = vpop.f32.mrb[0].mxu0
      %v428 = vadd.f32 0.0, %v427
      %v429 = vpop.f32.mrb[0].mxu0
      %430 = vdwg.mxu0
      %v431 = vmax.f32 %v425, 0.0
      %v432 = vmax.f32 %v428, 0.0
      %v433 = vmul.f32 %v431, %v309
      %v434 = vmul.f32 %v432, %v309
      %v435 = vpack.c.bf16 %v434, %v433
      %437 = vrot.lane.b32.xlu0 %v435, 6
      %v438 = vpop.permute.xlu0 %437
      %v440 = vsel %vm317, 0, %v438
      %441 = vrot.lane.b32.xlu0 %v233, 122
      %v442 = vpop.permute.xlu0 %441
      %444 = vmatprep.subr.bf16.mxu0 0
      %445 = vmatpush1.bf16.msra.mxu0 %v233
      %446 = vmatprep.subr.bf16.mxu0 0
      %447 = vmatpush1.bf16.msra.mxu0 %v236
      %448 = vmatprep.subr.bf16.mxu0 0
      %449 = vmatpush1.bf16.msra.mxu0 %v325
      %450 = vmatprep.subr.bf16.mxu0 0
      %451 = vmatpush1.bf16.msra.mxu0 %v242
      %452 = vmatprep.subr.bf16.mxu0 0
      %453 = vmatpush1.bf16.msra.mxu0 %v245
      %454 = vmatprep.subr.bf16.mxu0 0
      %455 = vmatpush1.bf16.msra.mxu0 %v328
      %456 = vmatprep.subr.bf16.mxu0 0
      %457 = vmatpush1.bf16.msra.mxu0 %v385
      %458 = vmatprep.subr.bf16.mxu0 0
      %459 = vmatpush1.bf16.msra.mxu0 %v388
      %460 = vmatprep.subr.bf16.mxu0 0
      %461 = vmatpush1.bf16.msra.mxu0 %v442
      %462 = vmatprep.subr.bf16.mxu0 0
      %463 = vmatpush1.bf16.msra.mxu0 0
      %464 = vmatprep.subr.bf16.mxu0 0
      %465 = vmatpush1.bf16.msra.mxu0 0
      %466 = vmatprep.subr.bf16.mxu0 0
      %467 = vmatpush1.bf16.msra.mxu0 0
      %468 = vmatprep.subr.bf16.mxu0 0
      %469 = vmatpush1.bf16.msra.mxu0 0
      %470 = vmatprep.subr.bf16.mxu0 0
      %471 = vmatpush1.bf16.msra.mxu0 0
      %472 = vmatprep.subr.bf16.mxu0 0
      %473 = vmatpush1.bf16.msra.mxu0 0
      %474 = vmatprep.subr.bf16.mxu0 0
      %475 = vmatpush1.bf16.msra.mxu0 0
      %476 = vmatprep.mubr.bf16.mxu0 %v260
      %477 = vmatmul.mubr.bf16.gmra.mrb[0].mxu0 %v255
      %v478 = vpop.f32.mrb[0].mxu0
      %v479 = vadd.f32 0.0, %v478
      %v480 = vpop.f32.mrb[0].mxu0
      %v481 = vpop.f32.mrb[0].mxu0
      %v482 = vadd.f32 0.0, %v481
      %v483 = vpop.f32.mrb[0].mxu0
      %484 = vdwg.mxu0
      %v485 = vmax.f32 %v479, 0.0
      %v486 = vmax.f32 %v482, 0.0
      %v487 = vmul.f32 %v485, %v309
      %v488 = vmul.f32 %v486, %v309
      %v489 = vpack.c.bf16 %v488, %v487
      %491 = vrot.lane.b32.xlu0 %v489, 6
      %v492 = vpop.permute.xlu0 %491
      %v494 = vsel %vm317, 0, %v492
      %497 = vrot.lane.b32.xlu0 %v440, 127
      %v498 = vpop.permute.xlu0 %497
      %501 = vrot.lane.b32.xlu0 %v494, 127
      %v502 = vpop.permute.xlu0 %501
      %505 = vrot.lane.b32.xlu0 %v380, 123
      %v506 = vpop.permute.xlu0 %505
      %509 = vrot.lane.b32.xlu0 %v320, 122
      %v510 = vpop.permute.xlu0 %509
      %512 = vrot.lane.b32.xlu0 %v380, 122
      %v513 = vpop.permute.xlu0 %512
      %515 = vrot.lane.b32.xlu0 %v494, 123
      %v516 = vpop.permute.xlu0 %515
      %518 = vrot.lane.b32.xlu0 %v440, 122
      %v519 = vpop.permute.xlu0 %518
      %521 = vrot.lane.b32.xlu0 %v494, 122
      %v522 = vpop.permute.xlu0 %521
      %v524 = vld [vmem:[%s2] sm:$0xff]
      %v525 = vld [vmem:[%s2 + $0x8] sm:$0xff]
      %v526 = vld [vmem:[%s2 + $0x10] sm:$0xff]
      %v527 = vld [vmem:[%s2 + $0x18] sm:$0xff]
      %v532 = vunpack.c.l.b16 %v524
      %v533 = vunpack.c.h.b16 %v524
      %v534 = vunpack.c.l.b16 %v525
      %v535 = vunpack.c.h.b16 %v525
      %v536 = vunpack.c.l.b16 %v526
      %v537 = vunpack.c.h.b16 %v526
      %v538 = vunpack.c.l.b16 %v527
      %v539 = vunpack.c.h.b16 %v527
      %v540 = vpack.c.b16 %v534, %v532
      %v541 = vpack.c.b16 %v535, %v533
      %v542 = vpack.c.b16 %v538, %v536
      %v543 = vpack.c.b16 %v539, %v537
      %v547 = vsel %vm258, %v541, 0
      %v550 = vsel %vm258, %v543, 0
      %552 = vmatprep.subr.bf16.mxu0 0
      %553 = vmatpush1.bf16.msra.mxu0 %v494
      %554 = vmatprep.subr.bf16.mxu0 0
      %555 = vmatpush1.bf16.msra.mxu0 %v498
      %556 = vmatprep.subr.bf16.mxu0 0
      %557 = vmatpush1.bf16.msra.mxu0 %v502
      %558 = vmatprep.subr.bf16.mxu0 0
      %559 = vmatpush1.bf16.msra.mxu0 %v506
      %560 = vmatprep.subr.bf16.mxu0 0
      %561 = vmatpush1.bf16.msra.mxu0 %v510
      %562 = vmatprep.subr.bf16.mxu0 0
      %563 = vmatpush1.bf16.msra.mxu0 %v513
      %564 = vmatprep.subr.bf16.mxu0 0
      %565 = vmatpush1.bf16.msra.mxu0 %v516
      %566 = vmatprep.subr.bf16.mxu0 0
      %567 = vmatpush1.bf16.msra.mxu0 %v519
      %568 = vmatprep.subr.bf16.mxu0 0
      %569 = vmatpush1.bf16.msra.mxu0 %v522
      %570 = vmatprep.subr.bf16.mxu0 0
      %571 = vmatpush1.bf16.msra.mxu0 0
      %572 = vmatprep.subr.bf16.mxu0 0
      %573 = vmatpush1.bf16.msra.mxu0 0
      %574 = vmatprep.subr.bf16.mxu0 0
      %575 = vmatpush1.bf16.msra.mxu0 0
      %576 = vmatprep.subr.bf16.mxu0 0
      %577 = vmatpush1.bf16.msra.mxu0 0
      %578 = vmatprep.subr.bf16.mxu0 0
      %579 = vmatpush1.bf16.msra.mxu0 0
      %580 = vmatprep.subr.bf16.mxu0 0
      %581 = vmatpush1.bf16.msra.mxu0 0
      %582 = vmatprep.subr.bf16.mxu0 0
      %583 = vmatpush1.bf16.msra.mxu0 0
      %584 = vmatprep.mubr.bf16.mxu0 %v547
      %585 = vmatmul.mubr.bf16.gmra.mrb[0].mxu0 %v540
      %v586 = vpop.f32.mrb[0].mxu0
      %v587 = vadd.f32 0.0, %v586
      %v588 = vpop.f32.mrb[0].mxu0
      %v589 = vpop.f32.mrb[0].mxu0
      %v590 = vadd.f32 0.0, %v589
      %v591 = vpop.f32.mrb[0].mxu0
      %592 = vmatprep.mubr.bf16.mxu0 %v550
      %593 = vmatmul.mubr.bf16.gmra.mrb[0].mxu0 %v542
      %v594 = vpop.f32.mrb[0].mxu0
      %v595 = vadd.f32 0.0, %v594
      %v596 = vpop.f32.mrb[0].mxu0
      %v597 = vpop.f32.mrb[0].mxu0
      %v598 = vadd.f32 0.0, %v597
      %v599 = vpop.f32.mrb[0].mxu0
      %600 = vdwg.mxu0
      %v601 = vmax.f32 %v587, 0.0
      %v602 = vmax.f32 %v590, 0.0
      %v603 = vmax.f32 %v595, 0.0
      %v604 = vmax.f32 %v598, 0.0
      %v605 = vpack.c.bf16 %v602, %v601
      %v606 = vpack.c.bf16 %v604, %v603
      %v609 = vunpack.c.l.b16 %v605
      %v610 = vunpack.c.h.b16 %v605
      %v611 = vunpack.c.l.b16 %v606
      %v612 = vunpack.c.h.b16 %v606
      %v613 = vpack.c.b16 %v609, %v609
      %v614 = vpack.c.b16 %v610, %v610
      %v615 = vpack.c.b16 %v611, %v611
      %v616 = vpack.c.b16 %v612, %v612
      %vm621 = vcmask 158720
      %622 = vst.msk [vmem:[%s197] sm:$0xf] %vm621, %v613
      %623 = vst.msk [vmem:[%s197 + $0x4] sm:$0xf] %vm621, %v614
      %624 = vst.msk [vmem:[%s197 + $0x8] sm:$0xf] %vm621, %v615
      %625 = vst.msk [vmem:[%s197 + $0xc] sm:$0xf] %vm621, %v616
      %p626 = scmp.lt.s32.totalorder %s15, 1
      %s627 = scalar_select %p626, %s15, 1
      %s628 = smul.addr %s627, 4
      %s629 = smul.addr %s628, 4
      %s630 = scalar_lea.vmem %s4, %s629
      // Predicated region
      $region37: #{global_encoder_forward.4} parent=35 // pred_check
        %p631 = pneg %p122
      $region38: #{global_encoder_forward.4} parent=35 // pred_check_branch
        %633 = sbr.rel (%p631) target = $region40
      $region39: #{global_encoder_forward.4} parent=35 // pred_region
        _
      $region40: #{global_encoder_forward.4} parent=35 // pred_fallthru
        _
    $region36: #{global_encoder_forward.4} parent=5 // pred_fallthru
      _
    %p634 = scmp.le.s32.totalorder 2, %s10
    // Predicated region
    $region41: #{global_encoder_forward.4} parent=5 // pred_check
      %p635 = pneg %p634
    $region42: #{global_encoder_forward.4} parent=5 // pred_check_branch
      %637 = sbr.rel (%p635) target = $region44
    $region43: #{global_encoder_forward.4} parent=5 // pred_region
      %s638 = ssub.s32 %s10, 2
      // Predicated region
      $region45: #{global_encoder_forward.4} parent=43 // pred_check
        %p639 = pneg %p128
      $region46: #{global_encoder_forward.4} parent=43 // pred_check_branch
        %641 = sbr.rel (%p639) target = $region48
      $region47: #{global_encoder_forward.4} parent=43 // pred_region
        %p642 = scmp.lt.s32.totalorder %s16, 1
        %s643 = scalar_select %p642, %s16, 1
        %s644 = smul.addr %s643, 4
        %s645 = smul.addr %s644, 4
        %s646 = scalar_lea.vmem %s4, %s645
      $region48: #{global_encoder_forward.4} parent=43 // pred_fallthru
        _
    $region44: #{global_encoder_forward.4} parent=5 // pred_fallthru
      _
  $region6: #{global_encoder_forward.4} parent=0 // loop_footer
    %s14 = sadd.s32 1, %s10
  $region7: #{global_encoder_forward.4} parent=0 // loop_footer_branch
    %9 = sbr.rel target = $region3
  $region8: #{global_encoder_forward.4} parent=0 // loop_exit
    _

// kernel: global_encoder_forward.5
$region0: #{global_encoder_forward.5}
  #allocation0 [shape = 'u32[]', space=smem, size = 0x4, offset = 0x4, fixed_abs, tag = 'smem constant byte address 0x4 - core index']
  #allocation1 [shape = 'u32[144,128]{1,0:T(1,128)}', space=vmem, size = 0x12000, scoped, tag = 'internal scratch']
  %s0 = inlined_call_operand.vmem [shape: bf16[2,128,12], index: 0, kind: input, shape index: {}]
  %s1 = inlined_call_operand.vmem [shape: bf16[32,288], index: 1, kind: input, shape index: {}]
  %s2 = inlined_call_operand.vmem [shape: bf16[64,288], index: 2, kind: input, shape index: {}]
  %s3 = inlined_call_operand.vmem [shape: f32[1,6], index: 3, kind: input, shape index: {}]
  %s4 = inlined_call_operand.vmem [shape: f32[16,64], index: 4, kind: input, shape index: {}]
  %s5 = inlined_call_operand.vmem [shape: f32[16,1], index: 5, kind: input, shape index: {}]
  %s6 = inlined_call_operand.vmem [shape: f32[32,16], index: 6, kind: input, shape index: {}]
  %s7 = inlined_call_operand.vmem [shape: f32[32,1], index: 7, kind: input, shape index: {}]
  %s8 = inlined_call_operand.vmem [shape: f32[2,32,1], index: 8, kind: output, shape index: {}]
  %s9 = sld [smem:[#allocation0]]
  $region65: #{global_encoder_forward.5} parent=0
    _
  %s11 = ssub.s32 1, %s9
  %s12 = scalar_select 0, %s11, %s9
  loop: start=0, step=1, limit=4
  $region2: #{global_encoder_forward.5} parent=0 // loop_pre_header
    _
  $region3: #{global_encoder_forward.5} parent=0 // loop_header
    %s14 = sphi 0, %s18
    %p15 = scmp.ge.s32.totalorder %s14, 4
    %s24 = sphi 0, %s26
    %s27 = sphi 0, %s24
    %s28 = sphi 0, %s27
    %s44 = sphi 0, %s28
    %s48 = sphi 0, %s48
    %s50 = sphi 0, %s48
    %s51 = sphi 0, %s50
    %s65 = sphi 0, %s51
    %s69 = sphi 0, %s69
    %s71 = sphi 0, %s69
    %s72 = sphi 0, %s71
    %s86 = sphi 0, %s72
    %s90 = sphi 0, %s90
    %s92 = sphi 0, %s90
    %s93 = sphi 0, %s92
    %s107 = sphi 0, %s93
    %s111 = sphi 0, %s111
    %s113 = sphi 0, %s111
    %s114 = sphi 0, %s113
    %s128 = sphi 0, %s114
    %s132 = sphi 0, %s132
    %s134 = sphi 0, %s132
    %s135 = sphi 0, %s134
    %s149 = sphi 0, %s135
    %s153 = sphi 0, %s153
    %s155 = sphi 0, %s153
    %s156 = sphi 0, %s155
    %s170 = sphi 0, %s156
    %s174 = sphi 0, %s174
    %s176 = sphi 0, %s174
    %s177 = sphi 0, %s176
    %s191 = sphi 0, %s177
    %s197 = sphi 0, %s199
    %s200 = sphi 0, %s197
    %s201 = sphi 0, %s200
    %s217 = sphi 0, %s201
  $region4: #{global_encoder_forward.5} parent=0 // loop_header_branch
    %17 = sbr.rel (%p15) target = $region8
  $region5: #{global_encoder_forward.5} parent=0 // loop_body
    %s19 = ssub.s32 %s14, 1
    %s20 = ssub.s32 %s14, 2
    %s21 = sadd.s32 %s14, 1
    %s22 = ssub.s32 %s14, %s21
    %p23 = scmp.eq.s32.totalorder %s22, 0
    %s25 = sadd.s32 %s24, 1
    %s26 = scalar_select %p23, %s24, %s25
    %p29 = pneg %p23
    %p30 = scmp.eq.s32.totalorder %s14, 1
    %p31 = por %p29, %p30
    %p32 = scmp.ne.s32.totalorder %s24, %s27
    %p33 = scmp.eq.s32.totalorder %s14, 0
    %p34 = por %p32, %p33
    %p35 = scmp.ne.s32.totalorder %s24, %s27
    %p36 = scmp.eq.s32.totalorder %s19, 1
    %p37 = por %p35, %p36
    %p38 = scmp.ne.s32.totalorder %s27, %s28
    %p39 = scmp.eq.s32.totalorder %s19, 0
    %p40 = por %p38, %p39
    %p41 = scmp.ne.s32.totalorder %s27, %s28
    %p42 = scmp.eq.s32.totalorder %s20, 1
    %p43 = por %p41, %p42
    %p45 = scmp.ne.s32.totalorder %s28, %s44
    %p46 = scmp.eq.s32.totalorder %s20, 0
    %p47 = por %p45, %p46
    %s49 = sadd.s32 %s48, 1
    %p52 = scmp.eq.s32.totalorder %s14, 1
    %p53 = scmp.ne.s32.totalorder %s48, %s50
    %p54 = scmp.eq.s32.totalorder %s14, 0
    %p55 = por %p53, %p54
    %p56 = scmp.ne.s32.totalorder %s48, %s50
    %p57 = scmp.eq.s32.totalorder %s19, 1
    %p58 = por %p56, %p57
    %p59 = scmp.ne.s32.totalorder %s50, %s51
    %p60 = scmp.eq.s32.totalorder %s19, 0
    %p61 = por %p59, %p60
    %p62 = scmp.ne.s32.totalorder %s50, %s51
    %p63 = scmp.eq.s32.totalorder %s20, 1
    %p64 = por %p62, %p63
    %p66 = scmp.ne.s32.totalorder %s51, %s65
    %p67 = scmp.eq.s32.totalorder %s20, 0
    %p68 = por %p66, %p67
    %s70 = sadd.s32 %s69, 1
    %p73 = scmp.eq.s32.totalorder %s14, 1
    %p74 = scmp.ne.s32.totalorder %s69, %s71
    %p75 = scmp.eq.s32.totalorder %s14, 0
    %p76 = por %p74, %p75
    %p77 = scmp.ne.s32.totalorder %s69, %s71
    %p78 = scmp.eq.s32.totalorder %s19, 1
    %p79 = por %p77, %p78
    %p80 = scmp.ne.s32.totalorder %s71, %s72
    %p81 = scmp.eq.s32.totalorder %s19, 0
    %p82 = por %p80, %p81
    %p83 = scmp.ne.s32.totalorder %s71, %s72
    %p84 = scmp.eq.s32.totalorder %s20, 1
    %p85 = por %p83, %p84
    %p87 = scmp.ne.s32.totalorder %s72, %s86
    %p88 = scmp.eq.s32.totalorder %s20, 0
    %p89 = por %p87, %p88
    %s91 = sadd.s32 %s90, 1
    %p94 = scmp.eq.s32.totalorder %s14, 1
    %p95 = scmp.ne.s32.totalorder %s90, %s92
    %p96 = scmp.eq.s32.totalorder %s14, 0
    %p97 = por %p95, %p96
    %p98 = scmp.ne.s32.totalorder %s90, %s92
    %p99 = scmp.eq.s32.totalorder %s19, 1
    %p100 = por %p98, %p99
    %p101 = scmp.ne.s32.totalorder %s92, %s93
    %p102 = scmp.eq.s32.totalorder %s19, 0
    %p103 = por %p101, %p102
    %p104 = scmp.ne.s32.totalorder %s92, %s93
    %p105 = scmp.eq.s32.totalorder %s20, 1
    %p106 = por %p104, %p105
    %p108 = scmp.ne.s32.totalorder %s93, %s107
    %p109 = scmp.eq.s32.totalorder %s20, 0
    %p110 = por %p108, %p109
    %s112 = sadd.s32 %s111, 1
    %p115 = scmp.eq.s32.totalorder %s14, 1
    %p116 = scmp.ne.s32.totalorder %s111, %s113
    %p117 = scmp.eq.s32.totalorder %s14, 0
    %p118 = por %p116, %p117
    %p119 = scmp.ne.s32.totalorder %s111, %s113
    %p120 = scmp.eq.s32.totalorder %s19, 1
    %p121 = por %p119, %p120
    %p122 = scmp.ne.s32.totalorder %s113, %s114
    %p123 = scmp.eq.s32.totalorder %s19, 0
    %p124 = por %p122, %p123
    %p125 = scmp.ne.s32.totalorder %s113, %s114
    %p126 = scmp.eq.s32.totalorder %s20, 1
    %p127 = por %p125, %p126
    %p129 = scmp.ne.s32.totalorder %s114, %s128
    %p130 = scmp.eq.s32.totalorder %s20, 0
    %p131 = por %p129, %p130
    %s133 = sadd.s32 %s132, 1
    %p136 = scmp.eq.s32.totalorder %s14, 1
    %p137 = scmp.ne.s32.totalorder %s132, %s134
    %p138 = scmp.eq.s32.totalorder %s14, 0
    %p139 = por %p137, %p138
    %p140 = scmp.ne.s32.totalorder %s132, %s134
    %p141 = scmp.eq.s32.totalorder %s19, 1
    %p142 = por %p140, %p141
    %p143 = scmp.ne.s32.totalorder %s134, %s135
    %p144 = scmp.eq.s32.totalorder %s19, 0
    %p145 = por %p143, %p144
    %p146 = scmp.ne.s32.totalorder %s134, %s135
    %p147 = scmp.eq.s32.totalorder %s20, 1
    %p148 = por %p146, %p147
    %p150 = scmp.ne.s32.totalorder %s135, %s149
    %p151 = scmp.eq.s32.totalorder %s20, 0
    %p152 = por %p150, %p151
    %s154 = sadd.s32 %s153, 1
    %p157 = scmp.eq.s32.totalorder %s14, 1
    %p158 = scmp.ne.s32.totalorder %s153, %s155
    %p159 = scmp.eq.s32.totalorder %s14, 0
    %p160 = por %p158, %p159
    %p161 = scmp.ne.s32.totalorder %s153, %s155
    %p162 = scmp.eq.s32.totalorder %s19, 1
    %p163 = por %p161, %p162
    %p164 = scmp.ne.s32.totalorder %s155, %s156
    %p165 = scmp.eq.s32.totalorder %s19, 0
    %p166 = por %p164, %p165
    %p167 = scmp.ne.s32.totalorder %s155, %s156
    %p168 = scmp.eq.s32.totalorder %s20, 1
    %p169 = por %p167, %p168
    %p171 = scmp.ne.s32.totalorder %s156, %s170
    %p172 = scmp.eq.s32.totalorder %s20, 0
    %p173 = por %p171, %p172
    %s175 = sadd.s32 %s174, 1
    %p178 = scmp.eq.s32.totalorder %s14, 1
    %p179 = scmp.ne.s32.totalorder %s174, %s176
    %p180 = scmp.eq.s32.totalorder %s14, 0
    %p181 = por %p179, %p180
    %p182 = scmp.ne.s32.totalorder %s174, %s176
    %p183 = scmp.eq.s32.totalorder %s19, 1
    %p184 = por %p182, %p183
    %p185 = scmp.ne.s32.totalorder %s176, %s177
    %p186 = scmp.eq.s32.totalorder %s19, 0
    %p187 = por %p185, %p186
    %p188 = scmp.ne.s32.totalorder %s176, %s177
    %p189 = scmp.eq.s32.totalorder %s20, 1
    %p190 = por %p188, %p189
    %p192 = scmp.ne.s32.totalorder %s177, %s191
    %p193 = scmp.eq.s32.totalorder %s20, 0
    %p194 = por %p192, %p193
    %s195 = ssub.s32 %s14, %s21
    %p196 = scmp.eq.s32.totalorder %s195, 0
    %s198 = sadd.s32 %s197, 1
    %s199 = scalar_select %p196, %s197, %s198
    %p202 = pneg %p196
    %p203 = scmp.eq.s32.totalorder %s14, 1
    %p204 = por %p202, %p203
    %p205 = scmp.ne.s32.totalorder %s197, %s200
    %p206 = scmp.eq.s32.totalorder %s14, 0
    %p207 = por %p205, %p206
    %p208 = scmp.ne.s32.totalorder %s197, %s200
    %p209 = scmp.eq.s32.totalorder %s19, 1
    %p210 = por %p208, %p209
    %p211 = scmp.ne.s32.totalorder %s200, %s201
    %p212 = scmp.eq.s32.totalorder %s19, 0
    %p213 = por %p211, %p212
    %p214 = scmp.ne.s32.totalorder %s200, %s201
    %p215 = scmp.eq.s32.totalorder %s20, 1
    %p216 = por %p214, %p215
    %p218 = scmp.ne.s32.totalorder %s201, %s217
    %p219 = scmp.eq.s32.totalorder %s20, 0
    %p220 = por %p218, %p219
    %p221 = scmp.le.s32.totalorder 1, %s14
    %p222 = scmp.lt.s32.totalorder %s14, 3
    %p223 = pnand %p221, %p222
    %p224 = pneg %p223
    // Predicated region
    $region9: #{global_encoder_forward.5} parent=5 // pred_check
      _
    $region10: #{global_encoder_forward.5} parent=5 // pred_check_branch
      %226 = sbr.rel (%p223) target = $region12
    $region11: #{global_encoder_forward.5} parent=5 // pred_region
      %s227 = ssub.s32 %s14, 1
      // Predicated region
      $region13: #{global_encoder_forward.5} parent=11 // pred_check
        %p228 = pneg %p61
      $region14: #{global_encoder_forward.5} parent=11 // pred_check_branch
        %230 = sbr.rel (%p228) target = $region16
      $region15: #{global_encoder_forward.5} parent=11 // pred_region
        _
      $region16: #{global_encoder_forward.5} parent=11 // pred_fallthru
        _
      // Predicated region
      $region17: #{global_encoder_forward.5} parent=11 // pred_check
        %p231 = pneg %p82
      $region18: #{global_encoder_forward.5} parent=11 // pred_check_branch
        %233 = sbr.rel (%p231) target = $region20
      $region19: #{global_encoder_forward.5} parent=11 // pred_region
        _
      $region20: #{global_encoder_forward.5} parent=11 // pred_fallthru
        _
      // Predicated region
      $region21: #{global_encoder_forward.5} parent=11 // pred_check
        %p234 = pneg %p103
      $region22: #{global_encoder_forward.5} parent=11 // pred_check_branch
        %236 = sbr.rel (%p234) target = $region24
      $region23: #{global_encoder_forward.5} parent=11 // pred_region
        _
      $region24: #{global_encoder_forward.5} parent=11 // pred_fallthru
        _
      // Predicated region
      $region25: #{global_encoder_forward.5} parent=11 // pred_check
        %p237 = pneg %p124
      $region26: #{global_encoder_forward.5} parent=11 // pred_check_branch
        %239 = sbr.rel (%p237) target = $region28
      $region27: #{global_encoder_forward.5} parent=11 // pred_region
        _
      $region28: #{global_encoder_forward.5} parent=11 // pred_fallthru
        _
      // Predicated region
      $region29: #{global_encoder_forward.5} parent=11 // pred_check
        %p240 = pneg %p145
      $region30: #{global_encoder_forward.5} parent=11 // pred_check_branch
        %242 = sbr.rel (%p240) target = $region32
      $region31: #{global_encoder_forward.5} parent=11 // pred_region
        _
      $region32: #{global_encoder_forward.5} parent=11 // pred_fallthru
        _
      // Predicated region
      $region33: #{global_encoder_forward.5} parent=11 // pred_check
        %p243 = pneg %p166
      $region34: #{global_encoder_forward.5} parent=11 // pred_check_branch
        %245 = sbr.rel (%p243) target = $region36
      $region35: #{global_encoder_forward.5} parent=11 // pred_region
        _
      $region36: #{global_encoder_forward.5} parent=11 // pred_fallthru
        _
      // Predicated region
      $region37: #{global_encoder_forward.5} parent=11 // pred_check
        %p246 = pneg %p187
      $region38: #{global_encoder_forward.5} parent=11 // pred_check_branch
        %248 = sbr.rel (%p246) target = $region40
      $region39: #{global_encoder_forward.5} parent=11 // pred_region
        _
      $region40: #{global_encoder_forward.5} parent=11 // pred_fallthru
        _
    $region12: #{global_encoder_forward.5} parent=5 // pred_fallthru
      _
    %p249 = scmp.lt.s32.totalorder %s14, 2
    // Predicated region
    $region41: #{global_encoder_forward.5} parent=5 // pred_check
      %p250 = pneg %p249
    $region42: #{global_encoder_forward.5} parent=5 // pred_check_branch
      %252 = sbr.rel (%p250) target = $region44
    $region43: #{global_encoder_forward.5} parent=5 // pred_region
      // Predicated region
      $region45: #{global_encoder_forward.5} parent=43 // pred_check
        %p253 = pneg %p34
      $region46: #{global_encoder_forward.5} parent=43 // pred_check_branch
        %255 = sbr.rel (%p253) target = $region48
      $region47: #{global_encoder_forward.5} parent=43 // pred_region
        %p256 = scmp.lt.s32.totalorder %s14, 1
        %s257 = scalar_select %p256, %s14, 1
        %s258 = smul.addr %s257, 16
        %s259 = smul.addr %s258, 4
        %s260 = scalar_lea.vmem %s0, %s259
      $region48: #{global_encoder_forward.5} parent=43 // pred_fallthru
        _
    $region44: #{global_encoder_forward.5} parent=5 // pred_fallthru
      _
    %p261 = scmp.le.s32.totalorder 1, %s14
    %p262 = scmp.lt.s32.totalorder %s14, 3
    %p263 = pnand %p261, %p262
    %p264 = pneg %p263
    // Predicated region
    $region49: #{global_encoder_forward.5} parent=5 // pred_check
      _
    $region50: #{global_encoder_forward.5} parent=5 // pred_check_branch
      %266 = sbr.rel (%p263) target = $region52
    $region51: #{global_encoder_forward.5} parent=5 // pred_region
      %s267 = ssub.s32 %s14, 1
      %p268 = scmp.lt.s32.totalorder %s19, 1
      %s269 = scalar_select %p268, %s19, 1
      %s270 = smul.addr %s269, 16
      %s271 = smul.addr %s270, 4
      %s272 = scalar_lea.vmem %s0, %s271
      %p273 = pneg %p40
      %p274 = pneg %p37
      %p275 = pneg %p61
      %p276 = pneg %p58
      %p277 = pneg %p82
      %p278 = pneg %p79
      %p279 = pneg %p103
      %p280 = pneg %p100
      %p281 = pneg %p124
      %p282 = pneg %p121
      %p283 = pneg %p145
      %p284 = pneg %p142
      %p285 = pneg %p166
      %p286 = pneg %p163
      %p287 = pneg %p187
      %p288 = pneg %p184
      %p289 = pneg %p213
      %p290 = pneg %p210
      %p291 = scmp.lt.s32.totalorder %s19, 1
      %s292 = scalar_select %p291, %s19, 1
      %s293 = smul.addr %s292, 4
      %s294 = smul.addr %s293, 8
      %s295 = scalar_lea.vmem %s8, %s294
      %p296 = scmp.lt.s32.totalorder %s19, 1
      %s297 = scalar_select %p296, %s19, 1
      %s298 = smul.addr %s297, 16
      %s299 = smul.addr %s298, 4
      %s300 = scalar_lea.vmem %s0, %s299
      %p301 = scmp.lt.s32.totalorder %s19, 1
      %s302 = scalar_select %p301, %s19, 1
      %s303 = smul.addr %s302, 4
      %s304 = smul.addr %s303, 8
      %s305 = scalar_lea.vmem %s8, %s304
      %v307 = vld [vmem:[%s300] sm:$0xf]
      %v308 = vld [vmem:[%s300 + $0x4] sm:$0xf]
      %v309 = vld [vmem:[%s300 + $0x8] sm:$0xf]
      %v310 = vld [vmem:[%s300 + $0xc] sm:$0xf]
      %v311 = vld [vmem:[%s300 + $0x10] sm:$0xf]
      %v312 = vld [vmem:[%s300 + $0x14] sm:$0xf]
      %v313 = vld [vmem:[%s300 + $0x18] sm:$0xf]
      %v314 = vld [vmem:[%s300 + $0x1c] sm:$0xf]
      %v315 = vld [vmem:[%s300 + $0x20] sm:$0xf]
      %v316 = vld [vmem:[%s300 + $0x24] sm:$0xf]
      %v317 = vld [vmem:[%s300 + $0x28] sm:$0xf]
      %v318 = vld [vmem:[%s300 + $0x2c] sm:$0xf]
      %v319 = vld [vmem:[%s300 + $0x30] sm:$0xf]
      %v320 = vld [vmem:[%s300 + $0x34] sm:$0xf]
      %v321 = vld [vmem:[%s300 + $0x38] sm:$0xf]
      %v322 = vld [vmem:[%s300 + $0x3c] sm:$0xf]
      %v323 = vld [vmem:[%s3] sm:$0x1]
      %v328 = vunpack.c.l.b16 %v307
      %v329 = vunpack.c.l.b16 %v308
      %v330 = vunpack.c.l.b16 %v309
      %v331 = vunpack.c.l.b16 %v310
      %v332 = vpack.c.b16 %v329, %v328
      %v333 = vpack.c.b16 %v331, %v330
      %v340 = vunpack.c.l.b16 %v311
      %v341 = vunpack.c.l.b16 %v312
      %v342 = vunpack.c.l.b16 %v313
      %v343 = vunpack.c.l.b16 %v314
      %v344 = vpack.c.b16 %v341, %v340
      %v345 = vpack.c.b16 %v343, %v342
      %348 = vrot.lane.b32.xlu0 %v332, 127
      %v349 = vpop.permute.xlu0 %348
      %350 = vrot.lane.b32.xlu0 %v333, 127
      %v351 = vpop.permute.xlu0 %350
      %v358 = vunpack.c.l.b16 %v315
      %v359 = vunpack.c.l.b16 %v316
      %v360 = vunpack.c.l.b16 %v317
      %v361 = vunpack.c.l.b16 %v318
      %v362 = vpack.c.b16 %v359, %v358
      %v363 = vpack.c.b16 %v361, %v360
      %v370 = vunpack.c.l.b16 %v319
      %v371 = vunpack.c.l.b16 %v320
      %v372 = vunpack.c.l.b16 %v321
      %v373 = vunpack.c.l.b16 %v322
      %v374 = vpack.c.b16 %v371, %v370
      %v375 = vpack.c.b16 %v373, %v372
      %378 = vrot.lane.b32.xlu0 %v362, 127
      %v379 = vpop.permute.xlu0 %378
      %380 = vrot.lane.b32.xlu0 %v363, 127
      %v381 = vpop.permute.xlu0 %380
      %384 = vrot.lane.b32.xlu0 %v332, 125
      %v385 = vpop.permute.xlu0 %384
      %386 = vrot.lane.b32.xlu0 %v333, 125
      %v387 = vpop.permute.xlu0 %386
      %390 = vrot.lane.b32.xlu0 %v344, 125
      %v391 = vpop.permute.xlu0 %390
      %392 = vrot.lane.b32.xlu0 %v345, 125
      %v393 = vpop.permute.xlu0 %392
      %396 = vrot.lane.b32.xlu0 %v332, 124
      %v397 = vpop.permute.xlu0 %396
      %398 = vrot.lane.b32.xlu0 %v333, 124
      %v399 = vpop.permute.xlu0 %398
      %v402 = vld [vmem:[%s1] sm:$0xff]
      %v403 = vld [vmem:[%s1 + $0x8] sm:$0xf]
      %v404 = vld [vmem:[%s1 + $0xc] sm:$0xff]
      %v405 = vld [vmem:[%s1 + $0x14] sm:$0xf]
      %v406 = vld [vmem:[%s1 + $0x18] sm:$0xff]
      %v407 = vld [vmem:[%s1 + $0x20] sm:$0xf]
      %v408 = vld [vmem:[%s1 + $0x24] sm:$0xff]
      %v409 = vld [vmem:[%s1 + $0x2c] sm:$0xf]
      %v418 = vunpack.c.l.b16 %v402
      %v419 = vunpack.c.h.b16 %v402
      %v420 = vunpack.c.l.b16 %v403
      %v421 = vunpack.c.l.b16 %v404
      %v422 = vunpack.c.h.b16 %v404
      %v423 = vunpack.c.l.b16 %v405
      %v424 = vunpack.c.l.b16 %v406
      %v425 = vunpack.c.h.b16 %v406
      %v426 = vunpack.c.l.b16 %v407
      %v427 = vunpack.c.l.b16 %v408
      %v428 = vunpack.c.h.b16 %v408
      %v429 = vunpack.c.l.b16 %v409
      %v430 = vpack.c.b16 %v421, %v418
      %v431 = vpack.c.b16 %v422, %v419
      %v432 = vpack.c.b16 %v423, %v420
      %v433 = vpack.c.b16 %v427, %v424
      %v434 = vpack.c.b16 %v428, %v425
      %v435 = vpack.c.b16 %v429, %v426
      %vm440 = vcmask 261120
      %v442 = vsel %vm440, %v432, 0
      %v445 = vsel %vm440, %v435, 0
      %447 = vmatprep.subr.bf16.mxu0 0
      %448 = vmatpush1.bf16.msra.mxu0 %v332
      %449 = vmatprep.subr.bf16.mxu0 0
      %450 = vmatpush1.bf16.msra.mxu0 %v333
      %451 = vmatprep.subr.bf16.mxu0 0
      %452 = vmatpush1.bf16.msra.mxu0 %v344
      %453 = vmatprep.subr.bf16.mxu0 0
      %454 = vmatpush1.bf16.msra.mxu0 %v345
      %455 = vmatprep.subr.bf16.mxu0 0
      %456 = vmatpush1.bf16.msra.mxu0 %v349
      %457 = vmatprep.subr.bf16.mxu0 0
      %458 = vmatpush1.bf16.msra.mxu0 %v351
      %459 = vmatprep.subr.bf16.mxu0 0
      %460 = vmatpush1.bf16.msra.mxu0 %v362
      %461 = vmatprep.subr.bf16.mxu0 0
      %462 = vmatpush1.bf16.msra.mxu0 %v363
      %463 = vmatprep.subr.bf16.mxu0 0
      %464 = vmatpush1.bf16.msra.mxu0 %v374
      %465 = vmatprep.subr.bf16.mxu0 0
      %466 = vmatpush1.bf16.msra.mxu0 %v375
      %467 = vmatprep.subr.bf16.mxu0 0
      %468 = vmatpush1.bf16.msra.mxu0 %v379
      %469 = vmatprep.subr.bf16.mxu0 0
      %470 = vmatpush1.bf16.msra.mxu0 %v381
      %471 = vmatprep.subr.bf16.mxu0 0
      %472 = vmatpush1.bf16.msra.mxu0 %v385
      %473 = vmatprep.subr.bf16.mxu0 0
      %474 = vmatpush1.bf16.msra.mxu0 %v387
      %475 = vmatprep.subr.bf16.mxu0 0
      %476 = vmatpush1.bf16.msra.mxu0 %v391
      %477 = vmatprep.subr.bf16.mxu0 0
      %478 = vmatpush1.bf16.msra.mxu0 %v393
      %479 = vmatprep.mubr.bf16.mxu0 %v431
      %480 = vmatmul.mubr.bf16.gmra.mrb[0].mxu0 %v430
      %v481 = vpop.f32.mrb[0].mxu0
      %v482 = vadd.f32 0.0, %v481
      %v483 = vpop.f32.mrb[0].mxu0
      %v484 = vpop.f32.mrb[0].mxu0
      %v485 = vadd.f32 0.0, %v484
      %v486 = vpop.f32.mrb[0].mxu0
      %487 = vmatprep.mubr.bf16.mxu0 %v434
      %488 = vmatmul.mubr.bf16.gmra.mrb[0].mxu0 %v433
      %v489 = vpop.f32.mrb[0].mxu0
      %v490 = vadd.f32 0.0, %v489
      %v491 = vpop.f32.mrb[0].mxu0
      %v492 = vpop.f32.mrb[0].mxu0
      %v493 = vadd.f32 0.0, %v492
      %v494 = vpop.f32.mrb[0].mxu0
      %495 = vdwg.mxu0
      %496 = vmatprep.subr.bf16.mxu0 0
      %497 = vmatpush1.bf16.msra.mxu0 %v397
      %498 = vmatprep.subr.bf16.mxu0 0
      %499 = vmatpush1.bf16.msra.mxu0 %v399
      %500 = vmatprep.subr.bf16.mxu0 0
      %501 = vmatpush1.bf16.msra.mxu0 0
      %502 = vmatprep.subr.bf16.mxu0 0
      %503 = vmatpush1.bf16.msra.mxu0 0
      %504 = vmatprep.subr.bf16.mxu0 0
      %505 = vmatpush1.bf16.msra.mxu0 0
      %506 = vmatprep.subr.bf16.mxu0 0
      %507 = vmatpush1.bf16.msra.mxu0 0
      %508 = vmatprep.subr.bf16.mxu0 0
      %509 = vmatpush1.bf16.msra.mxu0 0
      %510 = vmatprep.subr.bf16.mxu0 0
      %511 = vmatpush1.bf16.msra.mxu0 0
      %512 = vmatprep.subr.bf16.mxu0 0
      %513 = vmatpush1.bf16.msra.mxu0 0
      %514 = vmatprep.subr.bf16.mxu0 0
      %515 = vmatpush1.bf16.msra.mxu0 0
      %516 = vmatprep.subr.bf16.mxu0 0
      %517 = vmatpush1.bf16.msra.mxu0 0
      %518 = vmatprep.subr.bf16.mxu0 0
      %519 = vmatpush1.bf16.msra.mxu0 0
      %520 = vmatprep.subr.bf16.mxu0 0
      %521 = vmatpush1.bf16.msra.mxu0 0
      %522 = vmatprep.subr.bf16.mxu0 0
      %523 = vmatpush1.bf16.msra.mxu0 0
      %524 = vmatprep.subr.bf16.mxu0 0
      %525 = vmatpush1.bf16.msra.mxu0 0
      %526 = vmatprep.subr.bf16.mxu0 0
      %527 = vmatpush1.bf16.msra.mxu0 0
      %528 = vmatprep.mubr.bf16.mxu0 0
      %529 = vmatmul.mubr.bf16.gmra.mrb[0].mxu0 %v442
      %v530 = vpop.f32.mrb[0].mxu0
      %v531 = vadd.f32 %v482, %v530
      %v532 = vpop.f32.mrb[0].mxu0
      %v533 = vpop.f32.mrb[0].mxu0
      %v534 = vadd.f32 %v485, %v533
      %v535 = vpop.f32.mrb[0].mxu0
      %536 = vmatprep.mubr.bf16.mxu0 0
      %537 = vmatmul.mubr.bf16.gmra.mrb[0].mxu0 %v445
      %v538 = vpop.f32.mrb[0].mxu0
      %v539 = vadd.f32 %v490, %v538
      %v540 = vpop.f32.mrb[0].mxu0
      %v541 = vpop.f32.mrb[0].mxu0
      %v542 = vadd.f32 %v493, %v541
      %v543 = vpop.f32.mrb[0].mxu0
      %544 = vdwg.mxu0
      %v545 = vmax.f32 %v531, 0.0
      %v546 = vmax.f32 %v534, 0.0
      %v547 = vmax.f32 %v539, 0.0
      %v548 = vmax.f32 %v542, 0.0
      %v550 = vlaneseq
      %v551 = vshrl.u32 %v550, 7
      %v552 = vsub.s32 0, %v551
      %v553 = vrot.slane %v323, %v552
      %v555 = vmul.f32 %v545, %v553
      %v556 = vmul.f32 %v546, %v553
      %v557 = vmul.f32 %v547, %v553
      %v558 = vmul.f32 %v548, %v553
      %v559 = vpack.c.bf16 %v556, %v555
      %v560 = vpack.c.bf16 %v558, %v557
      %563 = vrot.lane.b32.xlu0 %v559, 4
      %v564 = vpop.permute.xlu0 %563
      %565 = vrot.lane.b32.xlu0 %v560, 4
      %v566 = vpop.permute.xlu0 %565
      %vm567 = vcmask 31744
      %v570 = vsel %vm567, 0, %v564
      %v572 = vsel %vm567, 0, %v566
      %573 = vrot.lane.b32.xlu0 %v344, 127
      %v574 = vpop.permute.xlu0 %573
      %575 = vrot.lane.b32.xlu0 %v345, 127
      %v576 = vpop.permute.xlu0 %575
      %579 = vrot.lane.b32.xlu0 %v374, 127
      %v580 = vpop.permute.xlu0 %579
      %581 = vrot.lane.b32.xlu0 %v375, 127
      %v582 = vpop.permute.xlu0 %581
      %585 = vrot.lane.b32.xlu0 %v344, 124
      %v586 = vpop.permute.xlu0 %585
      %587 = vrot.lane.b32.xlu0 %v345, 124
      %v588 = vpop.permute.xlu0 %587
      %591 = vmatprep.subr.bf16.mxu0 0
      %592 = vmatpush1.bf16.msra.mxu0 %v344
      %593 = vmatprep.subr.bf16.mxu0 0
      %594 = vmatpush1.bf16.msra.mxu0 %v345
      %595 = vmatprep.subr.bf16.mxu0 0
      %596 = vmatpush1.bf16.msra.mxu0 %v349
      %597 = vmatprep.subr.bf16.mxu0 0
      %598 = vmatpush1.bf16.msra.mxu0 %v351
      %599 = vmatprep.subr.bf16.mxu0 0
      %600 = vmatpush1.bf16.msra.mxu0 %v574
      %601 = vmatprep.subr.bf16.mxu0 0
      %602 = vmatpush1.bf16.msra.mxu0 %v576
      %603 = vmatprep.subr.bf16.mxu0 0
      %604 = vmatpush1.bf16.msra.mxu0 %v374
      %605 = vmatprep.subr.bf16.mxu0 0
      %606 = vmatpush1.bf16.msra.mxu0 %v375
      %607 = vmatprep.subr.bf16.mxu0 0
      %608 = vmatpush1.bf16.msra.mxu0 %v379
      %609 = vmatprep.subr.bf16.mxu0 0
      %610 = vmatpush1.bf16.msra.mxu0 %v381
      %611 = vmatprep.subr.bf16.mxu0 0
      %612 = vmatpush1.bf16.msra.mxu0 %v580
      %613 = vmatprep.subr.bf16.mxu0 0
      %614 = vmatpush1.bf16.msra.mxu0 %v582
      %615 = vmatprep.subr.bf16.mxu0 0
      %616 = vmatpush1.bf16.msra.mxu0 %v391
      %617 = vmatprep.subr.bf16.mxu0 0
      %618 = vmatpush1.bf16.msra.mxu0 %v393
      %619 = vmatprep.subr.bf16.mxu0 0
      %620 = vmatpush1.bf16.msra.mxu0 %v397
      %621 = vmatprep.subr.bf16.mxu0 0
      %622 = vmatpush1.bf16.msra.mxu0 %v399
      %623 = vmatprep.mubr.bf16.mxu0 %v431
      %624 = vmatmul.mubr.bf16.gmra.mrb[0].mxu0 %v430
      %v625 = vpop.f32.mrb[0].mxu0
      %v626 = vadd.f32 0.0, %v625
      %v627 = vpop.f32.mrb[0].mxu0
      %v628 = vpop.f32.mrb[0].mxu0
      %v629 = vadd.f32 0.0, %v628
      %v630 = vpop.f32.mrb[0].mxu0
      %631 = vmatprep.mubr.bf16.mxu0 %v434
      %632 = vmatmul.mubr.bf16.gmra.mrb[0].mxu0 %v433
      %v633 = vpop.f32.mrb[0].mxu0
      %v634 = vadd.f32 0.0, %v633
      %v635 = vpop.f32.mrb[0].mxu0
      %v636 = vpop.f32.mrb[0].mxu0
      %v637 = vadd.f32 0.0, %v636
      %v638 = vpop.f32.mrb[0].mxu0
      %639 = vdwg.mxu0
      %640 = vmatprep.subr.bf16.mxu0 0
      %641 = vmatpush1.bf16.msra.mxu0 %v586
      %642 = vmatprep.subr.bf16.mxu0 0
      %643 = vmatpush1.bf16.msra.mxu0 %v588
      %644 = vmatprep.subr.bf16.mxu0 0
      %645 = vmatpush1.bf16.msra.mxu0 0
      %646 = vmatprep.subr.bf16.mxu0 0
      %647 = vmatpush1.bf16.msra.mxu0 0
      %648 = vmatprep.subr.bf16.mxu0 0
      %649 = vmatpush1.bf16.msra.mxu0 0
      %650 = vmatprep.subr.bf16.mxu0 0
      %651 = vmatpush1.bf16.msra.mxu0 0
      %652 = vmatprep.subr.bf16.mxu0 0
      %653 = vmatpush1.bf16.msra.mxu0 0
      %654 = vmatprep.subr.bf16.mxu0 0
      %655 = vmatpush1.bf16.msra.mxu0 0
      %656 = vmatprep.subr.bf16.mxu0 0
      %657 = vmatpush1.bf16.msra.mxu0 0
      %658 = vmatprep.subr.bf16.mxu0 0
      %659 = vmatpush1.bf16.msra.mxu0 0
      %660 = vmatprep.subr.bf16.mxu0 0
      %661 = vmatpush1.bf16.msra.mxu0 0
      %662 = vmatprep.subr.bf16.mxu0 0
      %663 = vmatpush1.bf16.msra.mxu0 0
      %664 = vmatprep.subr.bf16.mxu0 0
      %665 = vmatpush1.bf16.msra.mxu0 0
      %666 = vmatprep.subr.bf16.mxu0 0
      %667 = vmatpush1.bf16.msra.mxu0 0
      %668 = vmatprep.subr.bf16.mxu0 0
      %669 = vmatpush1.bf16.msra.mxu0 0
      %670 = vmatprep.subr.bf16.mxu0 0
      %671 = vmatpush1.bf16.msra.mxu0 0
      %672 = vmatprep.mubr.bf16.mxu0 0
      %673 = vmatmul.mubr.bf16.gmra.mrb[0].mxu0 %v442
      %v674 = vpop.f32.mrb[0].mxu0
      %v675 = vadd.f32 %v626, %v674
      %v676 = vpop.f32.mrb[0].mxu0
      %v677 = vpop.f32.mrb[0].mxu0
      %v678 = vadd.f32 %v629, %v677
      %v679 = vpop.f32.mrb[0].mxu0
      %680 = vmatprep.mubr.bf16.mxu0 0
      %681 = vmatmul.mubr.bf16.gmra.mrb[0].mxu0 %v445
      %v682 = vpop.f32.mrb[0].mxu0
      %v683 = vadd.f32 %v634, %v682
      %v684 = vpop.f32.mrb[0].mxu0
      %v685 = vpop.f32.mrb[0].mxu0
      %v686 = vadd.f32 %v637, %v685
      %v687 = vpop.f32.mrb[0].mxu0
      %688 = vdwg.mxu0
      %v689 = vmax.f32 %v675, 0.0
      %v690 = vmax.f32 %v678, 0.0
      %v691 = vmax.f32 %v683, 0.0
      %v692 = vmax.f32 %v686, 0.0
      %v693 = vmul.f32 %v689, %v553
      %v694 = vmul.f32 %v690, %v553
      %v695 = vmul.f32 %v691, %v553
      %v696 = vmul.f32 %v692, %v553
      %v697 = vpack.c.bf16 %v694, %v693
      %v698 = vpack.c.bf16 %v696, %v695
      %701 = vrot.lane.b32.xlu0 %v697, 4
      %v702 = vpop.permute.xlu0 %701
      %703 = vrot.lane.b32.xlu0 %v698, 4
      %v704 = vpop.permute.xlu0 %703
      %v706 = vsel %vm567, 0, %v702
      %v708 = vsel %vm567, 0, %v704
      %709 = vrot.lane.b32.xlu0 %v362, 125
      %v710 = vpop.permute.xlu0 %709
      %711 = vrot.lane.b32.xlu0 %v363, 125
      %v712 = vpop.permute.xlu0 %711
      %715 = vrot.lane.b32.xlu0 %v374, 125
      %v716 = vpop.permute.xlu0 %715
      %717 = vrot.lane.b32.xlu0 %v375, 125
      %v718 = vpop.permute.xlu0 %717
      %721 = vrot.lane.b32.xlu0 %v362, 124
      %v722 = vpop.permute.xlu0 %721
      %723 = vrot.lane.b32.xlu0 %v363, 124
      %v724 = vpop.permute.xlu0 %723
      %727 = vmatprep.subr.bf16.mxu0 0
      %728 = vmatpush1.bf16.msra.mxu0 %v362
      %729 = vmatprep.subr.bf16.mxu0 0
      %730 = vmatpush1.bf16.msra.mxu0 %v363
      %731 = vmatprep.subr.bf16.mxu0 0
      %732 = vmatpush1.bf16.msra.mxu0 %v374
      %733 = vmatprep.subr.bf16.mxu0 0
      %734 = vmatpush1.bf16.msra.mxu0 %v375
      %735 = vmatprep.subr.bf16.mxu0 0
      %736 = vmatpush1.bf16.msra.mxu0 %v379
      %737 = vmatprep.subr.bf16.mxu0 0
      %738 = vmatpush1.bf16.msra.mxu0 %v381
      %739 = vmatprep.subr.bf16.mxu0 0
      %740 = vmatpush1.bf16.msra.mxu0 %v385
      %741 = vmatprep.subr.bf16.mxu0 0
      %742 = vmatpush1.bf16.msra.mxu0 %v387
      %743 = vmatprep.subr.bf16.mxu0 0
      %744 = vmatpush1.bf16.msra.mxu0 %v391
      %745 = vmatprep.subr.bf16.mxu0 0
      %746 = vmatpush1.bf16.msra.mxu0 %v393
      %747 = vmatprep.subr.bf16.mxu0 0
      %748 = vmatpush1.bf16.msra.mxu0 %v397
      %749 = vmatprep.subr.bf16.mxu0 0
      %750 = vmatpush1.bf16.msra.mxu0 %v399
      %751 = vmatprep.subr.bf16.mxu0 0
      %752 = vmatpush1.bf16.msra.mxu0 %v710
      %753 = vmatprep.subr.bf16.mxu0 0
      %754 = vmatpush1.bf16.msra.mxu0 %v712
      %755 = vmatprep.subr.bf16.mxu0 0
      %756 = vmatpush1.bf16.msra.mxu0 %v716
      %757 = vmatprep.subr.bf16.mxu0 0
      %758 = vmatpush1.bf16.msra.mxu0 %v718
      %759 = vmatprep.mubr.bf16.mxu0 %v431
      %760 = vmatmul.mubr.bf16.gmra.mrb[0].mxu0 %v430
      %v761 = vpop.f32.mrb[0].mxu0
      %v762 = vadd.f32 0.0, %v761
      %v763 = vpop.f32.mrb[0].mxu0
      %v764 = vpop.f32.mrb[0].mxu0
      %v765 = vadd.f32 0.0, %v764
      %v766 = vpop.f32.mrb[0].mxu0
      %767 = vmatprep.mubr.bf16.mxu0 %v434
      %768 = vmatmul.mubr.bf16.gmra.mrb[0].mxu0 %v433
      %v769 = vpop.f32.mrb[0].mxu0
      %v770 = vadd.f32 0.0, %v769
      %v771 = vpop.f32.mrb[0].mxu0
      %v772 = vpop.f32.mrb[0].mxu0
      %v773 = vadd.f32 0.0, %v772
      %v774 = vpop.f32.mrb[0].mxu0
      %775 = vdwg.mxu0
      %776 = vmatprep.subr.bf16.mxu0 0
      %777 = vmatpush1.bf16.msra.mxu0 %v722
      %778 = vmatprep.subr.bf16.mxu0 0
      %779 = vmatpush1.bf16.msra.mxu0 %v724
      %780 = vmatprep.subr.bf16.mxu0 0
      %781 = vmatpush1.bf16.msra.mxu0 0
      %782 = vmatprep.subr.bf16.mxu0 0
      %783 = vmatpush1.bf16.msra.mxu0 0
      %784 = vmatprep.subr.bf16.mxu0 0
      %785 = vmatpush1.bf16.msra.mxu0 0
      %786 = vmatprep.subr.bf16.mxu0 0
      %787 = vmatpush1.bf16.msra.mxu0 0
      %788 = vmatprep.subr.bf16.mxu0 0
      %789 = vmatpush1.bf16.msra.mxu0 0
      %790 = vmatprep.subr.bf16.mxu0 0
      %791 = vmatpush1.bf16.msra.mxu0 0
      %792 = vmatprep.subr.bf16.mxu0 0
      %793 = vmatpush1.bf16.msra.mxu0 0
      %794 = vmatprep.subr.bf16.mxu0 0
      %795 = vmatpush1.bf16.msra.mxu0 0
      %796 = vmatprep.subr.bf16.mxu0 0
      %797 = vmatpush1.bf16.msra.mxu0 0
      %798 = vmatprep.subr.bf16.mxu0 0
      %799 = vmatpush1.bf16.msra.mxu0 0
      %800 = vmatprep.subr.bf16.mxu0 0
      %801 = vmatpush1.bf16.msra.mxu0 0
      %802 = vmatprep.subr.bf16.mxu0 0
      %803 = vmatpush1.bf16.msra.mxu0 0
      %804 = vmatprep.subr.bf16.mxu0 0
      %805 = vmatpush1.bf16.msra.mxu0 0
      %806 = vmatprep.subr.bf16.mxu0 0
      %807 = vmatpush1.bf16.msra.mxu0 0
      %808 = vmatprep.mubr.bf16.mxu0 0
      %809 = vmatmul.mubr.bf16.gmra.mrb[0].mxu0 %v442
      %v810 = vpop.f32.mrb[0].mxu0
      %v811 = vadd.f32 %v762, %v810
      %v812 = vpop.f32.mrb[0].mxu0
      %v813 = vpop.f32.mrb[0].mxu0
      %v814 = vadd.f32 %v765, %v813
      %v815 = vpop.f32.mrb[0].mxu0
      %816 = vmatprep.mubr.bf16.mxu0 0
      %817 = vmatmul.mubr.bf16.gmra.mrb[0].mxu0 %v445
      %v818 = vpop.f32.mrb[0].mxu0
      %v819 = vadd.f32 %v770, %v818
      %v820 = vpop.f32.mrb[0].mxu0
      %v821 = vpop.f32.mrb[0].mxu0
      %v822 = vadd.f32 %v773, %v821
      %v823 = vpop.f32.mrb[0].mxu0
      %824 = vdwg.mxu0
      %v825 = vmax.f32 %v811, 0.0
      %v826 = vmax.f32 %v814, 0.0
      %v827 = vmax.f32 %v819, 0.0
      %v828 = vmax.f32 %v822, 0.0
      %v829 = vmul.f32 %v825, %v553
      %v830 = vmul.f32 %v826, %v553
      %v831 = vmul.f32 %v827, %v553
      %v832 = vmul.f32 %v828, %v553
      %v833 = vpack.c.bf16 %v830, %v829
      %v834 = vpack.c.bf16 %v832, %v831
      %837 = vrot.lane.b32.xlu0 %v833, 4
      %v838 = vpop.permute.xlu0 %837
      %839 = vrot.lane.b32.xlu0 %v834, 4
      %v840 = vpop.permute.xlu0 %839
      %v842 = vsel %vm567, 0, %v838
      %v844 = vsel %vm567, 0, %v840
      %845 = vrot.lane.b32.xlu0 %v374, 124
      %v846 = vpop.permute.xlu0 %845
      %847 = vrot.lane.b32.xlu0 %v375, 124
      %v848 = vpop.permute.xlu0 %847
      %851 = vmatprep.subr.bf16.mxu0 0
      %852 = vmatpush1.bf16.msra.mxu0 %v374
      %853 = vmatprep.subr.bf16.mxu0 0
      %854 = vmatpush1.bf16.msra.mxu0 %v375
      %855 = vmatprep.subr.bf16.mxu0 0
      %856 = vmatpush1.bf16.msra.mxu0 %v379
      %857 = vmatprep.subr.bf16.mxu0 0
      %858 = vmatpush1.bf16.msra.mxu0 %v381
      %859 = vmatprep.subr.bf16.mxu0 0
      %860 = vmatpush1.bf16.msra.mxu0 %v580
      %861 = vmatprep.subr.bf16.mxu0 0
      %862 = vmatpush1.bf16.msra.mxu0 %v582
      %863 = vmatprep.subr.bf16.mxu0 0
      %864 = vmatpush1.bf16.msra.mxu0 %v391
      %865 = vmatprep.subr.bf16.mxu0 0
      %866 = vmatpush1.bf16.msra.mxu0 %v393
      %867 = vmatprep.subr.bf16.mxu0 0
      %868 = vmatpush1.bf16.msra.mxu0 %v397
      %869 = vmatprep.subr.bf16.mxu0 0
      %870 = vmatpush1.bf16.msra.mxu0 %v399
      %871 = vmatprep.subr.bf16.mxu0 0
      %872 = vmatpush1.bf16.msra.mxu0 %v586
      %873 = vmatprep.subr.bf16.mxu0 0
      %874 = vmatpush1.bf16.msra.mxu0 %v588
      %875 = vmatprep.subr.bf16.mxu0 0
      %876 = vmatpush1.bf16.msra.mxu0 %v716
      %877 = vmatprep.subr.bf16.mxu0 0
      %878 = vmatpush1.bf16.msra.mxu0 %v718
      %879 = vmatprep.subr.bf16.mxu0 0
      %880 = vmatpush1.bf16.msra.mxu0 %v722
      %881 = vmatprep.subr.bf16.mxu0 0
      %882 = vmatpush1.bf16.msra.mxu0 %v724
      %883 = vmatprep.mubr.bf16.mxu0 %v431
      %884 = vmatmul.mubr.bf16.gmra.mrb[0].mxu0 %v430
      %v885 = vpop.f32.mrb[0].mxu0
      %v886 = vadd.f32 0.0, %v885
      %v887 = vpop.f32.mrb[0].mxu0
      %v888 = vpop.f32.mrb[0].mxu0
      %v889 = vadd.f32 0.0, %v888
      %v890 = vpop.f32.mrb[0].mxu0
      %891 = vmatprep.mubr.bf16.mxu0 %v434
      %892 = vmatmul.mubr.bf16.gmra.mrb[0].mxu0 %v433
      %v893 = vpop.f32.mrb[0].mxu0
      %v894 = vadd.f32 0.0, %v893
      %v895 = vpop.f32.mrb[0].mxu0
      %v896 = vpop.f32.mrb[0].mxu0
      %v897 = vadd.f32 0.0, %v896
      %v898 = vpop.f32.mrb[0].mxu0
      %899 = vdwg.mxu0
      %900 = vmatprep.subr.bf16.mxu0 0
      %901 = vmatpush1.bf16.msra.mxu0 %v846
      %902 = vmatprep.subr.bf16.mxu0 0
      %903 = vmatpush1.bf16.msra.mxu0 %v848
      %904 = vmatprep.subr.bf16.mxu0 0
      %905 = vmatpush1.bf16.msra.mxu0 0
      %906 = vmatprep.subr.bf16.mxu0 0
      %907 = vmatpush1.bf16.msra.mxu0 0
      %908 = vmatprep.subr.bf16.mxu0 0
      %909 = vmatpush1.bf16.msra.mxu0 0
      %910 = vmatprep.subr.bf16.mxu0 0
      %911 = vmatpush1.bf16.msra.mxu0 0
      %912 = vmatprep.subr.bf16.mxu0 0
      %913 = vmatpush1.bf16.msra.mxu0 0
      %914 = vmatprep.subr.bf16.mxu0 0
      %915 = vmatpush1.bf16.msra.mxu0 0
      %916 = vmatprep.subr.bf16.mxu0 0
      %917 = vmatpush1.bf16.msra.mxu0 0
      %918 = vmatprep.subr.bf16.mxu0 0
      %919 = vmatpush1.bf16.msra.mxu0 0
      %920 = vmatprep.subr.bf16.mxu0 0
      %921 = vmatpush1.bf16.msra.mxu0 0
      %922 = vmatprep.subr.bf16.mxu0 0
      %923 = vmatpush1.bf16.msra.mxu0 0
      %924 = vmatprep.subr.bf16.mxu0 0
      %925 = vmatpush1.bf16.msra.mxu0 0
      %926 = vmatprep.subr.bf16.mxu0 0
      %927 = vmatpush1.bf16.msra.mxu0 0
      %928 = vmatprep.subr.bf16.mxu0 0
      %929 = vmatpush1.bf16.msra.mxu0 0
      %930 = vmatprep.subr.bf16.mxu0 0
      %931 = vmatpush1.bf16.msra.mxu0 0
      %932 = vmatprep.mubr.bf16.mxu0 0
      %933 = vmatmul.mubr.bf16.gmra.mrb[0].mxu0 %v442
      %v934 = vpop.f32.mrb[0].mxu0
      %v935 = vadd.f32 %v886, %v934
      %v936 = vpop.f32.mrb[0].mxu0
      %v937 = vpop.f32.mrb[0].mxu0
      %v938 = vadd.f32 %v889, %v937
      %v939 = vpop.f32.mrb[0].mxu0
      %940 = vmatprep.mubr.bf16.mxu0 0
      %941 = vmatmul.mubr.bf16.gmra.mrb[0].mxu0 %v445
      %v942 = vpop.f32.mrb[0].mxu0
      %v943 = vadd.f32 %v894, %v942
      %v944 = vpop.f32.mrb[0].mxu0
      %v945 = vpop.f32.mrb[0].mxu0
      %v946 = vadd.f32 %v897, %v945
      %v947 = vpop.f32.mrb[0].mxu0
      %948 = vdwg.mxu0
      %v949 = vmax.f32 %v935, 0.0
      %v950 = vmax.f32 %v938, 0.0
      %v951 = vmax.f32 %v943, 0.0
      %v952 = vmax.f32 %v946, 0.0
      %v953 = vmul.f32 %v949, %v553
      %v954 = vmul.f32 %v950, %v553
      %v955 = vmul.f32 %v951, %v553
      %v956 = vmul.f32 %v952, %v553
      %v957 = vpack.c.bf16 %v954, %v953
      %v958 = vpack.c.bf16 %v956, %v955
      %961 = vrot.lane.b32.xlu0 %v957, 4
      %v962 = vpop.permute.xlu0 %961
      %963 = vrot.lane.b32.xlu0 %v958, 4
      %v964 = vpop.permute.xlu0 %963
      %v966 = vsel %vm567, 0, %v962
      %v969 = vsel %vm567, 0, %v964
      %973 = vrot.lane.b32.xlu0 %v842, 127
      %v974 = vpop.permute.xlu0 %973
      %975 = vrot.lane.b32.xlu0 %v844, 127
      %v976 = vpop.permute.xlu0 %975
      %981 = vrot.lane.b32.xlu0 %v966, 127
      %v982 = vpop.permute.xlu0 %981
      %983 = vrot.lane.b32.xlu0 %v969, 127
      %v984 = vpop.permute.xlu0 %983
      %989 = vrot.lane.b32.xlu0 %v706, 125
      %v990 = vpop.permute.xlu0 %989
      %991 = vrot.lane.b32.xlu0 %v708, 125
      %v992 = vpop.permute.xlu0 %991
      %997 = vrot.lane.b32.xlu0 %v570, 124
      %v998 = vpop.permute.xlu0 %997
      %999 = vrot.lane.b32.xlu0 %v572, 124
      %v1000 = vpop.permute.xlu0 %999
      %1003 = vrot.lane.b32.xlu0 %v706, 124
      %v1004 = vpop.permute.xlu0 %1003
      %1005 = vrot.lane.b32.xlu0 %v708, 124
      %v1006 = vpop.permute.xlu0 %1005
      %1009 = vrot.lane.b32.xlu0 %v966, 125
      %v1010 = vpop.permute.xlu0 %1009
      %1011 = vrot.lane.b32.xlu0 %v969, 125
      %v1012 = vpop.permute.xlu0 %1011
      %1015 = vrot.lane.b32.xlu0 %v842, 124
      %v1016 = vpop.permute.xlu0 %1015
      %1017 = vrot.lane.b32.xlu0 %v844, 124
      %v1018 = vpop.permute.xlu0 %1017
      %1021 = vrot.lane.b32.xlu0 %v966, 124
      %v1022 = vpop.permute.xlu0 %1021
      %1023 = vrot.lane.b32.xlu0 %v969, 124
      %v1024 = vpop.permute.xlu0 %1023
      %v1027 = vld [vmem:[%s2] sm:$0xff]
      %v1028 = vld [vmem:[%s2 + $0x8] sm:$0xf]
      %v1029 = vld [vmem:[%s2 + $0xc] sm:$0xff]
      %v1030 = vld [vmem:[%s2 + $0x14] sm:$0xf]
      %v1031 = vld [vmem:[%s2 + $0x18] sm:$0xff]
      %v1032 = vld [vmem:[%s2 + $0x20] sm:$0xf]
      %v1033 = vld [vmem:[%s2 + $0x24] sm:$0xff]
      %v1034 = vld [vmem:[%s2 + $0x2c] sm:$0xf]
      %v1035 = vld [vmem:[%s2 + $0x30] sm:$0xff]
      %v1036 = vld [vmem:[%s2 + $0x38] sm:$0xf]
      %v1037 = vld [vmem:[%s2 + $0x3c] sm:$0xff]
      %v1038 = vld [vmem:[%s2 + $0x44] sm:$0xf]
      %v1039 = vld [vmem:[%s2 + $0x48] sm:$0xff]
      %v1040 = vld [vmem:[%s2 + $0x50] sm:$0xf]
      %v1041 = vld [vmem:[%s2 + $0x54] sm:$0xff]
      %v1042 = vld [vmem:[%s2 + $0x5c] sm:$0xf]
      %v1059 = vunpack.c.l.b16 %v1027
      %v1060 = vunpack.c.h.b16 %v1027
      %v1061 = vunpack.c.l.b16 %v1028
      %v1062 = vunpack.c.l.b16 %v1029
      %v1063 = vunpack.c.h.b16 %v1029
      %v1064 = vunpack.c.l.b16 %v1030
      %v1065 = vunpack.c.l.b16 %v1031
      %v1066 = vunpack.c.h.b16 %v1031
      %v1067 = vunpack.c.l.b16 %v1032
      %v1068 = vunpack.c.l.b16 %v1033
      %v1069 = vunpack.c.h.b16 %v1033
      %v1070 = vunpack.c.l.b16 %v1034
      %v1071 = vunpack.c.l.b16 %v1035
      %v1072 = vunpack.c.h.b16 %v1035
      %v1073 = vunpack.c.l.b16 %v1036
      %v1074 = vunpack.c.l.b16 %v1037
      %v1075 = vunpack.c.h.b16 %v1037
      %v1076 = vunpack.c.l.b16 %v1038
      %v1077 = vunpack.c.l.b16 %v1039
      %v1078 = vunpack.c.h.b16 %v1039
      %v1079 = vunpack.c.l.b16 %v1040
      %v1080 = vunpack.c.l.b16 %v1041
      %v1081 = vunpack.c.h.b16 %v1041
      %v1082 = vunpack.c.l.b16 %v1042
      %v1083 = vpack.c.b16 %v1062, %v1059
      %v1084 = vpack.c.b16 %v1063, %v1060
      %v1085 = vpack.c.b16 %v1064, %v1061
      %v1086 = vpack.c.b16 %v1068, %v1065
      %v1087 = vpack.c.b16 %v1069, %v1066
      %v1088 = vpack.c.b16 %v1070, %v1067
      %v1089 = vpack.c.b16 %v1074, %v1071
      %v1090 = vpack.c.b16 %v1075, %v1072
      %v1091 = vpack.c.b16 %v1076, %v1073
      %v1092 = vpack.c.b16 %v1080, %v1077
      %v1093 = vpack.c.b16 %v1081, %v1078
      %v1094 = vpack.c.b16 %v1082, %v1079
      %v1104 = vsel %vm440, %v1085, 0
      %v1107 = vsel %vm440, %v1088, 0
      %v1110 = vsel %vm440, %v1091, 0
      %v1113 = vsel %vm440, %v1094, 0
      %1115 = vmatprep.subr.bf16.mxu0 0
      %1116 = vmatpush1.bf16.msra.mxu0 %v966
      %1117 = vmatprep.subr.bf16.mxu0 0
      %1118 = vmatpush1.bf16.msra.mxu0 %v969
      %1119 = vmatprep.subr.bf16.mxu0 0
      %1120 = vmatpush1.bf16.msra.mxu0 %v974
      %1121 = vmatprep.subr.bf16.mxu0 0
      %1122 = vmatpush1.bf16.msra.mxu0 %v976
      %1123 = vmatprep.subr.bf16.mxu0 0
      %1124 = vmatpush1.bf16.msra.mxu0 %v982
      %1125 = vmatprep.subr.bf16.mxu0 0
      %1126 = vmatpush1.bf16.msra.mxu0 %v984
      %1127 = vmatprep.subr.bf16.mxu0 0
      %1128 = vmatpush1.bf16.msra.mxu0 %v990
      %1129 = vmatprep.subr.bf16.mxu0 0
      %1130 = vmatpush1.bf16.msra.mxu0 %v992
      %1131 = vmatprep.subr.bf16.mxu0 0
      %1132 = vmatpush1.bf16.msra.mxu0 %v998
      %1133 = vmatprep.subr.bf16.mxu0 0
      %1134 = vmatpush1.bf16.msra.mxu0 %v1000
      %1135 = vmatprep.subr.bf16.mxu0 0
      %1136 = vmatpush1.bf16.msra.mxu0 %v1004
      %1137 = vmatprep.subr.bf16.mxu0 0
      %1138 = vmatpush1.bf16.msra.mxu0 %v1006
      %1139 = vmatprep.subr.bf16.mxu0 0
      %1140 = vmatpush1.bf16.msra.mxu0 %v1010
      %1141 = vmatprep.subr.bf16.mxu0 0
      %1142 = vmatpush1.bf16.msra.mxu0 %v1012
      %1143 = vmatprep.subr.bf16.mxu0 0
      %1144 = vmatpush1.bf16.msra.mxu0 %v1016
      %1145 = vmatprep.subr.bf16.mxu0 0
      %1146 = vmatpush1.bf16.msra.mxu0 %v1018
      %1147 = vmatprep.mubr.bf16.mxu0 %v1084
      %1148 = vmatmul.mubr.bf16.gmra.mrb[0].mxu0 %v1083
      %v1149 = vpop.f32.mrb[0].mxu0
      %v1150 = vadd.f32 0.0, %v1149
      %v1151 = vpop.f32.mrb[0].mxu0
      %v1152 = vpop.f32.mrb[0].mxu0
      %v1153 = vadd.f32 0.0, %v1152
      %v1154 = vpop.f32.mrb[0].mxu0
      %1155 = vmatprep.mubr.bf16.mxu0 %v1087
      %1156 = vmatmul.mubr.bf16.gmra.mrb[0].mxu0 %v1086
      %v1157 = vpop.f32.mrb[0].mxu0
      %v1158 = vadd.f32 0.0, %v1157
      %v1159 = vpop.f32.mrb[0].mxu0
      %v1160 = vpop.f32.mrb[0].mxu0
      %v1161 = vadd.f32 0.0, %v1160
      %v1162 = vpop.f32.mrb[0].mxu0
      %1163 = vmatprep.mubr.bf16.mxu0 %v1090
      %1164 = vmatmul.mubr.bf16.gmra.mrb[0].mxu0 %v1089
      %v1165 = vpop.f32.mrb[0].mxu0
      %v1166 = vadd.f32 0.0, %v1165
      %v1167 = vpop.f32.mrb[0].mxu0
      %v1168 = vpop.f32.mrb[0].mxu0
      %v1169 = vadd.f32 0.0, %v1168
      %v1170 = vpop.f32.mrb[0].mxu0
      %1171 = vmatprep.mubr.bf16.mxu0 %v1093
      %1172 = vmatmul.mubr.bf16.gmra.mrb[0].mxu0 %v1092
      %v1173 = vpop.f32.mrb[0].mxu0
      %v1174 = vadd.f32 0.0, %v1173
      %v1175 = vpop.f32.mrb[0].mxu0
      %v1176 = vpop.f32.mrb[0].mxu0
      %v1177 = vadd.f32 0.0, %v1176
      %v1178 = vpop.f32.mrb[0].mxu0
      %1179 = vdwg.mxu0
      %1180 = vmatprep.subr.bf16.mxu0 0
      %1181 = vmatpush1.bf16.msra.mxu0 %v1022
      %1182 = vmatprep.subr.bf16.mxu0 0
      %1183 = vmatpush1.bf16.msra.mxu0 %v1024
      %1184 = vmatprep.subr.bf16.mxu0 0
      %1185 = vmatpush1.bf16.msra.mxu0 0
      %1186 = vmatprep.subr.bf16.mxu0 0
      %1187 = vmatpush1.bf16.msra.mxu0 0
      %1188 = vmatprep.subr.bf16.mxu0 0
      %1189 = vmatpush1.bf16.msra.mxu0 0
      %1190 = vmatprep.subr.bf16.mxu0 0
      %1191 = vmatpush1.bf16.msra.mxu0 0
      %1192 = vmatprep.subr.bf16.mxu0 0
      %1193 = vmatpush1.bf16.msra.mxu0 0
      %1194 = vmatprep.subr.bf16.mxu0 0
      %1195 = vmatpush1.bf16.msra.mxu0 0
      %1196 = vmatprep.subr.bf16.mxu0 0
      %1197 = vmatpush1.bf16.msra.mxu0 0
      %1198 = vmatprep.subr.bf16.mxu0 0
      %1199 = vmatpush1.bf16.msra.mxu0 0
      %1200 = vmatprep.subr.bf16.mxu0 0
      %1201 = vmatpush1.bf16.msra.mxu0 0
      %1202 = vmatprep.subr.bf16.mxu0 0
      %1203 = vmatpush1.bf16.msra.mxu0 0
      %1204 = vmatprep.subr.bf16.mxu0 0
      %1205 = vmatpush1.bf16.msra.mxu0 0
      %1206 = vmatprep.subr.bf16.mxu0 0
      %1207 = vmatpush1.bf16.msra.mxu0 0
      %1208 = vmatprep.subr.bf16.mxu0 0
      %1209 = vmatpush1.bf16.msra.mxu0 0
      %1210 = vmatprep.subr.bf16.mxu0 0
      %1211 = vmatpush1.bf16.msra.mxu0 0
      %1212 = vmatprep.mubr.bf16.mxu0 0
      %1213 = vmatmul.mubr.bf16.gmra.mrb[0].mxu0 %v1104
      %v1214 = vpop.f32.mrb[0].mxu0
      %v1215 = vadd.f32 %v1150, %v1214
      %v1216 = vpop.f32.mrb[0].mxu0
      %v1217 = vpop.f32.mrb[0].mxu0
      %v1218 = vadd.f32 %v1153, %v1217
      %v1219 = vpop.f32.mrb[0].mxu0
      %1220 = vmatprep.mubr.bf16.mxu0 0
      %1221 = vmatmul.mubr.bf16.gmra.mrb[0].mxu0 %v1107
      %v1222 = vpop.f32.mrb[0].mxu0
      %v1223 = vadd.f32 %v1158, %v1222
      %v1224 = vpop.f32.mrb[0].mxu0
      %v1225 = vpop.f32.mrb[0].mxu0
      %v1226 = vadd.f32 %v1161, %v1225
      %v1227 = vpop.f32.mrb[0].mxu0
      %1228 = vmatprep.mubr.bf16.mxu0 0
      %1229 = vmatmul.mubr.bf16.gmra.mrb[0].mxu0 %v1110
      %v1230 = vpop.f32.mrb[0].mxu0
      %v1231 = vadd.f32 %v1166, %v1230
      %v1232 = vpop.f32.mrb[0].mxu0
      %v1233 = vpop.f32.mrb[0].mxu0
      %v1234 = vadd.f32 %v1169, %v1233
      %v1235 = vpop.f32.mrb[0].mxu0
      %1236 = vmatprep.mubr.bf16.mxu0 0
      %1237 = vmatmul.mubr.bf16.gmra.mrb[0].mxu0 %v1113
      %v1238 = vpop.f32.mrb[0].mxu0
      %v1239 = vadd.f32 %v1174, %v1238
      %v1240 = vpop.f32.mrb[0].mxu0
      %v1241 = vpop.f32.mrb[0].mxu0
      %v1242 = vadd.f32 %v1177, %v1241
      %v1243 = vpop.f32.mrb[0].mxu0
      %1244 = vdwg.mxu0
      %v1245 = vmax.f32 %v1215, 0.0
      %v1246 = vmax.f32 %v1218, 0.0
      %v1247 = vmax.f32 %v1223, 0.0
      %v1248 = vmax.f32 %v1226, 0.0
      %v1249 = vmax.f32 %v1231, 0.0
      %v1250 = vmax.f32 %v1234, 0.0
      %v1251 = vmax.f32 %v1239, 0.0
      %v1252 = vmax.f32 %v1242, 0.0
      %v1253 = vmul.f32 %v1245, %v553
      %v1254 = vmul.f32 %v1246, %v553
      %v1255 = vmul.f32 %v1247, %v553
      %v1256 = vmul.f32 %v1248, %v553
      %v1257 = vmul.f32 %v1249, %v553
      %v1258 = vmul.f32 %v1250, %v553
      %v1259 = vmul.f32 %v1251, %v553
      %v1260 = vmul.f32 %v1252, %v553
      %vm1261 = vcmask 48128
      %v1262 = vsel %vm1261, %v1253, 0.0
      %1263 = vadd.xlane.f32.xlu0 %v1262
      %v1264 = vpop.xlane.xlu0 %1263
      %v1265 = vsel %vm1261, %v1254, 0.0
      %1266 = vadd.xlane.f32.xlu0 %v1265
      %v1267 = vpop.xlane.xlu0 %1266
      %v1268 = vsel %vm1261, %v1255, 0.0
      %1269 = vadd.xlane.f32.xlu0 %v1268
      %v1270 = vpop.xlane.xlu0 %1269
      %v1271 = vsel %vm1261, %v1256, 0.0
      %1272 = vadd.xlane.f32.xlu0 %v1271
      %v1273 = vpop.xlane.xlu0 %1272
      %v1274 = vsel %vm1261, %v1257, 0.0
      %1275 = vadd.xlane.f32.xlu0 %v1274
      %v1276 = vpop.xlane.xlu0 %1275
      %v1277 = vsel %vm1261, %v1258, 0.0
      %1278 = vadd.xlane.f32.xlu0 %v1277
      %v1279 = vpop.xlane.xlu0 %1278
      %v1280 = vsel %vm1261, %v1259, 0.0
      %1281 = vadd.xlane.f32.xlu0 %v1280
      %v1282 = vpop.xlane.xlu0 %1281
      %v1283 = vsel %vm1261, %v1260, 0.0
      %1284 = vadd.xlane.f32.xlu0 %v1283
      %v1285 = vpop.xlane.xlu0 %1284
      %v1286 = vmul.f32 %v1264, 0.25
      %v1287 = vmul.f32 %v1267, 0.25
      %v1288 = vmul.f32 %v1270, 0.25
      %v1289 = vmul.f32 %v1273, 0.25
      %v1290 = vmul.f32 %v1276, 0.25
      %v1291 = vmul.f32 %v1279, 0.25
      %v1292 = vmul.f32 %v1282, 0.25
      %v1293 = vmul.f32 %v1285, 0.25
      %v1294 = vld [vmem:[%s4] sm:$0xff]
      %v1295 = vld [vmem:[%s4 + $0x8] sm:$0xff]
      %v1296 = vld [vmem:[%s5] sm:$0xff]
      %v1297 = vld [vmem:[%s5 + $0x8] sm:$0xff]
      %vm1298 = vcmask 523264
      %v1300 = vsel %vm1298, %v1294, 0
      %v1303 = vsel %vm1298, %v1295, 0
      %1305 = vmatprep.subr.mxu0 0.0
      %1306 = vmatpush1.msra.mxu0 %v1286
      %1307 = vmatprep.subr.mxu0 0.0
      %1308 = vmatpush1.msra.mxu0 %v1287
      %1309 = vmatprep.subr.mxu0 0.0
      %1310 = vmatpush1.msra.mxu0 %v1288
      %1311 = vmatprep.subr.mxu0 0.0
      %1312 = vmatpush1.msra.mxu0 %v1289
      %1313 = vmatprep.subr.mxu0 0.0
      %1314 = vmatpush1.msra.mxu0 %v1290
      %1315 = vmatprep.subr.mxu0 0.0
      %1316 = vmatpush1.msra.mxu0 %v1291
      %1317 = vmatprep.subr.mxu0 0.0
      %1318 = vmatpush1.msra.mxu0 %v1292
      %1319 = vmatprep.subr.mxu0 0.0
      %1320 = vmatpush1.msra.mxu0 %v1293
      %1321 = vmatprep.subr.mxu0 0.0
      %1322 = vmatpush1.msra.mxu0 0.0
      %1323 = vmatprep.subr.mxu0 0.0
      %1324 = vmatpush1.msra.mxu0 0.0
      %1325 = vmatprep.subr.mxu0 0.0
      %1326 = vmatpush1.msra.mxu0 0.0
      %1327 = vmatprep.subr.mxu0 0.0
      %1328 = vmatpush1.msra.mxu0 0.0
      %1329 = vmatprep.subr.mxu0 0.0
      %1330 = vmatpush1.msra.mxu0 0.0
      %1331 = vmatprep.subr.mxu0 0.0
      %1332 = vmatpush1.msra.mxu0 0.0
      %1333 = vmatprep.subr.mxu0 0.0
      %1334 = vmatpush1.msra.mxu0 0.0
      %1335 = vmatprep.subr.mxu0 0.0
      %1336 = vmatpush1.msra.mxu0 0.0
      %1337 = vmatprep.subr.mxu0 0.0
      %1338 = vmatpush1.msra.mxu0 0.0
      %1339 = vmatprep.subr.mxu0 0.0
      %1340 = vmatpush1.msra.mxu0 0.0
      %1341 = vmatprep.subr.mxu0 0.0
      %1342 = vmatpush1.msra.mxu0 0.0
      %1343 = vmatprep.subr.mxu0 0.0
      %1344 = vmatpush1.msra.mxu0 0.0
      %1345 = vmatprep.subr.mxu0 0.0
      %1346 = vmatpush1.msra.mxu0 0.0
      %1347 = vmatprep.subr.mxu0 0.0
      %1348 = vmatpush1.msra.mxu0 0.0
      %1349 = vmatprep.subr.mxu0 0.0
      %1350 = vmatpush1.msra.mxu0 0.0
      %1351 = vmatprep.subr.mxu0 0.0
      %1352 = vmatpush1.msra.mxu0 0.0
      %1353 = vmatprep.subr.mxu0 0.0
      %1354 = vmatpush1.msra.mxu0 0.0
      %1355 = vmatprep.subr.mxu0 0.0
      %1356 = vmatpush1.msra.mxu0 0.0
      %1357 = vmatprep.subr.mxu0 0.0
      %1358 = vmatpush1.msra.mxu0 0.0
      %1359 = vmatprep.subr.mxu0 0.0
      %1360 = vmatpush1.msra.mxu0 0.0
      %1361 = vmatprep.subr.mxu0 0.0
      %1362 = vmatpush1.msra.mxu0 0.0
      %1363 = vmatprep.subr.mxu0 0.0
      %1364 = vmatpush1.msra.mxu0 0.0
      %1365 = vmatprep.subr.mxu0 0.0
      %1366 = vmatpush1.msra.mxu0 0.0
      %1367 = vmatprep.subr.mxu0 0.0
      %1368 = vmatpush1.msra.mxu0 0.0
      %1369 = vmatprep.mubr.f32.mxu0 0.0
      %1370 = vmatmul.mubr.f32.gmra.mrb[0].mxu0 %v1300
      %v1371 = vpop.f32.mrb[0].mxu0
      %v1372 = vadd.f32 %v1296, %v1371
      %v1373 = vpop.f32.mrb[0].mxu0
      %1374 = vmatprep.mubr.f32.mxu0 0.0
      %1375 = vmatmul.mubr.f32.gmra.mrb[0].mxu0 %v1303
      %v1376 = vpop.f32.mrb[0].mxu0
      %v1377 = vadd.f32 %v1297, %v1376
      %v1378 = vpop.f32.mrb[0].mxu0
      %1379 = vdwg.mxu0
      %vm1380 = vcmp.gt.f32.partialorder %v1372, 0.0
      %vm1381 = vcmp.gt.f32.partialorder %v1377, 0.0
      %v1382 = vmul.f32 %v1372, 0.2
      %v1383 = vmul.f32 %v1377, 0.2
      %v1384 = vsel %vm1380, %v1372, %v1382
      %v1385 = vsel %vm1381, %v1377, %v1383
      %v1386 = vld [vmem:[%s6] sm:$0xff]
      %v1387 = vld [vmem:[%s6 + $0x8] sm:$0xff]
      %v1388 = vld [vmem:[%s6 + $0x10] sm:$0xff]
      %v1389 = vld [vmem:[%s6 + $0x18] sm:$0xff]
      %v1390 = vld [vmem:[%s7] sm:$0xff]
      %v1391 = vld [vmem:[%s7 + $0x8] sm:$0xff]
      %v1392 = vld [vmem:[%s7 + $0x10] sm:$0xff]
      %v1393 = vld [vmem:[%s7 + $0x18] sm:$0xff]
      %vm1394 = vcmask 130048
      %v1396 = vsel %vm1394, %v1386, 0
      %v1399 = vsel %vm1394, %v1387, 0
      %v1402 = vsel %vm1394, %v1388, 0
      %v1405 = vsel %vm1394, %v1389, 0
      %1407 = vmatprep.subr.mxu0 0.0
      %1408 = vmatpush1.msra.mxu0 %v1384
      %1409 = vmatprep.subr.mxu0 0.0
      %1410 = vmatpush1.msra.mxu0 %v1385
      %1411 = vmatprep.subr.mxu0 0.0
      %1412 = vmatpush1.msra.mxu0 0.0
      %1413 = vmatprep.subr.mxu0 0.0
      %1414 = vmatpush1.msra.mxu0 0.0
      %1415 = vmatprep.subr.mxu0 0.0
      %1416 = vmatpush1.msra.mxu0 0.0
      %1417 = vmatprep.subr.mxu0 0.0
      %1418 = vmatpush1.msra.mxu0 0.0
      %1419 = vmatprep.subr.mxu0 0.0
      %1420 = vmatpush1.msra.mxu0 0.0
      %1421 = vmatprep.subr.mxu0 0.0
      %1422 = vmatpush1.msra.mxu0 0.0
      %1423 = vmatprep.subr.mxu0 0.0
      %1424 = vmatpush1.msra.mxu0 0.0
      %1425 = vmatprep.subr.mxu0 0.0
      %1426 = vmatpush1.msra.mxu0 0.0
      %1427 = vmatprep.subr.mxu0 0.0
      %1428 = vmatpush1.msra.mxu0 0.0
      %1429 = vmatprep.subr.mxu0 0.0
      %1430 = vmatpush1.msra.mxu0 0.0
      %1431 = vmatprep.subr.mxu0 0.0
      %1432 = vmatpush1.msra.mxu0 0.0
      %1433 = vmatprep.subr.mxu0 0.0
      %1434 = vmatpush1.msra.mxu0 0.0
      %1435 = vmatprep.subr.mxu0 0.0
      %1436 = vmatpush1.msra.mxu0 0.0
      %1437 = vmatprep.subr.mxu0 0.0
      %1438 = vmatpush1.msra.mxu0 0.0
      %1439 = vmatprep.subr.mxu0 0.0
      %1440 = vmatpush1.msra.mxu0 0.0
      %1441 = vmatprep.subr.mxu0 0.0
      %1442 = vmatpush1.msra.mxu0 0.0
      %1443 = vmatprep.subr.mxu0 0.0
      %1444 = vmatpush1.msra.mxu0 0.0
      %1445 = vmatprep.subr.mxu0 0.0
      %1446 = vmatpush1.msra.mxu0 0.0
      %1447 = vmatprep.subr.mxu0 0.0
      %1448 = vmatpush1.msra.mxu0 0.0
      %1449 = vmatprep.subr.mxu0 0.0
      %1450 = vmatpush1.msra.mxu0 0.0
      %1451 = vmatprep.subr.mxu0 0.0
      %1452 = vmatpush1.msra.mxu0 0.0
      %1453 = vmatprep.subr.mxu0 0.0
      %1454 = vmatpush1.msra.mxu0 0.0
      %1455 = vmatprep.subr.mxu0 0.0
      %1456 = vmatpush1.msra.mxu0 0.0
      %1457 = vmatprep.subr.mxu0 0.0
      %1458 = vmatpush1.msra.mxu0 0.0
      %1459 = vmatprep.subr.mxu0 0.0
      %1460 = vmatpush1.msra.mxu0 0.0
      %1461 = vmatprep.subr.mxu0 0.0
      %1462 = vmatpush1.msra.mxu0 0.0
      %1463 = vmatprep.subr.mxu0 0.0
      %1464 = vmatpush1.msra.mxu0 0.0
      %1465 = vmatprep.subr.mxu0 0.0
      %1466 = vmatpush1.msra.mxu0 0.0
      %1467 = vmatprep.subr.mxu0 0.0
      %1468 = vmatpush1.msra.mxu0 0.0
      %1469 = vmatprep.subr.mxu0 0.0
      %1470 = vmatpush1.msra.mxu0 0.0
      %1471 = vmatprep.mubr.f32.mxu0 0.0
      %1472 = vmatmul.mubr.f32.gmra.mrb[0].mxu0 %v1396
      %v1473 = vpop.f32.mrb[0].mxu0
      %v1474 = vadd.f32 %v1390, %v1473
      %v1475 = vpop.f32.mrb[0].mxu0
      %1476 = vmatprep.mubr.f32.mxu0 0.0
      %1477 = vmatmul.mubr.f32.gmra.mrb[0].mxu0 %v1399
      %v1478 = vpop.f32.mrb[0].mxu0
      %v1479 = vadd.f32 %v1391, %v1478
      %v1480 = vpop.f32.mrb[0].mxu0
      %1481 = vmatprep.mubr.f32.mxu0 0.0
      %1482 = vmatmul.mubr.f32.gmra.mrb[0].mxu0 %v1402
      %v1483 = vpop.f32.mrb[0].mxu0
      %v1484 = vadd.f32 %v1392, %v1483
      %v1485 = vpop.f32.mrb[0].mxu0
      %1486 = vmatprep.mubr.f32.mxu0 0.0
      %1487 = vmatmul.mubr.f32.gmra.mrb[0].mxu0 %v1405
      %v1488 = vpop.f32.mrb[0].mxu0
      %v1489 = vadd.f32 %v1393, %v1488
      %v1490 = vpop.f32.mrb[0].mxu0
      %1491 = vdwg.mxu0
      %v1492 = vtanh.pop %v1474
      %v1493 = vtanh.pop %v1479
      %v1494 = vtanh.pop %v1484
      %v1495 = vtanh.pop %v1489
      %vm1496 = vcmask 7168
      %1497 = vst.msk [vmem:[%s305] sm:$0xff] %vm1496, %v1492
      %1498 = vst.msk [vmem:[%s305 + $0x8] sm:$0xff] %vm1496, %v1493
      %1499 = vst.msk [vmem:[%s305 + $0x10] sm:$0xff] %vm1496, %v1494
      %1500 = vst.msk [vmem:[%s305 + $0x18] sm:$0xff] %vm1496, %v1495
      %p1501 = scmp.lt.s32.totalorder %s19, 1
      %s1502 = scalar_select %p1501, %s19, 1
      %s1503 = smul.addr %s1502, 4
      %s1504 = smul.addr %s1503, 8
      %s1505 = scalar_lea.vmem %s8, %s1504
      // Predicated region
      $region53: #{global_encoder_forward.5} parent=51 // pred_check
        %p1506 = pneg %p210
      $region54: #{global_encoder_forward.5} parent=51 // pred_check_branch
        %1508 = sbr.rel (%p1506) target = $region56
      $region55: #{global_encoder_forward.5} parent=51 // pred_region
        _
      $region56: #{global_encoder_forward.5} parent=51 // pred_fallthru
        _
    $region52: #{global_encoder_forward.5} parent=5 // pred_fallthru
      _
    %p1509 = scmp.le.s32.totalorder 2, %s14
    // Predicated region
    $region57: #{global_encoder_forward.5} parent=5 // pred_check
      %p1510 = pneg %p1509
    $region58: #{global_encoder_forward.5} parent=5 // pred_check_branch
      %1512 = sbr.rel (%p1510) target = $region60
    $region59: #{global_encoder_forward.5} parent=5 // pred_region
      %s1513 = ssub.s32 %s14, 2
      // Predicated region
      $region61: #{global_encoder_forward.5} parent=59 // pred_check
        %p1514 = pneg %p216
      $region62: #{global_encoder_forward.5} parent=59 // pred_check_branch
        %1516 = sbr.rel (%p1514) target = $region64
      $region63: #{global_encoder_forward.5} parent=59 // pred_region
        %p1517 = scmp.lt.s32.totalorder %s20, 1
        %s1518 = scalar_select %p1517, %s20, 1
        %s1519 = smul.addr %s1518, 4
        %s1520 = smul.addr %s1519, 8
        %s1521 = scalar_lea.vmem %s8, %s1520
      $region64: #{global_encoder_forward.5} parent=59 // pred_fallthru
        _
    $region60: #{global_encoder_forward.5} parent=5 // pred_fallthru
      _
  $region6: #{global_encoder_forward.5} parent=0 // loop_footer
    %s18 = sadd.s32 1, %s14
  $region7: #{global_encoder_forward.5} parent=0 // loop_footer_branch
    %13 = sbr.rel target = $region3
  $region8: #{global_encoder_forward.5} parent=0 // loop_exit
    _

</llo_original>
